<compile_context>
chip_gen: v6e
topology: v6e:2x2x1
jax: 0.10.0
libtpu: 0.0.40
codegen_flags: <defaults>
</compile_context>

<pallas_src>
import functools

import jax
import jax.numpy as jnp
from jax.experimental import pallas as pl
from jax.experimental.pallas import tpu as pltpu

BN_EPS = 1e-5

NUM_BOTTLENECK, NB_PAD = 1000, 1024
MID, MID_PAD = 500, 512
MAX_BATCH_TILE = 512          # keeps (TB,1024)+(TB,512) f32 intermediates small on v7x


def _round_up(n, m):
    return ((n + m - 1) // m) * m


def _fold_bn(stat_ref, bn_ref, ss_ref, inv_b):
    """Training-mode BatchNorm1d (biased batch variance) folded into scale/shift."""
    mean = stat_ref[0:1, :] * inv_b
    var = jnp.maximum(stat_ref[1:2, :] * inv_b - mean * mean, 0.0)
    scale = bn_ref[0:1, :] * jax.lax.rsqrt(var + BN_EPS)        # EUP rsqrt
    ss_ref[0:1, :] = scale
    ss_ref[1:2, :] = bn_ref[1:2, :] - mean * scale


def channel_compress_kernel(x_ref, w1_ref, bn1_ref, w2_ref, bn2_ref, w3_ref, b3_ref,
                            o_ref, stat1_ref, stat2_ref, ss1_ref, ss2_ref, *, inv_b):
    p = pl.program_id(0)          # pass: 0 = BN1 stats, 1 = BN2 stats, 2 = final output
    i = pl.program_id(1)          # batch tile
    last = pl.num_programs(1) - 1

    x = x_ref[...]                # bf16 (TB, in_ch); cast already done in the wrapper.
    # Stage-1 matmul is needed in every pass (recompute instead of spilling h1 to HBM).
    h1 = jnp.dot(x, w1_ref[...], preferred_element_type=jnp.float32)      # (TB, 1024)

    @pl.when(p == 0)
    def _stats1():
        @pl.when(i == 0)
        def _():
            stat1_ref[...] = jnp.zeros_like(stat1_ref)
        stat1_ref[0:1, :] += jnp.sum(h1, axis=0, keepdims=True)
        stat1_ref[1:2, :] += jnp.sum(h1 * h1, axis=0, keepdims=True)

        @pl.when(i == last)
        def _():
            _fold_bn(stat1_ref, bn1_ref, ss1_ref, inv_b)

    @pl.when(p > 0)
    def _apply():
        a1 = jnp.maximum(h1 * ss1_ref[0:1, :] + ss1_ref[1:2, :], 0.0)
        h2 = jnp.dot(a1.astype(jnp.bfloat16), w2_ref[...],
                     preferred_element_type=jnp.float32)                  # (TB, 512)

        @pl.when(p == 1)
        def _stats2():
            @pl.when(i == 0)
            def _():
                stat2_ref[...] = jnp.zeros_like(stat2_ref)
            stat2_ref[0:1, :] += jnp.sum(h2, axis=0, keepdims=True)
            stat2_ref[1:2, :] += jnp.sum(h2 * h2, axis=0, keepdims=True)

            @pl.when(i == last)
            def _():
                _fold_bn(stat2_ref, bn2_ref, ss2_ref, inv_b)

        @pl.when(p == 2)
        def _out():
            a2 = jnp.maximum(h2 * ss2_ref[0:1, :] + ss2_ref[1:2, :], 0.0)
            o_ref[...] = (jnp.dot(a2.astype(jnp.bfloat16), w3_ref[...],
                                  preferred_element_type=jnp.float32)
                          + b3_ref[...]).astype(o_ref.dtype)


def init_channel_compress_params(key, in_ch, out_ch, weight_dtype=jnp.bfloat16):
    """Deterministic init mirroring weights_init_kaiming, with padded dims.

    Linear: kaiming_normal_(a=0, mode='fan_out') -> std = sqrt(2 / out_features),
            bias = 0 (pre-BN biases omitted: cancelled by training-mode BN).
            Weights stored pre-transposed as (in, out), zero-padded to 1024/512/128k.
    BatchNorm1d: weight ~ N(1, 0.02), bias = 0; pad region zeroed so padded channels
            stay exactly 0 after BN+ReLU.
    """
    ks = jax.random.split(key, 5)
    out_pad = _round_up(out_ch, 128)

    def linear_w(k, fan_in, fan_out, pad_in, pad_out):
        std = (2.0 / fan_out) ** 0.5
        w = jax.random.normal(k, (fan_in, fan_out), jnp.float32) * std
        wp = jnp.zeros((pad_in, pad_out), jnp.float32).at[:fan_in, :fan_out].set(w)
        return wp.astype(weight_dtype)

    def bn_gb(k, n, n_pad):
        g = 1.0 + 0.02 * jax.random.normal(k, (n,), jnp.float32)
        g = jnp.zeros((n_pad,), jnp.float32).at[:n].set(g)
        b = jnp.zeros((n_pad,), jnp.float32)
        return jnp.stack([g, b], axis=0)          # (2, n_pad): row0=gamma, row1=beta

    w1 = linear_w(ks[0], in_ch, NUM_BOTTLENECK, in_ch, NB_PAD)
    bn1 = bn_gb(ks[1], NUM_BOTTLENECK, NB_PAD)
    w2 = linear_w(ks[2], NUM_BOTTLENECK, MID, NB_PAD, MID_PAD)
    bn2 = bn_gb(ks[3], MID, MID_PAD)
    w3 = linear_w(ks[4], MID, out_ch, MID_PAD, out_pad)
    b3 = jnp.zeros((1, out_pad), jnp.float32)
    return (w1, bn1, w2, bn2, w3, b3)


def _pick_batch_tile(B, max_tb=MAX_BATCH_TILE):
    """Largest batch tile <= max_tb that divides B and satisfies the sublane rule."""
    if B <= max_tb:
        return B
    if B % 8 != 0:
        # Block sublane dim must be a multiple of 8 or the full dim; no padding allowed
        # (padded rows would corrupt the batch statistics), so fall back to one tile.
        return B
    tb = max_tb - (max_tb % 8)
    while B % tb != 0:
        tb -= 8
    return tb


@functools.partial(jax.jit, static_argnames=("out_ch",))
def channel_compress(x, params, out_ch):
    w1, bn1, w2, bn2, w3, b3 = params
    B, in_ch = x.shape
    out_pad = w3.shape[-1]
    tb = _pick_batch_tile(B)
    nbt = B // tb

    kernel = functools.partial(channel_compress_kernel, inv_b=1.0 / B)
    out = pl.pallas_call(
        kernel,
        out_shape=jax.ShapeDtypeStruct((B, out_pad), jnp.float32),
        grid_spec=pltpu.PrefetchScalarGridSpec(
            num_scalar_prefetch=0,
            grid=(3, nbt),                                    # (pass, batch tile)
            in_specs=[
                pl.BlockSpec((tb, in_ch), lambda p, i: (i, 0)),   # x: tiled over batch
                pl.BlockSpec(w1.shape, lambda p, i: (0, 0)),      # weights: resident
                pl.BlockSpec(bn1.shape, lambda p, i: (0, 0)),
                pl.BlockSpec(w2.shape, lambda p, i: (0, 0)),
                pl.BlockSpec(bn2.shape, lambda p, i: (0, 0)),
                pl.BlockSpec(w3.shape, lambda p, i: (0, 0)),
                pl.BlockSpec(b3.shape, lambda p, i: (0, 0)),
            ],
            out_specs=pl.BlockSpec((tb, out_pad), lambda p, i: (i, 0)),
            scratch_shapes=[
                pltpu.VMEM((2, NB_PAD), jnp.float32),    # BN1 sum / sum-sq
                pltpu.VMEM((2, MID_PAD), jnp.float32),   # BN2 sum / sum-sq
                pltpu.VMEM((2, NB_PAD), jnp.float32),    # BN1 folded scale / shift
                pltpu.VMEM((2, MID_PAD), jnp.float32),   # BN2 folded scale / shift
            ],
        ),
        compiler_params=pltpu.CompilerParams(
            dimension_semantics=("arbitrary", "arbitrary"),
            vmem_limit_bytes=32 << 20,
        ),
    )(x.astype(jnp.bfloat16), w1, bn1, w2, bn2, w3, b3)
    return out[:, :out_ch]


def channel_compress_ref(x, params, out_ch):
    # Pure-JAX reference mirroring the kernel's precision policy
    # (bf16 matmul operands, f32 accumulation, f32 BatchNorm, training-mode stats).
    w1, bn1, w2, bn2, w3, b3 = params
    hp = jax.lax.Precision.HIGHEST

    def mm(a, w):
        return jnp.dot(a.astype(jnp.bfloat16).astype(jnp.float32),
                       w.astype(jnp.float32), precision=hp)

    def bn_relu(h, bn):
        g, b = bn[0], bn[1]
        m = jnp.mean(h, axis=0)
        v = jnp.mean((h - m) ** 2, axis=0)
        return jnp.maximum((h - m) / jnp.sqrt(v + BN_EPS) * g + b, 0.0)

    h = bn_relu(mm(x, w1), bn1)
    h = bn_relu(mm(h, w2), bn2)
    return (mm(h, w3) + b3)[:, :out_ch]


if __name__ == "__main__":
    # Small but shape-consistent: batch=8, in_ch=256, out_ch=64
    # (1000/500 bottleneck widths are fixed by the module; padded to 1024/512,
    #  output padded to 128 lanes and sliced back).
    B, IN_CH, OUT_CH = 8, 256, 64

    key = jax.random.PRNGKey(0)
    kx, kp = jax.random.split(key)
    x = jax.random.normal(kx, (B, IN_CH), dtype=jnp.float32)
    params = init_channel_compress_params(kp, IN_CH, OUT_CH)

    out = jax.block_until_ready(channel_compress(x, params, OUT_CH))
    ref = channel_compress_ref(x, params, OUT_CH)

    assert out.shape == (B, OUT_CH)
    assert jnp.allclose(out, ref, atol=1e-2, rtol=1e-2), float(
        jnp.max(jnp.abs(out - ref)))

    print("KERNEL_OK")
</pallas_src>

<mosaic_0001>
module attributes {stable_mosaic.version = 11 : i64} {
  func.func @channel_compress_kernel(%arg0: i32, %arg1: i32, %arg2: memref<8x256xbf16, #tpu.memory_space<vmem>>, %arg3: memref<256x1024xbf16, #tpu.memory_space<vmem>>, %arg4: memref<2x1024xf32, #tpu.memory_space<vmem>>, %arg5: memref<1024x512xbf16, #tpu.memory_space<vmem>>, %arg6: memref<2x512xf32, #tpu.memory_space<vmem>>, %arg7: memref<512x128xbf16, #tpu.memory_space<vmem>>, %arg8: memref<1x128xf32, #tpu.memory_space<vmem>>, %arg9: memref<8x128xf32, #tpu.memory_space<vmem>>, %arg10: memref<2x1024xf32, #tpu.memory_space<vmem>>, %arg11: memref<2x512xf32, #tpu.memory_space<vmem>>, %arg12: memref<2x1024xf32, #tpu.memory_space<vmem>>, %arg13: memref<2x512xf32, #tpu.memory_space<vmem>>) attributes {dimension_semantics = [#tpu.dimension_semantics<arbitrary>, #tpu.dimension_semantics<arbitrary>], iteration_bounds = array<i64: 3, 1>, scalar_prefetch = 0 : i64, scratch_operands = 4 : i64, tpu.core_type = #tpu.core_type<tc>, window_params = [{transform_indices = @transform_0, window_bounds = array<i64: 8, 256>}, {pipeline_mode = #tpu.pipeline_mode<synchronous>, transform_indices = @transform_1, window_bounds = array<i64: 256, 1024>}, {pipeline_mode = #tpu.pipeline_mode<synchronous>, transform_indices = @transform_2, window_bounds = array<i64: 2, 1024>}, {pipeline_mode = #tpu.pipeline_mode<synchronous>, transform_indices = @transform_3, window_bounds = array<i64: 1024, 512>}, {pipeline_mode = #tpu.pipeline_mode<synchronous>, transform_indices = @transform_4, window_bounds = array<i64: 2, 512>}, {pipeline_mode = #tpu.pipeline_mode<synchronous>, transform_indices = @transform_5, window_bounds = array<i64: 512, 128>}, {pipeline_mode = #tpu.pipeline_mode<synchronous>, transform_indices = @transform_6, window_bounds = array<i64: 1, 128>}, {transform_indices = @transform_7, window_bounds = array<i64: 8, 128>}]} {
    %c0 = arith.constant 0 : index
    %c0_0 = arith.constant 0 : index
    %0 = vector.load %arg2[%c0, %c0_0] : memref<8x256xbf16, #tpu.memory_space<vmem>>, vector<8x256xbf16>
    %c0_1 = arith.constant 0 : index
    %c0_2 = arith.constant 0 : index
    %1 = vector.load %arg3[%c0_1, %c0_2] : memref<256x1024xbf16, #tpu.memory_space<vmem>>, vector<256x1024xbf16>
    %cst = arith.constant dense<0.000000e+00> : vector<8x1024xf32>
    %2 = tpu.matmul %0, %1, %cst {dimension_numbers = #tpu.dot_dimension_numbers<[1], [0], [0], [1], [0, 0, 1, 1], [], []>} : vector<8x256xbf16>, vector<256x1024xbf16>, vector<8x1024xf32> -> vector<8x1024xf32>
    %c0_i32 = arith.constant 0 : i32
    %3 = arith.cmpi eq, %arg0, %c0_i32 : i32
    %4 = arith.extui %3 : i1 to i32
    %c0_i32_3 = arith.constant 0 : i32
    %5 = arith.cmpi ne, %4, %c0_i32_3 : i32
    scf.if %5 {
      %c0_i32_6 = arith.constant 0 : i32
      %9 = arith.cmpi eq, %arg1, %c0_i32_6 : i32
      %10 = arith.extui %9 : i1 to i32
      %c0_i32_7 = arith.constant 0 : i32
      %11 = arith.cmpi ne, %10, %c0_i32_7 : i32
      scf.if %11 {
        %cst_19 = arith.constant 0.000000e+00 : f32
        %26 = vector.broadcast %cst_19 : f32 to vector<2x1024xf32>
        %c0_20 = arith.constant 0 : index
        %c0_21 = arith.constant 0 : index
        %27 = vector.load %arg10[%c0_20, %c0_21] : memref<2x1024xf32, #tpu.memory_space<vmem>>, vector<2x1024xf32>
        tpu.vector_store %arg10[%c0_20, %c0_21], %26 {strides = array<i32>} : memref<2x1024xf32, #tpu.memory_space<vmem>>, vector<2x1024xf32>,
      } else {
      }
      %c0_8 = arith.constant 0 : index
      %c0_9 = arith.constant 0 : index
      %12 = vector.load %arg10[%c0_8, %c0_9] : memref<2x1024xf32, #tpu.memory_space<vmem>>, vector<1x1024xf32>
      %cst_10 = arith.constant dense<0.000000e+00> : vector<1024xf32>
      %13 = vector.multi_reduction <add>, %2, %cst_10 [0] : vector<8x1024xf32> to vector<1024xf32>
      %14 = vector.shape_cast %13 : vector<1024xf32> to vector<1x1024xf32>
      %15 = arith.addf %12, %14 : vector<1x1024xf32>
      %c0_11 = arith.constant 0 : index
      %c0_12 = arith.constant 0 : index
      %16 = vector.load %arg10[%c0_11, %c0_12] : memref<2x1024xf32, #tpu.memory_space<vmem>>, vector<1x1024xf32>
      tpu.vector_store %arg10[%c0_11, %c0_12], %15 {strides = array<i32>} : memref<2x1024xf32, #tpu.memory_space<vmem>>, vector<1x1024xf32>,
      %c1 = arith.constant 1 : index
      %c0_13 = arith.constant 0 : index
      %17 = vector.load %arg10[%c1, %c0_13] : memref<2x1024xf32, #tpu.memory_space<vmem>>, vector<1x1024xf32>
      %18 = arith.mulf %2, %2 : vector<8x1024xf32>
      %cst_14 = arith.constant dense<0.000000e+00> : vector<1024xf32>
      %19 = vector.multi_reduction <add>, %18, %cst_14 [0] : vector<8x1024xf32> to vector<1024xf32>
      %20 = vector.shape_cast %19 : vector<1024xf32> to vector<1x1024xf32>
      %21 = arith.addf %17, %20 : vector<1x1024xf32>
      %c1_15 = arith.constant 1 : index
      %c0_16 = arith.constant 0 : index
      %22 = vector.load %arg10[%c1_15, %c0_16] : memref<2x1024xf32, #tpu.memory_space<vmem>>, vector<1x1024xf32>
      tpu.vector_store %arg10[%c1_15, %c0_16], %21 {strides = array<i32>} : memref<2x1024xf32, #tpu.memory_space<vmem>>, vector<1x1024xf32>,
      %c0_i32_17 = arith.constant 0 : i32
      %23 = arith.cmpi eq, %arg1, %c0_i32_17 : i32
      %24 = arith.extui %23 : i1 to i32
      %c0_i32_18 = arith.constant 0 : i32
      %25 = arith.cmpi ne, %24, %c0_i32_18 : i32
      scf.if %25 {
        %c0_19 = arith.constant 0 : index
        %c0_20 = arith.constant 0 : index
        %26 = vector.load %arg10[%c0_19, %c0_20] : memref<2x1024xf32, #tpu.memory_space<vmem>>, vector<1x1024xf32>
        %cst_21 = arith.constant 1.250000e-01 : f32
        %27 = vector.broadcast %cst_21 : f32 to vector<1x1024xf32>
        %28 = arith.mulf %26, %27 : vector<1x1024xf32>
        %c1_22 = arith.constant 1 : index
        %c0_23 = arith.constant 0 : index
        %29 = vector.load %arg10[%c1_22, %c0_23] : memref<2x1024xf32, #tpu.memory_space<vmem>>, vector<1x1024xf32>
        %cst_24 = arith.constant 1.250000e-01 : f32
        %30 = vector.broadcast %cst_24 : f32 to vector<1x1024xf32>
        %31 = arith.mulf %29, %30 : vector<1x1024xf32>
        %32 = arith.mulf %28, %28 : vector<1x1024xf32>
        %33 = arith.subf %31, %32 : vector<1x1024xf32>
        %cst_25 = arith.constant 0.000000e+00 : f32
        %34 = vector.broadcast %cst_25 : f32 to vector<1x1024xf32>
        %35 = arith.maximumf %33, %34 : vector<1x1024xf32>
        %c0_26 = arith.constant 0 : index
        %c0_27 = arith.constant 0 : index
        %36 = vector.load %arg4[%c0_26, %c0_27] : memref<2x1024xf32, #tpu.memory_space<vmem>>, vector<1x1024xf32>
        %cst_28 = arith.constant 9.99999974E-6 : f32
        %37 = vector.broadcast %cst_28 : f32 to vector<1x1024xf32>
        %38 = arith.addf %35, %37 : vector<1x1024xf32>
        %39 = math.rsqrt %38 : vector<1x1024xf32>
        %40 = arith.mulf %36, %39 : vector<1x1024xf32>
        %c0_29 = arith.constant 0 : index
        %c0_30 = arith.constant 0 : index
        %41 = vector.load %arg12[%c0_29, %c0_30] : memref<2x1024xf32, #tpu.memory_space<vmem>>, vector<1x1024xf32>
        tpu.vector_store %arg12[%c0_29, %c0_30], %40 {strides = array<i32>} : memref<2x1024xf32, #tpu.memory_space<vmem>>, vector<1x1024xf32>,
        %c1_31 = arith.constant 1 : index
        %c0_32 = arith.constant 0 : index
        %42 = vector.load %arg4[%c1_31, %c0_32] : memref<2x1024xf32, #tpu.memory_space<vmem>>, vector<1x1024xf32>
        %43 = arith.mulf %28, %40 : vector<1x1024xf32>
        %44 = arith.subf %42, %43 : vector<1x1024xf32>
        %c1_33 = arith.constant 1 : index
        %c0_34 = arith.constant 0 : index
        %45 = vector.load %arg12[%c1_33, %c0_34] : memref<2x1024xf32, #tpu.memory_space<vmem>>, vector<1x1024xf32>
        tpu.vector_store %arg12[%c1_33, %c0_34], %44 {strides = array<i32>} : memref<2x1024xf32, #tpu.memory_space<vmem>>, vector<1x1024xf32>,
      } else {
      }
    } else {
    }
    %c0_i32_4 = arith.constant 0 : i32
    %6 = arith.cmpi sgt, %arg0, %c0_i32_4 : i32
    %7 = arith.extui %6 : i1 to i32
    %c0_i32_5 = arith.constant 0 : i32
    %8 = arith.cmpi ne, %7, %c0_i32_5 : i32
    scf.if %8 {
      %c0_6 = arith.constant 0 : index
      %c0_7 = arith.constant 0 : index
      %9 = vector.load %arg12[%c0_6, %c0_7] : memref<2x1024xf32, #tpu.memory_space<vmem>>, vector<1x1024xf32>
      %10 = vector.broadcast %9 : vector<1x1024xf32> to vector<8x1024xf32>
      %11 = arith.mulf %2, %10 : vector<8x1024xf32>
      %c1 = arith.constant 1 : index
      %c0_8 = arith.constant 0 : index
      %12 = vector.load %arg12[%c1, %c0_8] : memref<2x1024xf32, #tpu.memory_space<vmem>>, vector<1x1024xf32>
      %13 = vector.broadcast %12 : vector<1x1024xf32> to vector<8x1024xf32>
      %14 = arith.addf %11, %13 : vector<8x1024xf32>
      %cst_9 = arith.constant 0.000000e+00 : f32
      %15 = vector.broadcast %cst_9 : f32 to vector<8x1024xf32>
      %16 = arith.maximumf %14, %15 : vector<8x1024xf32>
      %17 = arith.truncf %16 : vector<8x1024xf32> to vector<8x1024xbf16>
      %c0_10 = arith.constant 0 : index
      %c0_11 = arith.constant 0 : index
      %18 = vector.load %arg5[%c0_10, %c0_11] : memref<1024x512xbf16, #tpu.memory_space<vmem>>, vector<1024x512xbf16>
      %cst_12 = arith.constant dense<0.000000e+00> : vector<8x512xf32>
      %19 = tpu.matmul %17, %18, %cst_12 {dimension_numbers = #tpu.dot_dimension_numbers<[1], [0], [0], [1], [0, 0, 1, 1], [], []>} : vector<8x1024xbf16>, vector<1024x512xbf16>, vector<8x512xf32> -> vector<8x512xf32>
      %c1_i32 = arith.constant 1 : i32
      %20 = arith.cmpi eq, %arg0, %c1_i32 : i32
      %21 = arith.extui %20 : i1 to i32
      %c0_i32_13 = arith.constant 0 : i32
      %22 = arith.cmpi ne, %21, %c0_i32_13 : i32
      scf.if %22 {
        %c0_i32_15 = arith.constant 0 : i32
        %26 = arith.cmpi eq, %arg1, %c0_i32_15 : i32
        %27 = arith.extui %26 : i1 to i32
        %c0_i32_16 = arith.constant 0 : i32
        %28 = arith.cmpi ne, %27, %c0_i32_16 : i32
        scf.if %28 {
          %cst_29 = arith.constant 0.000000e+00 : f32
          %43 = vector.broadcast %cst_29 : f32 to vector<2x512xf32>
          %c0_30 = arith.constant 0 : index
          %c0_31 = arith.constant 0 : index
          %44 = vector.load %arg11[%c0_30, %c0_31] : memref<2x512xf32, #tpu.memory_space<vmem>>, vector<2x512xf32>
          tpu.vector_store %arg11[%c0_30, %c0_31], %43 {strides = array<i32>} : memref<2x512xf32, #tpu.memory_space<vmem>>, vector<2x512xf32>,
        } else {
        }
        %c0_17 = arith.constant 0 : index
        %c0_18 = arith.constant 0 : index
        %29 = vector.load %arg11[%c0_17, %c0_18] : memref<2x512xf32, #tpu.memory_space<vmem>>, vector<1x512xf32>
        %cst_19 = arith.constant dense<0.000000e+00> : vector<512xf32>
        %30 = vector.multi_reduction <add>, %19, %cst_19 [0] : vector<8x512xf32> to vector<512xf32>
        %31 = vector.shape_cast %30 : vector<512xf32> to vector<1x512xf32>
        %32 = arith.addf %29, %31 : vector<1x512xf32>
        %c0_20 = arith.constant 0 : index
        %c0_21 = arith.constant 0 : index
        %33 = vector.load %arg11[%c0_20, %c0_21] : memref<2x512xf32, #tpu.memory_space<vmem>>, vector<1x512xf32>
        tpu.vector_store %arg11[%c0_20, %c0_21], %32 {strides = array<i32>} : memref<2x512xf32, #tpu.memory_space<vmem>>, vector<1x512xf32>,
        %c1_22 = arith.constant 1 : index
        %c0_23 = arith.constant 0 : index
        %34 = vector.load %arg11[%c1_22, %c0_23] : memref<2x512xf32, #tpu.memory_space<vmem>>, vector<1x512xf32>
        %35 = arith.mulf %19, %19 : vector<8x512xf32>
        %cst_24 = arith.constant dense<0.000000e+00> : vector<512xf32>
        %36 = vector.multi_reduction <add>, %35, %cst_24 [0] : vector<8x512xf32> to vector<512xf32>
        %37 = vector.shape_cast %36 : vector<512xf32> to vector<1x512xf32>
        %38 = arith.addf %34, %37 : vector<1x512xf32>
        %c1_25 = arith.constant 1 : index
        %c0_26 = arith.constant 0 : index
        %39 = vector.load %arg11[%c1_25, %c0_26] : memref<2x512xf32, #tpu.memory_space<vmem>>, vector<1x512xf32>
        tpu.vector_store %arg11[%c1_25, %c0_26], %38 {strides = array<i32>} : memref<2x512xf32, #tpu.memory_space<vmem>>, vector<1x512xf32>,
        %c0_i32_27 = arith.constant 0 : i32
        %40 = arith.cmpi eq, %arg1, %c0_i32_27 : i32
        %41 = arith.extui %40 : i1 to i32
        %c0_i32_28 = arith.constant 0 : i32
        %42 = arith.cmpi ne, %41, %c0_i32_28 : i32
        scf.if %42 {
          %c0_29 = arith.constant 0 : index
          %c0_30 = arith.constant 0 : index
          %43 = vector.load %arg11[%c0_29, %c0_30] : memref<2x512xf32, #tpu.memory_space<vmem>>, vector<1x512xf32>
          %cst_31 = arith.constant 1.250000e-01 : f32
          %44 = vector.broadcast %cst_31 : f32 to vector<1x512xf32>
          %45 = arith.mulf %43, %44 : vector<1x512xf32>
          %c1_32 = arith.constant 1 : index
          %c0_33 = arith.constant 0 : index
          %46 = vector.load %arg11[%c1_32, %c0_33] : memref<2x512xf32, #tpu.memory_space<vmem>>, vector<1x512xf32>
          %cst_34 = arith.constant 1.250000e-01 : f32
          %47 = vector.broadcast %cst_34 : f32 to vector<1x512xf32>
          %48 = arith.mulf %46, %47 : vector<1x512xf32>
          %49 = arith.mulf %45, %45 : vector<1x512xf32>
          %50 = arith.subf %48, %49 : vector<1x512xf32>
          %cst_35 = arith.constant 0.000000e+00 : f32
          %51 = vector.broadcast %cst_35 : f32 to vector<1x512xf32>
          %52 = arith.maximumf %50, %51 : vector<1x512xf32>
          %c0_36 = arith.constant 0 : index
          %c0_37 = arith.constant 0 : index
          %53 = vector.load %arg6[%c0_36, %c0_37] : memref<2x512xf32, #tpu.memory_space<vmem>>, vector<1x512xf32>
          %cst_38 = arith.constant 9.99999974E-6 : f32
          %54 = vector.broadcast %cst_38 : f32 to vector<1x512xf32>
          %55 = arith.addf %52, %54 : vector<1x512xf32>
          %56 = math.rsqrt %55 : vector<1x512xf32>
          %57 = arith.mulf %53, %56 : vector<1x512xf32>
          %c0_39 = arith.constant 0 : index
          %c0_40 = arith.constant 0 : index
          %58 = vector.load %arg13[%c0_39, %c0_40] : memref<2x512xf32, #tpu.memory_space<vmem>>, vector<1x512xf32>
          tpu.vector_store %arg13[%c0_39, %c0_40], %57 {strides = array<i32>} : memref<2x512xf32, #tpu.memory_space<vmem>>, vector<1x512xf32>,
          %c1_41 = arith.constant 1 : index
          %c0_42 = arith.constant 0 : index
          %59 = vector.load %arg6[%c1_41, %c0_42] : memref<2x512xf32, #tpu.memory_space<vmem>>, vector<1x512xf32>
          %60 = arith.mulf %45, %57 : vector<1x512xf32>
          %61 = arith.subf %59, %60 : vector<1x512xf32>
          %c1_43 = arith.constant 1 : index
          %c0_44 = arith.constant 0 : index
          %62 = vector.load %arg13[%c1_43, %c0_44] : memref<2x512xf32, #tpu.memory_space<vmem>>, vector<1x512xf32>
          tpu.vector_store %arg13[%c1_43, %c0_44], %61 {strides = array<i32>} : memref<2x512xf32, #tpu.memory_space<vmem>>, vector<1x512xf32>,
        } else {
        }
      } else {
      }
      %c2_i32 = arith.constant 2 : i32
      %23 = arith.cmpi eq, %arg0, %c2_i32 : i32
      %24 = arith.extui %23 : i1 to i32
      %c0_i32_14 = arith.constant 0 : i32
      %25 = arith.cmpi ne, %24, %c0_i32_14 : i32
      scf.if %25 {
        %c0_15 = arith.constant 0 : index
        %c0_16 = arith.constant 0 : index
        %26 = vector.load %arg13[%c0_15, %c0_16] : memref<2x512xf32, #tpu.memory_space<vmem>>, vector<1x512xf32>
        %27 = vector.broadcast %26 : vector<1x512xf32> to vector<8x512xf32>
        %28 = arith.mulf %19, %27 : vector<8x512xf32>
        %c1_17 = arith.constant 1 : index
        %c0_18 = arith.constant 0 : index
        %29 = vector.load %arg13[%c1_17, %c0_18] : memref<2x512xf32, #tpu.memory_space<vmem>>, vector<1x512xf32>
        %30 = vector.broadcast %29 : vector<1x512xf32> to vector<8x512xf32>
        %31 = arith.addf %28, %30 : vector<8x512xf32>
        %cst_19 = arith.constant 0.000000e+00 : f32
        %32 = vector.broadcast %cst_19 : f32 to vector<8x512xf32>
        %33 = arith.maximumf %31, %32 : vector<8x512xf32>
        %34 = arith.truncf %33 : vector<8x512xf32> to vector<8x512xbf16>
        %c0_20 = arith.constant 0 : index
        %c0_21 = arith.constant 0 : index
        %35 = vector.load %arg7[%c0_20, %c0_21] : memref<512x128xbf16, #tpu.memory_space<vmem>>, vector<512x128xbf16>
        %cst_22 = arith.constant dense<0.000000e+00> : vector<8x128xf32>
        %36 = tpu.matmul %34, %35, %cst_22 {dimension_numbers = #tpu.dot_dimension_numbers<[1], [0], [0], [1], [0, 0, 1, 1], [], []>} : vector<8x512xbf16>, vector<512x128xbf16>, vector<8x128xf32> -> vector<8x128xf32>
        %c0_23 = arith.constant 0 : index
        %c0_24 = arith.constant 0 : index
        %37 = vector.load %arg8[%c0_23, %c0_24] : memref<1x128xf32, #tpu.memory_space<vmem>>, vector<1x128xf32>
        %38 = vector.broadcast %37 : vector<1x128xf32> to vector<8x128xf32>
        %39 = arith.addf %36, %38 : vector<8x128xf32>
        %c0_25 = arith.constant 0 : index
        %c0_26 = arith.constant 0 : index
        %40 = vector.load %arg9[%c0_25, %c0_26] : memref<8x128xf32, #tpu.memory_space<vmem>>, vector<8x128xf32>
        tpu.vector_store %arg9[%c0_25, %c0_26], %39 {strides = array<i32>} : memref<8x128xf32, #tpu.memory_space<vmem>>, vector<8x128xf32>,
      } else {
      }
    } else {
    }
    return
  }
  func.func @transform_0(%arg0: i32, %arg1: i32) -> (i32, i32) {
    %c0_i32 = arith.constant 0 : i32
    %c0_i32_0 = arith.constant 0 : i32
    return %arg1, %c0_i32 : i32, i32
  }
  func.func @transform_1(%arg0: i32, %arg1: i32) -> (i32, i32) {
    %c0_i32 = arith.constant 0 : i32
    %c0_i32_0 = arith.constant 0 : i32
    %c0_i32_1 = arith.constant 0 : i32
    return %c0_i32, %c0_i32_0 : i32, i32
  }
  func.func @transform_2(%arg0: i32, %arg1: i32) -> (i32, i32) {
    %c0_i32 = arith.constant 0 : i32
    %c0_i32_0 = arith.constant 0 : i32
    %c0_i32_1 = arith.constant 0 : i32
    return %c0_i32, %c0_i32_0 : i32, i32
  }
  func.func @transform_3(%arg0: i32, %arg1: i32) -> (i32, i32) {
    %c0_i32 = arith.constant 0 : i32
    %c0_i32_0 = arith.constant 0 : i32
    %c0_i32_1 = arith.constant 0 : i32
    return %c0_i32, %c0_i32_0 : i32, i32
  }
  func.func @transform_4(%arg0: i32, %arg1: i32) -> (i32, i32) {
    %c0_i32 = arith.constant 0 : i32
    %c0_i32_0 = arith.constant 0 : i32
    %c0_i32_1 = arith.constant 0 : i32
    return %c0_i32, %c0_i32_0 : i32, i32
  }
  func.func @transform_5(%arg0: i32, %arg1: i32) -> (i32, i32) {
    %c0_i32 = arith.constant 0 : i32
    %c0_i32_0 = arith.constant 0 : i32
    %c0_i32_1 = arith.constant 0 : i32
    return %c0_i32, %c0_i32_0 : i32, i32
  }
  func.func @transform_6(%arg0: i32, %arg1: i32) -> (i32, i32) {
    %c0_i32 = arith.constant 0 : i32
    %c0_i32_0 = arith.constant 0 : i32
    %c0_i32_1 = arith.constant 0 : i32
    return %c0_i32, %c0_i32_0 : i32, i32
  }
  func.func @transform_7(%arg0: i32, %arg1: i32) -> (i32, i32) {
    %c0_i32 = arith.constant 0 : i32
    %c0_i32_0 = arith.constant 0 : i32
    return %arg1, %c0_i32 : i32, i32
  }
}

</mosaic_0001>

<llo_original>
// kernel: channel_compress.1
$region0: #{channel_compress.1}
  #allocation0 [shape = 'u32[]', space=smem, size = 0x4, offset = 0x4, fixed_abs, tag = 'smem constant byte address 0x4 - core index']
  #allocation1 [shape = 'u32[144,128]{1,0:T(1,128)}', space=vmem, size = 0x12000, scoped, tag = 'internal scratch']
  #allocation2 [shape = 'f32[2,1024]{1,0:T(2,128)}', space=vmem, size = 0x2000, scoped, tag = 'scratch operand']
  #allocation3 [shape = 'f32[2,512]{1,0:T(2,128)}', space=vmem, size = 0x1000, scoped, tag = 'scratch operand']
  #allocation4 [shape = 'f32[2,1024]{1,0:T(2,128)}', space=vmem, size = 0x2000, scoped, tag = 'scratch operand']
  #allocation5 [shape = 'f32[2,512]{1,0:T(2,128)}', space=vmem, size = 0x1000, scoped, tag = 'scratch operand']
  %s0 = inlined_call_operand.vmem [shape: bf16[8,256], index: 0, kind: input, shape index: {}]
  %s1 = inlined_call_operand.hbm [shape: bf16[256,1024], index: 1, kind: input, shape index: {}]
  %s2 = inlined_call_operand.vmem [shape: f32[2,1024], index: 2, kind: input, shape index: {}]
  %s3 = inlined_call_operand.hbm [shape: bf16[1024,512], index: 3, kind: input, shape index: {}]
  %s4 = inlined_call_operand.vmem [shape: f32[2,512], index: 4, kind: input, shape index: {}]
  %s5 = inlined_call_operand.hbm [shape: bf16[512,128], index: 5, kind: input, shape index: {}]
  %s6 = inlined_call_operand.vmem [shape: f32[1,128], index: 6, kind: input, shape index: {}]
  %s7 = inlined_call_operand.hbm [shape: f32[8,128], index: 7, kind: output, shape index: {}]
  %s8 = sld [smem:[#allocation0]]
  $region105: #{channel_compress.1} parent=0
    _
  %s10 = ssub.s32 1, %s8
  %s11 = scalar_select 0, %s10, %s8
  $region1: #{channel_compress.1} parent=0
    #allocation6 [shape = 'u8[524288]{0}', space=vmem, size = 0x80000, scoped, tag = 'input window, operand 1, single buffered']
    #allocation7 [shape = 's32[2]{0}', space=sflag, size = 0x8, scoped, tag = 'scoped memory for channel_compress.1']
    #allocation8 [shape = 's32[2]{0}', space=sflag, size = 0x8, scoped, tag = 'scoped memory for channel_compress.1']
    #allocation9 [shape = 'u8[1048576]{0}', space=vmem, size = 0x100000, scoped, tag = 'input window, operand 3, single buffered']
    #allocation10 [shape = 's32[1]{0}', space=sflag, size = 0x4, scoped, tag = 'scoped memory for channel_compress.1']
    #allocation11 [shape = 'u8[131072]{0}', space=vmem, size = 0x20000, scoped, tag = 'input window, operand 5, single buffered']
    #allocation12 [shape = 'u8[4096]{0}', space=vmem, size = 0x1000, scoped, tag = 'output window, operand 0, single buffered']
    %12 = vsyncpa [#allocation7], 0
    %13 = vsyncpa [#allocation10], 0
    %14 = vsyncpa [#allocation8], 0
    loop: start=0, step=1, limit=5
    $region2: #{channel_compress.1} parent=1 // loop_pre_header
      _
    $region3: #{channel_compress.1} parent=1 // loop_header
      %s16 = sphi 0, %s20
      %p17 = scmp.ge.s32.totalorder %s16, 5
      %s23 = sphi 0, %s35
      %s24 = sphi 0, %s31
      %s25 = sphi 0, %s23
      %s26 = sphi 0, %s24
      %s27 = sphi 0, %s25
      %s28 = sphi 0, %s26
      %s38 = sphi 0, %s40
      %s41 = sphi 0, %s38
      %s42 = sphi 0, %s41
      %s58 = sphi 0, %s42
      %s62 = sphi 0, %s62
      %s64 = sphi 0, %s62
      %s65 = sphi 0, %s64
      %s79 = sphi 0, %s65
      %s83 = sphi 0, %s83
      %s85 = sphi 0, %s83
      %s86 = sphi 0, %s85
      %s100 = sphi 0, %s86
      %s104 = sphi 0, %s104
      %s106 = sphi 0, %s104
      %s107 = sphi 0, %s106
      %s121 = sphi 0, %s107
      %s125 = sphi 0, %s125
      %s127 = sphi 0, %s125
      %s128 = sphi 0, %s127
      %s142 = sphi 0, %s128
      %s146 = sphi 0, %s146
      %s148 = sphi 0, %s146
      %s149 = sphi 0, %s148
      %s163 = sphi 0, %s149
      %s167 = sphi 0, %s167
      %s169 = sphi 0, %s167
      %s170 = sphi 0, %s169
      %s184 = sphi 0, %s170
      %s190 = sphi 0, %s192
      %s193 = sphi 0, %s190
      %s194 = sphi 0, %s193
      %s210 = sphi 0, %s194
    $region4: #{channel_compress.1} parent=1 // loop_header_branch
      %19 = sbr.rel (%p17) target = $region8
    $region5: #{channel_compress.1} parent=1 // loop_body
      %s21 = ssub.s32 %s16, 1
      %s22 = ssub.s32 %s16, 2
      %s29 = sadd.s32 1, %s24
      %p30 = scmp.ge.s32.totalorder %s29, 1
      %s31 = scalar_select %p30, 0, %s29
      %s32 = sadd.s32 1, %s23
      %s33 = scalar_select %p30, %s32, %s23
      %p34 = scmp.ge.s32.totalorder %s33, 3
      %s35 = scalar_select %p34, 0, %s33
      %s36 = ssub.s32 %s24, %s31
      %p37 = scmp.eq.s32.totalorder %s36, 0
      %s39 = sadd.s32 %s38, 1
      %s40 = scalar_select %p37, %s38, %s39
      %p43 = pneg %p37
      %p44 = scmp.eq.s32.totalorder %s16, 2
      %p45 = por %p43, %p44
      %p46 = scmp.ne.s32.totalorder %s38, %s41
      %p47 = scmp.eq.s32.totalorder %s16, 0
      %p48 = por %p46, %p47
      %p49 = scmp.ne.s32.totalorder %s38, %s41
      %p50 = scmp.eq.s32.totalorder %s21, 2
      %p51 = por %p49, %p50
      %p52 = scmp.ne.s32.totalorder %s41, %s42
      %p53 = scmp.eq.s32.totalorder %s21, 0
      %p54 = por %p52, %p53
      %p55 = scmp.ne.s32.totalorder %s41, %s42
      %p56 = scmp.eq.s32.totalorder %s22, 2
      %p57 = por %p55, %p56
      %p59 = scmp.ne.s32.totalorder %s42, %s58
      %p60 = scmp.eq.s32.totalorder %s22, 0
      %p61 = por %p59, %p60
      %s63 = sadd.s32 %s62, 1
      %p66 = scmp.eq.s32.totalorder %s16, 2
      %p67 = scmp.ne.s32.totalorder %s62, %s64
      %p68 = scmp.eq.s32.totalorder %s16, 0
      %p69 = por %p67, %p68
      %p70 = scmp.ne.s32.totalorder %s62, %s64
      %p71 = scmp.eq.s32.totalorder %s21, 2
      %p72 = por %p70, %p71
      %p73 = scmp.ne.s32.totalorder %s64, %s65
      %p74 = scmp.eq.s32.totalorder %s21, 0
      %p75 = por %p73, %p74
      %p76 = scmp.ne.s32.totalorder %s64, %s65
      %p77 = scmp.eq.s32.totalorder %s22, 2
      %p78 = por %p76, %p77
      %p80 = scmp.ne.s32.totalorder %s65, %s79
      %p81 = scmp.eq.s32.totalorder %s22, 0
      %p82 = por %p80, %p81
      %s84 = sadd.s32 %s83, 1
      %p87 = scmp.eq.s32.totalorder %s16, 2
      %p88 = scmp.ne.s32.totalorder %s83, %s85
      %p89 = scmp.eq.s32.totalorder %s16, 0
      %p90 = por %p88, %p89
      %p91 = scmp.ne.s32.totalorder %s83, %s85
      %p92 = scmp.eq.s32.totalorder %s21, 2
      %p93 = por %p91, %p92
      %p94 = scmp.ne.s32.totalorder %s85, %s86
      %p95 = scmp.eq.s32.totalorder %s21, 0
      %p96 = por %p94, %p95
      %p97 = scmp.ne.s32.totalorder %s85, %s86
      %p98 = scmp.eq.s32.totalorder %s22, 2
      %p99 = por %p97, %p98
      %p101 = scmp.ne.s32.totalorder %s86, %s100
      %p102 = scmp.eq.s32.totalorder %s22, 0
      %p103 = por %p101, %p102
      %s105 = sadd.s32 %s104, 1
      %p108 = scmp.eq.s32.totalorder %s16, 2
      %p109 = scmp.ne.s32.totalorder %s104, %s106
      %p110 = scmp.eq.s32.totalorder %s16, 0
      %p111 = por %p109, %p110
      %p112 = scmp.ne.s32.totalorder %s104, %s106
      %p113 = scmp.eq.s32.totalorder %s21, 2
      %p114 = por %p112, %p113
      %p115 = scmp.ne.s32.totalorder %s106, %s107
      %p116 = scmp.eq.s32.totalorder %s21, 0
      %p117 = por %p115, %p116
      %p118 = scmp.ne.s32.totalorder %s106, %s107
      %p119 = scmp.eq.s32.totalorder %s22, 2
      %p120 = por %p118, %p119
      %p122 = scmp.ne.s32.totalorder %s107, %s121
      %p123 = scmp.eq.s32.totalorder %s22, 0
      %p124 = por %p122, %p123
      %s126 = sadd.s32 %s125, 1
      %p129 = scmp.eq.s32.totalorder %s16, 2
      %p130 = scmp.ne.s32.totalorder %s125, %s127
      %p131 = scmp.eq.s32.totalorder %s16, 0
      %p132 = por %p130, %p131
      %p133 = scmp.ne.s32.totalorder %s125, %s127
      %p134 = scmp.eq.s32.totalorder %s21, 2
      %p135 = por %p133, %p134
      %p136 = scmp.ne.s32.totalorder %s127, %s128
      %p137 = scmp.eq.s32.totalorder %s21, 0
      %p138 = por %p136, %p137
      %p139 = scmp.ne.s32.totalorder %s127, %s128
      %p140 = scmp.eq.s32.totalorder %s22, 2
      %p141 = por %p139, %p140
      %p143 = scmp.ne.s32.totalorder %s128, %s142
      %p144 = scmp.eq.s32.totalorder %s22, 0
      %p145 = por %p143, %p144
      %s147 = sadd.s32 %s146, 1
      %p150 = scmp.eq.s32.totalorder %s16, 2
      %p151 = scmp.ne.s32.totalorder %s146, %s148
      %p152 = scmp.eq.s32.totalorder %s16, 0
      %p153 = por %p151, %p152
      %p154 = scmp.ne.s32.totalorder %s146, %s148
      %p155 = scmp.eq.s32.totalorder %s21, 2
      %p156 = por %p154, %p155
      %p157 = scmp.ne.s32.totalorder %s148, %s149
      %p158 = scmp.eq.s32.totalorder %s21, 0
      %p159 = por %p157, %p158
      %p160 = scmp.ne.s32.totalorder %s148, %s149
      %p161 = scmp.eq.s32.totalorder %s22, 2
      %p162 = por %p160, %p161
      %p164 = scmp.ne.s32.totalorder %s149, %s163
      %p165 = scmp.eq.s32.totalorder %s22, 0
      %p166 = por %p164, %p165
      %s168 = sadd.s32 %s167, 1
      %p171 = scmp.eq.s32.totalorder %s16, 2
      %p172 = scmp.ne.s32.totalorder %s167, %s169
      %p173 = scmp.eq.s32.totalorder %s16, 0
      %p174 = por %p172, %p173
      %p175 = scmp.ne.s32.totalorder %s167, %s169
      %p176 = scmp.eq.s32.totalorder %s21, 2
      %p177 = por %p175, %p176
      %p178 = scmp.ne.s32.totalorder %s169, %s170
      %p179 = scmp.eq.s32.totalorder %s21, 0
      %p180 = por %p178, %p179
      %p181 = scmp.ne.s32.totalorder %s169, %s170
      %p182 = scmp.eq.s32.totalorder %s22, 2
      %p183 = por %p181, %p182
      %p185 = scmp.ne.s32.totalorder %s170, %s184
      %p186 = scmp.eq.s32.totalorder %s22, 0
      %p187 = por %p185, %p186
      %s188 = ssub.s32 %s24, %s31
      %p189 = scmp.eq.s32.totalorder %s188, 0
      %s191 = sadd.s32 %s190, 1
      %s192 = scalar_select %p189, %s190, %s191
      %p195 = pneg %p189
      %p196 = scmp.eq.s32.totalorder %s16, 2
      %p197 = por %p195, %p196
      %p198 = scmp.ne.s32.totalorder %s190, %s193
      %p199 = scmp.eq.s32.totalorder %s16, 0
      %p200 = por %p198, %p199
      %p201 = scmp.ne.s32.totalorder %s190, %s193
      %p202 = scmp.eq.s32.totalorder %s21, 2
      %p203 = por %p201, %p202
      %p204 = scmp.ne.s32.totalorder %s193, %s194
      %p205 = scmp.eq.s32.totalorder %s21, 0
      %p206 = por %p204, %p205
      %p207 = scmp.ne.s32.totalorder %s193, %s194
      %p208 = scmp.eq.s32.totalorder %s22, 2
      %p209 = por %p207, %p208
      %p211 = scmp.ne.s32.totalorder %s194, %s210
      %p212 = scmp.eq.s32.totalorder %s22, 0
      %p213 = por %p211, %p212
      %p214 = scmp.le.s32.totalorder 1, %s16
      %p215 = scmp.lt.s32.totalorder %s16, 4
      %p216 = pnand %p214, %p215
      %p217 = pneg %p216
      // Predicated region
      $region9: #{channel_compress.1} parent=5 // pred_check
        _
      $region10: #{channel_compress.1} parent=5 // pred_check_branch
        %219 = sbr.rel (%p216) target = $region12
      $region11: #{channel_compress.1} parent=5 // pred_region
        %s220 = ssub.s32 %s16, 1
        // Predicated region
        $region13: #{channel_compress.1} parent=11 // pred_check
          %p221 = pneg %p54
        $region14: #{channel_compress.1} parent=11 // pred_check_branch
          %223 = sbr.rel (%p221) target = $region16
        $region15: #{channel_compress.1} parent=11 // pred_region
          %p224 = scmp.lt.s32.totalorder %s26, 0
          %s225 = scalar_select %p224, %s26, 0
          %s226 = smul.addr %s225, 2
          %s227 = smul.addr %s226, 4
          %s228 = scalar_lea.vmem %s0, %s227
        $region16: #{channel_compress.1} parent=11 // pred_fallthru
          _
        // Predicated region
        $region17: #{channel_compress.1} parent=11 // pred_check
          %p229 = pneg %p75
        $region18: #{channel_compress.1} parent=11 // pred_check_branch
          %231 = sbr.rel (%p229) target = $region20
        $region19: #{channel_compress.1} parent=11 // pred_region
          %s233 = ssub.s32 16384, 16384
          %234 = vsyncadd [#allocation7], %s233
          %s235 = sshll.u32 [#allocation6], 4
          %s236 = int_to_ptr.vmem [resolvable:$true] %s235
          %241 = dma.hbm_to_vmem [thread:$0]  %s1, 16384, %s236, [#allocation7], 512, 512, 32
        $region20: #{channel_compress.1} parent=11 // pred_fallthru
          _
        // Predicated region
        $region21: #{channel_compress.1} parent=11 // pred_check
          %p242 = pneg %p96
        $region22: #{channel_compress.1} parent=11 // pred_check_branch
          %244 = sbr.rel (%p242) target = $region24
        $region23: #{channel_compress.1} parent=11 // pred_region
          _
        $region24: #{channel_compress.1} parent=11 // pred_fallthru
          _
        // Predicated region
        $region25: #{channel_compress.1} parent=11 // pred_check
          %p245 = pneg %p117
        $region26: #{channel_compress.1} parent=11 // pred_check_branch
          %247 = sbr.rel (%p245) target = $region28
        $region27: #{channel_compress.1} parent=11 // pred_region
          %s249 = ssub.s32 32768, 32768
          %250 = vsyncadd [#allocation10], %s249
          %s251 = sshll.u32 [#allocation9], 4
          %s252 = int_to_ptr.vmem [resolvable:$true] %s251
          %257 = dma.hbm_to_vmem [thread:$0]  %s3, 32768, %s252, [#allocation10], 256, 256, 16
        $region28: #{channel_compress.1} parent=11 // pred_fallthru
          _
        // Predicated region
        $region29: #{channel_compress.1} parent=11 // pred_check
          %p258 = pneg %p138
        $region30: #{channel_compress.1} parent=11 // pred_check_branch
          %260 = sbr.rel (%p258) target = $region32
        $region31: #{channel_compress.1} parent=11 // pred_region
          _
        $region32: #{channel_compress.1} parent=11 // pred_fallthru
          _
        // Predicated region
        $region33: #{channel_compress.1} parent=11 // pred_check
          %p261 = pneg %p159
        $region34: #{channel_compress.1} parent=11 // pred_check_branch
          %263 = sbr.rel (%p261) target = $region36
        $region35: #{channel_compress.1} parent=11 // pred_region
          %s265 = ssub.s32 4096, 4096
          %266 = vsyncadd [#allocation10], %s265
          %s267 = sshll.u32 [#allocation11], 4
          %s268 = int_to_ptr.vmem [resolvable:$true] %s267
          %273 = dma.hbm_to_vmem [thread:$0]  %s5, 4096, %s268, [#allocation10], 64, 64, 4
        $region36: #{channel_compress.1} parent=11 // pred_fallthru
          _
        // Predicated region
        $region37: #{channel_compress.1} parent=11 // pred_check
          %p274 = pneg %p180
        $region38: #{channel_compress.1} parent=11 // pred_check_branch
          %276 = sbr.rel (%p274) target = $region40
        $region39: #{channel_compress.1} parent=11 // pred_region
          _
        $region40: #{channel_compress.1} parent=11 // pred_fallthru
          _
      $region12: #{channel_compress.1} parent=5 // pred_fallthru
        _
      %p277 = scmp.lt.s32.totalorder %s16, 3
      // Predicated region
      $region41: #{channel_compress.1} parent=5 // pred_check
        %p278 = pneg %p277
      $region42: #{channel_compress.1} parent=5 // pred_check_branch
        %280 = sbr.rel (%p278) target = $region44
      $region43: #{channel_compress.1} parent=5 // pred_region
        _
      $region44: #{channel_compress.1} parent=5 // pred_fallthru
        _
      %p281 = scmp.le.s32.totalorder 1, %s16
      %p282 = scmp.lt.s32.totalorder %s16, 4
      %p283 = pnand %p281, %p282
      %p284 = pneg %p283
      // Predicated region
      $region45: #{channel_compress.1} parent=5 // pred_check
        _
      $region46: #{channel_compress.1} parent=5 // pred_check_branch
        %286 = sbr.rel (%p283) target = $region48
      $region47: #{channel_compress.1} parent=5 // pred_region
        %s287 = ssub.s32 %s16, 1
        // Predicated region
        $region49: #{channel_compress.1} parent=47 // pred_check
          %p288 = pneg %p75
        $region50: #{channel_compress.1} parent=47 // pred_check_branch
          %290 = sbr.rel (%p288) target = $region52
        $region51: #{channel_compress.1} parent=47 // pred_region
          %291 = dma.done [#allocation7], 16384
        $region52: #{channel_compress.1} parent=47 // pred_fallthru
          _
        // Predicated region
        $region53: #{channel_compress.1} parent=47 // pred_check
          %p292 = pneg %p117
        $region54: #{channel_compress.1} parent=47 // pred_check_branch
          %294 = sbr.rel (%p292) target = $region56
        $region55: #{channel_compress.1} parent=47 // pred_region
          %295 = dma.done [#allocation10], 32768
        $region56: #{channel_compress.1} parent=47 // pred_fallthru
          _
        // Predicated region
        $region57: #{channel_compress.1} parent=47 // pred_check
          %p296 = pneg %p159
        $region58: #{channel_compress.1} parent=47 // pred_check_branch
          %298 = sbr.rel (%p296) target = $region60
        $region59: #{channel_compress.1} parent=47 // pred_region
          %299 = dma.done [#allocation10], 4096
        $region60: #{channel_compress.1} parent=47 // pred_fallthru
          _
        %p300 = scmp.lt.s32.totalorder %s26, 0
        %s301 = scalar_select %p300, %s26, 0
        %s302 = smul.addr %s301, 2
        %s303 = smul.addr %s302, 4
        %s304 = scalar_lea.vmem %s0, %s303
        %p305 = pneg %p54
        %p306 = pneg %p51
        %p307 = pneg %p75
        %p308 = pneg %p72
        %p309 = pneg %p96
        %p310 = pneg %p93
        %p311 = pneg %p117
        %p312 = pneg %p114
        %p313 = pneg %p138
        %p314 = pneg %p135
        %p315 = pneg %p159
        %p316 = pneg %p156
        %p317 = pneg %p180
        %p318 = pneg %p177
        %p319 = pneg %p206
        %p320 = pneg %p203
        %p321 = scmp.lt.s32.totalorder %s26, 0
        %s322 = scalar_select %p321, %s26, 0
        %s323 = smul.addr %s322, 2
        %s324 = smul.addr %s323, 4
        %s325 = scalar_lea.vmem %s0, %s324
        %v327 = vld [vmem:[%s325] sm:$0xff]
        %v328 = vld [vmem:[#allocation6] sm:$0xff]
        %v329 = vld [vmem:[#allocation6 + $0x8] sm:$0xff]
        %v330 = vld [vmem:[#allocation6 + $0x10] sm:$0xff]
        %v331 = vld [vmem:[#allocation6 + $0x18] sm:$0xff]
        %v332 = vld [vmem:[#allocation6 + $0x20] sm:$0xff]
        %v333 = vld [vmem:[#allocation6 + $0x28] sm:$0xff]
        %v334 = vld [vmem:[#allocation6 + $0x30] sm:$0xff]
        %v335 = vld [vmem:[#allocation6 + $0x38] sm:$0xff]
        %v336 = vld [vmem:[#allocation6 + $0x40] sm:$0xff]
        %v337 = vld [vmem:[#allocation6 + $0x48] sm:$0xff]
        %v338 = vld [vmem:[#allocation6 + $0x50] sm:$0xff]
        %v339 = vld [vmem:[#allocation6 + $0x58] sm:$0xff]
        %v340 = vld [vmem:[#allocation6 + $0x60] sm:$0xff]
        %v341 = vld [vmem:[#allocation6 + $0x68] sm:$0xff]
        %v342 = vld [vmem:[#allocation6 + $0x70] sm:$0xff]
        %v343 = vld [vmem:[#allocation6 + $0x78] sm:$0xff]
        %v344 = vld [vmem:[#allocation6 + $0x80] sm:$0xff]
        %v345 = vld [vmem:[#allocation6 + $0x88] sm:$0xff]
        %v346 = vld [vmem:[#allocation6 + $0x90] sm:$0xff]
        %v347 = vld [vmem:[#allocation6 + $0x98] sm:$0xff]
        %v348 = vld [vmem:[#allocation6 + $0xa0] sm:$0xff]
        %v349 = vld [vmem:[#allocation6 + $0xa8] sm:$0xff]
        %v350 = vld [vmem:[#allocation6 + $0xb0] sm:$0xff]
        %v351 = vld [vmem:[#allocation6 + $0xb8] sm:$0xff]
        %v352 = vld [vmem:[#allocation6 + $0xc0] sm:$0xff]
        %v353 = vld [vmem:[#allocation6 + $0xc8] sm:$0xff]
        %v354 = vld [vmem:[#allocation6 + $0xd0] sm:$0xff]
        %v355 = vld [vmem:[#allocation6 + $0xd8] sm:$0xff]
        %v356 = vld [vmem:[#allocation6 + $0xe0] sm:$0xff]
        %v357 = vld [vmem:[#allocation6 + $0xe8] sm:$0xff]
        %v358 = vld [vmem:[#allocation6 + $0xf0] sm:$0xff]
        %v359 = vld [vmem:[#allocation6 + $0xf8] sm:$0xff]
        %v360 = vld [vmem:[#allocation6 + $0x100] sm:$0xff]
        %v361 = vld [vmem:[#allocation6 + $0x108] sm:$0xff]
        %v362 = vld [vmem:[#allocation6 + $0x110] sm:$0xff]
        %v363 = vld [vmem:[#allocation6 + $0x118] sm:$0xff]
        %v364 = vld [vmem:[#allocation6 + $0x120] sm:$0xff]
        %v365 = vld [vmem:[#allocation6 + $0x128] sm:$0xff]
        %v366 = vld [vmem:[#allocation6 + $0x130] sm:$0xff]
        %v367 = vld [vmem:[#allocation6 + $0x138] sm:$0xff]
        %v368 = vld [vmem:[#allocation6 + $0x140] sm:$0xff]
        %v369 = vld [vmem:[#allocation6 + $0x148] sm:$0xff]
        %v370 = vld [vmem:[#allocation6 + $0x150] sm:$0xff]
        %v371 = vld [vmem:[#allocation6 + $0x158] sm:$0xff]
        %v372 = vld [vmem:[#allocation6 + $0x160] sm:$0xff]
        %v373 = vld [vmem:[#allocation6 + $0x168] sm:$0xff]
        %v374 = vld [vmem:[#allocation6 + $0x170] sm:$0xff]
        %v375 = vld [vmem:[#allocation6 + $0x178] sm:$0xff]
        %v376 = vld [vmem:[#allocation6 + $0x180] sm:$0xff]
        %v377 = vld [vmem:[#allocation6 + $0x188] sm:$0xff]
        %v378 = vld [vmem:[#allocation6 + $0x190] sm:$0xff]
        %v379 = vld [vmem:[#allocation6 + $0x198] sm:$0xff]
        %v380 = vld [vmem:[#allocation6 + $0x1a0] sm:$0xff]
        %v381 = vld [vmem:[#allocation6 + $0x1a8] sm:$0xff]
        %v382 = vld [vmem:[#allocation6 + $0x1b0] sm:$0xff]
        %v383 = vld [vmem:[#allocation6 + $0x1b8] sm:$0xff]
        %v384 = vld [vmem:[#allocation6 + $0x1c0] sm:$0xff]
        %v385 = vld [vmem:[#allocation6 + $0x1c8] sm:$0xff]
        %v386 = vld [vmem:[#allocation6 + $0x1d0] sm:$0xff]
        %v387 = vld [vmem:[#allocation6 + $0x1d8] sm:$0xff]
        %v388 = vld [vmem:[#allocation6 + $0x1e0] sm:$0xff]
        %v389 = vld [vmem:[#allocation6 + $0x1e8] sm:$0xff]
        %v390 = vld [vmem:[#allocation6 + $0x1f0] sm:$0xff]
        %v391 = vld [vmem:[#allocation6 + $0x1f8] sm:$0xff]
        %v392 = vld [vmem:[#allocation6 + $0x200] sm:$0xff]
        %v393 = vld [vmem:[#allocation6 + $0x208] sm:$0xff]
        %v394 = vld [vmem:[#allocation6 + $0x210] sm:$0xff]
        %v395 = vld [vmem:[#allocation6 + $0x218] sm:$0xff]
        %v396 = vld [vmem:[#allocation6 + $0x220] sm:$0xff]
        %v397 = vld [vmem:[#allocation6 + $0x228] sm:$0xff]
        %v398 = vld [vmem:[#allocation6 + $0x230] sm:$0xff]
        %v399 = vld [vmem:[#allocation6 + $0x238] sm:$0xff]
        %v400 = vld [vmem:[#allocation6 + $0x240] sm:$0xff]
        %v401 = vld [vmem:[#allocation6 + $0x248] sm:$0xff]
        %v402 = vld [vmem:[#allocation6 + $0x250] sm:$0xff]
        %v403 = vld [vmem:[#allocation6 + $0x258] sm:$0xff]
        %v404 = vld [vmem:[#allocation6 + $0x260] sm:$0xff]
        %v405 = vld [vmem:[#allocation6 + $0x268] sm:$0xff]
        %v406 = vld [vmem:[#allocation6 + $0x270] sm:$0xff]
        %v407 = vld [vmem:[#allocation6 + $0x278] sm:$0xff]
        %v408 = vld [vmem:[#allocation6 + $0x280] sm:$0xff]
        %v409 = vld [vmem:[#allocation6 + $0x288] sm:$0xff]
        %v410 = vld [vmem:[#allocation6 + $0x290] sm:$0xff]
        %v411 = vld [vmem:[#allocation6 + $0x298] sm:$0xff]
        %v412 = vld [vmem:[#allocation6 + $0x2a0] sm:$0xff]
        %v413 = vld [vmem:[#allocation6 + $0x2a8] sm:$0xff]
        %v414 = vld [vmem:[#allocation6 + $0x2b0] sm:$0xff]
        %v415 = vld [vmem:[#allocation6 + $0x2b8] sm:$0xff]
        %v416 = vld [vmem:[#allocation6 + $0x2c0] sm:$0xff]
        %v417 = vld [vmem:[#allocation6 + $0x2c8] sm:$0xff]
        %v418 = vld [vmem:[#allocation6 + $0x2d0] sm:$0xff]
        %v419 = vld [vmem:[#allocation6 + $0x2d8] sm:$0xff]
        %v420 = vld [vmem:[#allocation6 + $0x2e0] sm:$0xff]
        %v421 = vld [vmem:[#allocation6 + $0x2e8] sm:$0xff]
        %v422 = vld [vmem:[#allocation6 + $0x2f0] sm:$0xff]
        %v423 = vld [vmem:[#allocation6 + $0x2f8] sm:$0xff]
        %v424 = vld [vmem:[#allocation6 + $0x300] sm:$0xff]
        %v425 = vld [vmem:[#allocation6 + $0x308] sm:$0xff]
        %v426 = vld [vmem:[#allocation6 + $0x310] sm:$0xff]
        %v427 = vld [vmem:[#allocation6 + $0x318] sm:$0xff]
        %v428 = vld [vmem:[#allocation6 + $0x320] sm:$0xff]
        %v429 = vld [vmem:[#allocation6 + $0x328] sm:$0xff]
        %v430 = vld [vmem:[#allocation6 + $0x330] sm:$0xff]
        %v431 = vld [vmem:[#allocation6 + $0x338] sm:$0xff]
        %v432 = vld [vmem:[#allocation6 + $0x340] sm:$0xff]
        %v433 = vld [vmem:[#allocation6 + $0x348] sm:$0xff]
        %v434 = vld [vmem:[#allocation6 + $0x350] sm:$0xff]
        %v435 = vld [vmem:[#allocation6 + $0x358] sm:$0xff]
        %v436 = vld [vmem:[#allocation6 + $0x360] sm:$0xff]
        %v437 = vld [vmem:[#allocation6 + $0x368] sm:$0xff]
        %v438 = vld [vmem:[#allocation6 + $0x370] sm:$0xff]
        %v439 = vld [vmem:[#allocation6 + $0x378] sm:$0xff]
        %v440 = vld [vmem:[#allocation6 + $0x380] sm:$0xff]
        %v441 = vld [vmem:[#allocation6 + $0x388] sm:$0xff]
        %v442 = vld [vmem:[#allocation6 + $0x390] sm:$0xff]
        %v443 = vld [vmem:[#allocation6 + $0x398] sm:$0xff]
        %v444 = vld [vmem:[#allocation6 + $0x3a0] sm:$0xff]
        %v445 = vld [vmem:[#allocation6 + $0x3a8] sm:$0xff]
        %v446 = vld [vmem:[#allocation6 + $0x3b0] sm:$0xff]
        %v447 = vld [vmem:[#allocation6 + $0x3b8] sm:$0xff]
        %v448 = vld [vmem:[#allocation6 + $0x3c0] sm:$0xff]
        %v449 = vld [vmem:[#allocation6 + $0x3c8] sm:$0xff]
        %v450 = vld [vmem:[#allocation6 + $0x3d0] sm:$0xff]
        %v451 = vld [vmem:[#allocation6 + $0x3d8] sm:$0xff]
        %v452 = vld [vmem:[#allocation6 + $0x3e0] sm:$0xff]
        %v453 = vld [vmem:[#allocation6 + $0x3e8] sm:$0xff]
        %v454 = vld [vmem:[#allocation6 + $0x3f0] sm:$0xff]
        %v455 = vld [vmem:[#allocation6 + $0x3f8] sm:$0xff]
        %v457 = vunpack.c.l.b16 %v327
        %v458 = vunpack.c.h.b16 %v327
        %v459 = vpack.c.b16 %v457, %v457
        %v460 = vpack.c.b16 %v458, %v458
        %v591 = vunpack.c.l.b16 %v328
        %v592 = vunpack.c.h.b16 %v328
        %v593 = vunpack.c.l.b16 %v329
        %v594 = vunpack.c.h.b16 %v329
        %v595 = vunpack.c.l.b16 %v330
        %v596 = vunpack.c.h.b16 %v330
        %v597 = vunpack.c.l.b16 %v331
        %v598 = vunpack.c.h.b16 %v331
        %v599 = vunpack.c.l.b16 %v332
        %v600 = vunpack.c.h.b16 %v332
        %v601 = vunpack.c.l.b16 %v333
        %v602 = vunpack.c.h.b16 %v333
        %v603 = vunpack.c.l.b16 %v334
        %v604 = vunpack.c.h.b16 %v334
        %v605 = vunpack.c.l.b16 %v335
        %v606 = vunpack.c.h.b16 %v335
        %v607 = vunpack.c.l.b16 %v336
        %v608 = vunpack.c.h.b16 %v336
        %v609 = vunpack.c.l.b16 %v337
        %v610 = vunpack.c.h.b16 %v337
        %v611 = vunpack.c.l.b16 %v338
        %v612 = vunpack.c.h.b16 %v338
        %v613 = vunpack.c.l.b16 %v339
        %v614 = vunpack.c.h.b16 %v339
        %v615 = vunpack.c.l.b16 %v340
        %v616 = vunpack.c.h.b16 %v340
        %v617 = vunpack.c.l.b16 %v341
        %v618 = vunpack.c.h.b16 %v341
        %v619 = vunpack.c.l.b16 %v342
        %v620 = vunpack.c.h.b16 %v342
        %v621 = vunpack.c.l.b16 %v343
        %v622 = vunpack.c.h.b16 %v343
        %v623 = vunpack.c.l.b16 %v344
        %v624 = vunpack.c.h.b16 %v344
        %v625 = vunpack.c.l.b16 %v345
        %v626 = vunpack.c.h.b16 %v345
        %v627 = vunpack.c.l.b16 %v346
        %v628 = vunpack.c.h.b16 %v346
        %v629 = vunpack.c.l.b16 %v347
        %v630 = vunpack.c.h.b16 %v347
        %v631 = vunpack.c.l.b16 %v348
        %v632 = vunpack.c.h.b16 %v348
        %v633 = vunpack.c.l.b16 %v349
        %v634 = vunpack.c.h.b16 %v349
        %v635 = vunpack.c.l.b16 %v350
        %v636 = vunpack.c.h.b16 %v350
        %v637 = vunpack.c.l.b16 %v351
        %v638 = vunpack.c.h.b16 %v351
        %v639 = vunpack.c.l.b16 %v352
        %v640 = vunpack.c.h.b16 %v352
        %v641 = vunpack.c.l.b16 %v353
        %v642 = vunpack.c.h.b16 %v353
        %v643 = vunpack.c.l.b16 %v354
        %v644 = vunpack.c.h.b16 %v354
        %v645 = vunpack.c.l.b16 %v355
        %v646 = vunpack.c.h.b16 %v355
        %v647 = vunpack.c.l.b16 %v356
        %v648 = vunpack.c.h.b16 %v356
        %v649 = vunpack.c.l.b16 %v357
        %v650 = vunpack.c.h.b16 %v357
        %v651 = vunpack.c.l.b16 %v358
        %v652 = vunpack.c.h.b16 %v358
        %v653 = vunpack.c.l.b16 %v359
        %v654 = vunpack.c.h.b16 %v359
        %v655 = vunpack.c.l.b16 %v360
        %v656 = vunpack.c.h.b16 %v360
        %v657 = vunpack.c.l.b16 %v361
        %v658 = vunpack.c.h.b16 %v361
        %v659 = vunpack.c.l.b16 %v362
        %v660 = vunpack.c.h.b16 %v362
        %v661 = vunpack.c.l.b16 %v363
        %v662 = vunpack.c.h.b16 %v363
        %v663 = vunpack.c.l.b16 %v364
        %v664 = vunpack.c.h.b16 %v364
        %v665 = vunpack.c.l.b16 %v365
        %v666 = vunpack.c.h.b16 %v365
        %v667 = vunpack.c.l.b16 %v366
        %v668 = vunpack.c.h.b16 %v366
        %v669 = vunpack.c.l.b16 %v367
        %v670 = vunpack.c.h.b16 %v367
        %v671 = vunpack.c.l.b16 %v368
        %v672 = vunpack.c.h.b16 %v368
        %v673 = vunpack.c.l.b16 %v369
        %v674 = vunpack.c.h.b16 %v369
        %v675 = vunpack.c.l.b16 %v370
        %v676 = vunpack.c.h.b16 %v370
        %v677 = vunpack.c.l.b16 %v371
        %v678 = vunpack.c.h.b16 %v371
        %v679 = vunpack.c.l.b16 %v372
        %v680 = vunpack.c.h.b16 %v372
        %v681 = vunpack.c.l.b16 %v373
        %v682 = vunpack.c.h.b16 %v373
        %v683 = vunpack.c.l.b16 %v374
        %v684 = vunpack.c.h.b16 %v374
        %v685 = vunpack.c.l.b16 %v375
        %v686 = vunpack.c.h.b16 %v375
        %v687 = vunpack.c.l.b16 %v376
        %v688 = vunpack.c.h.b16 %v376
        %v689 = vunpack.c.l.b16 %v377
        %v690 = vunpack.c.h.b16 %v377
        %v691 = vunpack.c.l.b16 %v378
        %v692 = vunpack.c.h.b16 %v378
        %v693 = vunpack.c.l.b16 %v379
        %v694 = vunpack.c.h.b16 %v379
        %v695 = vunpack.c.l.b16 %v380
        %v696 = vunpack.c.h.b16 %v380
        %v697 = vunpack.c.l.b16 %v381
        %v698 = vunpack.c.h.b16 %v381
        %v699 = vunpack.c.l.b16 %v382
        %v700 = vunpack.c.h.b16 %v382
        %v701 = vunpack.c.l.b16 %v383
        %v702 = vunpack.c.h.b16 %v383
        %v703 = vunpack.c.l.b16 %v384
        %v704 = vunpack.c.h.b16 %v384
        %v705 = vunpack.c.l.b16 %v385
        %v706 = vunpack.c.h.b16 %v385
        %v707 = vunpack.c.l.b16 %v386
        %v708 = vunpack.c.h.b16 %v386
        %v709 = vunpack.c.l.b16 %v387
        %v710 = vunpack.c.h.b16 %v387
        %v711 = vunpack.c.l.b16 %v388
        %v712 = vunpack.c.h.b16 %v388
        %v713 = vunpack.c.l.b16 %v389
        %v714 = vunpack.c.h.b16 %v389
        %v715 = vunpack.c.l.b16 %v390
        %v716 = vunpack.c.h.b16 %v390
        %v717 = vunpack.c.l.b16 %v391
        %v718 = vunpack.c.h.b16 %v391
        %v719 = vunpack.c.l.b16 %v392
        %v720 = vunpack.c.h.b16 %v392
        %v721 = vunpack.c.l.b16 %v393
        %v722 = vunpack.c.h.b16 %v393
        %v723 = vunpack.c.l.b16 %v394
        %v724 = vunpack.c.h.b16 %v394
        %v725 = vunpack.c.l.b16 %v395
        %v726 = vunpack.c.h.b16 %v395
        %v727 = vunpack.c.l.b16 %v396
        %v728 = vunpack.c.h.b16 %v396
        %v729 = vunpack.c.l.b16 %v397
        %v730 = vunpack.c.h.b16 %v397
        %v731 = vunpack.c.l.b16 %v398
        %v732 = vunpack.c.h.b16 %v398
        %v733 = vunpack.c.l.b16 %v399
        %v734 = vunpack.c.h.b16 %v399
        %v735 = vunpack.c.l.b16 %v400
        %v736 = vunpack.c.h.b16 %v400
        %v737 = vunpack.c.l.b16 %v401
        %v738 = vunpack.c.h.b16 %v401
        %v739 = vunpack.c.l.b16 %v402
        %v740 = vunpack.c.h.b16 %v402
        %v741 = vunpack.c.l.b16 %v403
        %v742 = vunpack.c.h.b16 %v403
        %v743 = vunpack.c.l.b16 %v404
        %v744 = vunpack.c.h.b16 %v404
        %v745 = vunpack.c.l.b16 %v405
        %v746 = vunpack.c.h.b16 %v405
        %v747 = vunpack.c.l.b16 %v406
        %v748 = vunpack.c.h.b16 %v406
        %v749 = vunpack.c.l.b16 %v407
        %v750 = vunpack.c.h.b16 %v407
        %v751 = vunpack.c.l.b16 %v408
        %v752 = vunpack.c.h.b16 %v408
        %v753 = vunpack.c.l.b16 %v409
        %v754 = vunpack.c.h.b16 %v409
        %v755 = vunpack.c.l.b16 %v410
        %v756 = vunpack.c.h.b16 %v410
        %v757 = vunpack.c.l.b16 %v411
        %v758 = vunpack.c.h.b16 %v411
        %v759 = vunpack.c.l.b16 %v412
        %v760 = vunpack.c.h.b16 %v412
        %v761 = vunpack.c.l.b16 %v413
        %v762 = vunpack.c.h.b16 %v413
        %v763 = vunpack.c.l.b16 %v414
        %v764 = vunpack.c.h.b16 %v414
        %v765 = vunpack.c.l.b16 %v415
        %v766 = vunpack.c.h.b16 %v415
        %v767 = vunpack.c.l.b16 %v416
        %v768 = vunpack.c.h.b16 %v416
        %v769 = vunpack.c.l.b16 %v417
        %v770 = vunpack.c.h.b16 %v417
        %v771 = vunpack.c.l.b16 %v418
        %v772 = vunpack.c.h.b16 %v418
        %v773 = vunpack.c.l.b16 %v419
        %v774 = vunpack.c.h.b16 %v419
        %v775 = vunpack.c.l.b16 %v420
        %v776 = vunpack.c.h.b16 %v420
        %v777 = vunpack.c.l.b16 %v421
        %v778 = vunpack.c.h.b16 %v421
        %v779 = vunpack.c.l.b16 %v422
        %v780 = vunpack.c.h.b16 %v422
        %v781 = vunpack.c.l.b16 %v423
        %v782 = vunpack.c.h.b16 %v423
        %v783 = vunpack.c.l.b16 %v424
        %v784 = vunpack.c.h.b16 %v424
        %v785 = vunpack.c.l.b16 %v425
        %v786 = vunpack.c.h.b16 %v425
        %v787 = vunpack.c.l.b16 %v426
        %v788 = vunpack.c.h.b16 %v426
        %v789 = vunpack.c.l.b16 %v427
        %v790 = vunpack.c.h.b16 %v427
        %v791 = vunpack.c.l.b16 %v428
        %v792 = vunpack.c.h.b16 %v428
        %v793 = vunpack.c.l.b16 %v429
        %v794 = vunpack.c.h.b16 %v429
        %v795 = vunpack.c.l.b16 %v430
        %v796 = vunpack.c.h.b16 %v430
        %v797 = vunpack.c.l.b16 %v431
        %v798 = vunpack.c.h.b16 %v431
        %v799 = vunpack.c.l.b16 %v432
        %v800 = vunpack.c.h.b16 %v432
        %v801 = vunpack.c.l.b16 %v433
        %v802 = vunpack.c.h.b16 %v433
        %v803 = vunpack.c.l.b16 %v434
        %v804 = vunpack.c.h.b16 %v434
        %v805 = vunpack.c.l.b16 %v435
        %v806 = vunpack.c.h.b16 %v435
        %v807 = vunpack.c.l.b16 %v436
        %v808 = vunpack.c.h.b16 %v436
        %v809 = vunpack.c.l.b16 %v437
        %v810 = vunpack.c.h.b16 %v437
        %v811 = vunpack.c.l.b16 %v438
        %v812 = vunpack.c.h.b16 %v438
        %v813 = vunpack.c.l.b16 %v439
        %v814 = vunpack.c.h.b16 %v439
        %v815 = vunpack.c.l.b16 %v440
        %v816 = vunpack.c.h.b16 %v440
        %v817 = vunpack.c.l.b16 %v441
        %v818 = vunpack.c.h.b16 %v441
        %v819 = vunpack.c.l.b16 %v442
        %v820 = vunpack.c.h.b16 %v442
        %v821 = vunpack.c.l.b16 %v443
        %v822 = vunpack.c.h.b16 %v443
        %v823 = vunpack.c.l.b16 %v444
        %v824 = vunpack.c.h.b16 %v444
        %v825 = vunpack.c.l.b16 %v445
        %v826 = vunpack.c.h.b16 %v445
        %v827 = vunpack.c.l.b16 %v446
        %v828 = vunpack.c.h.b16 %v446
        %v829 = vunpack.c.l.b16 %v447
        %v830 = vunpack.c.h.b16 %v447
        %v831 = vunpack.c.l.b16 %v448
        %v832 = vunpack.c.h.b16 %v448
        %v833 = vunpack.c.l.b16 %v449
        %v834 = vunpack.c.h.b16 %v449
        %v835 = vunpack.c.l.b16 %v450
        %v836 = vunpack.c.h.b16 %v450
        %v837 = vunpack.c.l.b16 %v451
        %v838 = vunpack.c.h.b16 %v451
        %v839 = vunpack.c.l.b16 %v452
        %v840 = vunpack.c.h.b16 %v452
        %v841 = vunpack.c.l.b16 %v453
        %v842 = vunpack.c.h.b16 %v453
        %v843 = vunpack.c.l.b16 %v454
        %v844 = vunpack.c.h.b16 %v454
        %v845 = vunpack.c.l.b16 %v455
        %v846 = vunpack.c.h.b16 %v455
        %v847 = vpack.c.b16 %v599, %v591
        %v848 = vpack.c.b16 %v600, %v592
        %v849 = vpack.c.b16 %v601, %v593
        %v850 = vpack.c.b16 %v602, %v594
        %v851 = vpack.c.b16 %v603, %v595
        %v852 = vpack.c.b16 %v604, %v596
        %v853 = vpack.c.b16 %v605, %v597
        %v854 = vpack.c.b16 %v606, %v598
        %v855 = vpack.c.b16 %v615, %v607
        %v856 = vpack.c.b16 %v616, %v608
        %v857 = vpack.c.b16 %v617, %v609
        %v858 = vpack.c.b16 %v618, %v610
        %v859 = vpack.c.b16 %v619, %v611
        %v860 = vpack.c.b16 %v620, %v612
        %v861 = vpack.c.b16 %v621, %v613
        %v862 = vpack.c.b16 %v622, %v614
        %v863 = vpack.c.b16 %v631, %v623
        %v864 = vpack.c.b16 %v632, %v624
        %v865 = vpack.c.b16 %v633, %v625
        %v866 = vpack.c.b16 %v634, %v626
        %v867 = vpack.c.b16 %v635, %v627
        %v868 = vpack.c.b16 %v636, %v628
        %v869 = vpack.c.b16 %v637, %v629
        %v870 = vpack.c.b16 %v638, %v630
        %v871 = vpack.c.b16 %v647, %v639
        %v872 = vpack.c.b16 %v648, %v640
        %v873 = vpack.c.b16 %v649, %v641
        %v874 = vpack.c.b16 %v650, %v642
        %v875 = vpack.c.b16 %v651, %v643
        %v876 = vpack.c.b16 %v652, %v644
        %v877 = vpack.c.b16 %v653, %v645
        %v878 = vpack.c.b16 %v654, %v646
        %v879 = vpack.c.b16 %v663, %v655
        %v880 = vpack.c.b16 %v664, %v656
        %v881 = vpack.c.b16 %v665, %v657
        %v882 = vpack.c.b16 %v666, %v658
        %v883 = vpack.c.b16 %v667, %v659
        %v884 = vpack.c.b16 %v668, %v660
        %v885 = vpack.c.b16 %v669, %v661
        %v886 = vpack.c.b16 %v670, %v662
        %v887 = vpack.c.b16 %v679, %v671
        %v888 = vpack.c.b16 %v680, %v672
        %v889 = vpack.c.b16 %v681, %v673
        %v890 = vpack.c.b16 %v682, %v674
        %v891 = vpack.c.b16 %v683, %v675
        %v892 = vpack.c.b16 %v684, %v676
        %v893 = vpack.c.b16 %v685, %v677
        %v894 = vpack.c.b16 %v686, %v678
        %v895 = vpack.c.b16 %v695, %v687
        %v896 = vpack.c.b16 %v696, %v688
        %v897 = vpack.c.b16 %v697, %v689
        %v898 = vpack.c.b16 %v698, %v690
        %v899 = vpack.c.b16 %v699, %v691
        %v900 = vpack.c.b16 %v700, %v692
        %v901 = vpack.c.b16 %v701, %v693
        %v902 = vpack.c.b16 %v702, %v694
        %v903 = vpack.c.b16 %v711, %v703
        %v904 = vpack.c.b16 %v712, %v704
        %v905 = vpack.c.b16 %v713, %v705
        %v906 = vpack.c.b16 %v714, %v706
        %v907 = vpack.c.b16 %v715, %v707
        %v908 = vpack.c.b16 %v716, %v708
        %v909 = vpack.c.b16 %v717, %v709
        %v910 = vpack.c.b16 %v718, %v710
        %v911 = vpack.c.b16 %v727, %v719
        %v912 = vpack.c.b16 %v728, %v720
        %v913 = vpack.c.b16 %v729, %v721
        %v914 = vpack.c.b16 %v730, %v722
        %v915 = vpack.c.b16 %v731, %v723
        %v916 = vpack.c.b16 %v732, %v724
        %v917 = vpack.c.b16 %v733, %v725
        %v918 = vpack.c.b16 %v734, %v726
        %v919 = vpack.c.b16 %v743, %v735
        %v920 = vpack.c.b16 %v744, %v736
        %v921 = vpack.c.b16 %v745, %v737
        %v922 = vpack.c.b16 %v746, %v738
        %v923 = vpack.c.b16 %v747, %v739
        %v924 = vpack.c.b16 %v748, %v740
        %v925 = vpack.c.b16 %v749, %v741
        %v926 = vpack.c.b16 %v750, %v742
        %v927 = vpack.c.b16 %v759, %v751
        %v928 = vpack.c.b16 %v760, %v752
        %v929 = vpack.c.b16 %v761, %v753
        %v930 = vpack.c.b16 %v762, %v754
        %v931 = vpack.c.b16 %v763, %v755
        %v932 = vpack.c.b16 %v764, %v756
        %v933 = vpack.c.b16 %v765, %v757
        %v934 = vpack.c.b16 %v766, %v758
        %v935 = vpack.c.b16 %v775, %v767
        %v936 = vpack.c.b16 %v776, %v768
        %v937 = vpack.c.b16 %v777, %v769
        %v938 = vpack.c.b16 %v778, %v770
        %v939 = vpack.c.b16 %v779, %v771
        %v940 = vpack.c.b16 %v780, %v772
        %v941 = vpack.c.b16 %v781, %v773
        %v942 = vpack.c.b16 %v782, %v774
        %v943 = vpack.c.b16 %v791, %v783
        %v944 = vpack.c.b16 %v792, %v784
        %v945 = vpack.c.b16 %v793, %v785
        %v946 = vpack.c.b16 %v794, %v786
        %v947 = vpack.c.b16 %v795, %v787
        %v948 = vpack.c.b16 %v796, %v788
        %v949 = vpack.c.b16 %v797, %v789
        %v950 = vpack.c.b16 %v798, %v790
        %v951 = vpack.c.b16 %v807, %v799
        %v952 = vpack.c.b16 %v808, %v800
        %v953 = vpack.c.b16 %v809, %v801
        %v954 = vpack.c.b16 %v810, %v802
        %v955 = vpack.c.b16 %v811, %v803
        %v956 = vpack.c.b16 %v812, %v804
        %v957 = vpack.c.b16 %v813, %v805
        %v958 = vpack.c.b16 %v814, %v806
        %v959 = vpack.c.b16 %v823, %v815
        %v960 = vpack.c.b16 %v824, %v816
        %v961 = vpack.c.b16 %v825, %v817
        %v962 = vpack.c.b16 %v826, %v818
        %v963 = vpack.c.b16 %v827, %v819
        %v964 = vpack.c.b16 %v828, %v820
        %v965 = vpack.c.b16 %v829, %v821
        %v966 = vpack.c.b16 %v830, %v822
        %v967 = vpack.c.b16 %v839, %v831
        %v968 = vpack.c.b16 %v840, %v832
        %v969 = vpack.c.b16 %v841, %v833
        %v970 = vpack.c.b16 %v842, %v834
        %v971 = vpack.c.b16 %v843, %v835
        %v972 = vpack.c.b16 %v844, %v836
        %v973 = vpack.c.b16 %v845, %v837
        %v974 = vpack.c.b16 %v846, %v838
        %1103 = vmatprep.subr.bf16.mxu0 %v904
        %1104 = vmatpush1.bf16.msra.mxu0 %v903
        %1105 = vmatprep.subr.bf16.mxu0 %v896
        %1106 = vmatpush1.bf16.msra.mxu0 %v895
        %1107 = vmatprep.subr.bf16.mxu0 %v888
        %1108 = vmatpush1.bf16.msra.mxu0 %v887
        %1109 = vmatprep.subr.bf16.mxu0 %v880
        %1110 = vmatpush1.bf16.msra.mxu0 %v879
        %1111 = vmatprep.subr.bf16.mxu0 %v872
        %1112 = vmatpush1.bf16.msra.mxu0 %v871
        %1113 = vmatprep.subr.bf16.mxu0 %v864
        %1114 = vmatpush1.bf16.msra.mxu0 %v863
        %1115 = vmatprep.subr.bf16.mxu0 %v856
        %1116 = vmatpush1.bf16.msra.mxu0 %v855
        %1117 = vmatprep.subr.bf16.mxu0 %v848
        %1118 = vmatpush1.bf16.msra.mxu0 %v847
        %1119 = vmatprep.subr.bf16.mxu0 %v968
        %1120 = vmatpush2.bf16.msra.mxu0 %v967
        %1121 = vmatprep.subr.bf16.mxu0 %v960
        %1122 = vmatpush2.bf16.msra.mxu0 %v959
        %1123 = vmatprep.subr.bf16.mxu0 %v952
        %1124 = vmatpush2.bf16.msra.mxu0 %v951
        %1125 = vmatprep.subr.bf16.mxu0 %v944
        %1126 = vmatpush2.bf16.msra.mxu0 %v943
        %1127 = vmatprep.subr.bf16.mxu0 %v936
        %1128 = vmatpush2.bf16.msra.mxu0 %v935
        %1129 = vmatprep.subr.bf16.mxu0 %v928
        %1130 = vmatpush2.bf16.msra.mxu0 %v927
        %1131 = vmatprep.subr.bf16.mxu0 %v920
        %1132 = vmatpush2.bf16.msra.mxu0 %v919
        %1133 = vmatprep.subr.bf16.mxu0 %v912
        %1134 = vmatpush2.bf16.msra.mxu0 %v911
        %1135 = vmatprep.mubr.bf16.mxu0 %v460
        %1136 = vmatmul.mubr.bf16.gmra.mxu0 %v459
        %v1137 = vpop.f32.mrf.mxu0
        %v1138 = vadd.f32 0.0, %v1137
        %v1139 = vpop.f32.mrf.mxu0
        %v1140 = vadd.f32 0.0, %v1139
        %v1141 = vpop.f32.mrf.mxu0
        %v1142 = vpop.f32.mrf.mxu0
        %1143 = vdwg.mxu0
        %1144 = vmatprep.subr.bf16.mxu0 %v906
        %1145 = vmatpush1.bf16.msra.mxu0 %v905
        %1146 = vmatprep.subr.bf16.mxu0 %v898
        %1147 = vmatpush1.bf16.msra.mxu0 %v897
        %1148 = vmatprep.subr.bf16.mxu0 %v890
        %1149 = vmatpush1.bf16.msra.mxu0 %v889
        %1150 = vmatprep.subr.bf16.mxu0 %v882
        %1151 = vmatpush1.bf16.msra.mxu0 %v881
        %1152 = vmatprep.subr.bf16.mxu0 %v874
        %1153 = vmatpush1.bf16.msra.mxu0 %v873
        %1154 = vmatprep.subr.bf16.mxu0 %v866
        %1155 = vmatpush1.bf16.msra.mxu0 %v865
        %1156 = vmatprep.subr.bf16.mxu0 %v858
        %1157 = vmatpush1.bf16.msra.mxu0 %v857
        %1158 = vmatprep.subr.bf16.mxu0 %v850
        %1159 = vmatpush1.bf16.msra.mxu0 %v849
        %1160 = vmatprep.subr.bf16.mxu0 %v970
        %1161 = vmatpush2.bf16.msra.mxu0 %v969
        %1162 = vmatprep.subr.bf16.mxu0 %v962
        %1163 = vmatpush2.bf16.msra.mxu0 %v961
        %1164 = vmatprep.subr.bf16.mxu0 %v954
        %1165 = vmatpush2.bf16.msra.mxu0 %v953
        %1166 = vmatprep.subr.bf16.mxu0 %v946
        %1167 = vmatpush2.bf16.msra.mxu0 %v945
        %1168 = vmatprep.subr.bf16.mxu0 %v938
        %1169 = vmatpush2.bf16.msra.mxu0 %v937
        %1170 = vmatprep.subr.bf16.mxu0 %v930
        %1171 = vmatpush2.bf16.msra.mxu0 %v929
        %1172 = vmatprep.subr.bf16.mxu0 %v922
        %1173 = vmatpush2.bf16.msra.mxu0 %v921
        %1174 = vmatprep.subr.bf16.mxu0 %v914
        %1175 = vmatpush2.bf16.msra.mxu0 %v913
        %1176 = vmatprep.mubr.bf16.mxu0 %v460
        %1177 = vmatmul.mubr.bf16.gmra.mxu0 %v459
        %v1178 = vpop.f32.mrf.mxu0
        %v1179 = vadd.f32 0.0, %v1178
        %v1180 = vpop.f32.mrf.mxu0
        %v1181 = vadd.f32 0.0, %v1180
        %v1182 = vpop.f32.mrf.mxu0
        %v1183 = vpop.f32.mrf.mxu0
        %1184 = vdwg.mxu0
        %1185 = vmatprep.subr.bf16.mxu0 %v908
        %1186 = vmatpush1.bf16.msra.mxu0 %v907
        %1187 = vmatprep.subr.bf16.mxu0 %v900
        %1188 = vmatpush1.bf16.msra.mxu0 %v899
        %1189 = vmatprep.subr.bf16.mxu0 %v892
        %1190 = vmatpush1.bf16.msra.mxu0 %v891
        %1191 = vmatprep.subr.bf16.mxu0 %v884
        %1192 = vmatpush1.bf16.msra.mxu0 %v883
        %1193 = vmatprep.subr.bf16.mxu0 %v876
        %1194 = vmatpush1.bf16.msra.mxu0 %v875
        %1195 = vmatprep.subr.bf16.mxu0 %v868
        %1196 = vmatpush1.bf16.msra.mxu0 %v867
        %1197 = vmatprep.subr.bf16.mxu0 %v860
        %1198 = vmatpush1.bf16.msra.mxu0 %v859
        %1199 = vmatprep.subr.bf16.mxu0 %v852
        %1200 = vmatpush1.bf16.msra.mxu0 %v851
        %1201 = vmatprep.subr.bf16.mxu0 %v972
        %1202 = vmatpush2.bf16.msra.mxu0 %v971
        %1203 = vmatprep.subr.bf16.mxu0 %v964
        %1204 = vmatpush2.bf16.msra.mxu0 %v963
        %1205 = vmatprep.subr.bf16.mxu0 %v956
        %1206 = vmatpush2.bf16.msra.mxu0 %v955
        %1207 = vmatprep.subr.bf16.mxu0 %v948
        %1208 = vmatpush2.bf16.msra.mxu0 %v947
        %1209 = vmatprep.subr.bf16.mxu0 %v940
        %1210 = vmatpush2.bf16.msra.mxu0 %v939
        %1211 = vmatprep.subr.bf16.mxu0 %v932
        %1212 = vmatpush2.bf16.msra.mxu0 %v931
        %1213 = vmatprep.subr.bf16.mxu0 %v924
        %1214 = vmatpush2.bf16.msra.mxu0 %v923
        %1215 = vmatprep.subr.bf16.mxu0 %v916
        %1216 = vmatpush2.bf16.msra.mxu0 %v915
        %1217 = vmatprep.mubr.bf16.mxu0 %v460
        %1218 = vmatmul.mubr.bf16.gmra.mxu0 %v459
        %v1219 = vpop.f32.mrf.mxu0
        %v1220 = vadd.f32 0.0, %v1219
        %v1221 = vpop.f32.mrf.mxu0
        %v1222 = vadd.f32 0.0, %v1221
        %v1223 = vpop.f32.mrf.mxu0
        %v1224 = vpop.f32.mrf.mxu0
        %1225 = vdwg.mxu0
        %1226 = vmatprep.subr.bf16.mxu0 %v910
        %1227 = vmatpush1.bf16.msra.mxu0 %v909
        %1228 = vmatprep.subr.bf16.mxu0 %v902
        %1229 = vmatpush1.bf16.msra.mxu0 %v901
        %1230 = vmatprep.subr.bf16.mxu0 %v894
        %1231 = vmatpush1.bf16.msra.mxu0 %v893
        %1232 = vmatprep.subr.bf16.mxu0 %v886
        %1233 = vmatpush1.bf16.msra.mxu0 %v885
        %1234 = vmatprep.subr.bf16.mxu0 %v878
        %1235 = vmatpush1.bf16.msra.mxu0 %v877
        %1236 = vmatprep.subr.bf16.mxu0 %v870
        %1237 = vmatpush1.bf16.msra.mxu0 %v869
        %1238 = vmatprep.subr.bf16.mxu0 %v862
        %1239 = vmatpush1.bf16.msra.mxu0 %v861
        %1240 = vmatprep.subr.bf16.mxu0 %v854
        %1241 = vmatpush1.bf16.msra.mxu0 %v853
        %1242 = vmatprep.subr.bf16.mxu0 %v974
        %1243 = vmatpush2.bf16.msra.mxu0 %v973
        %1244 = vmatprep.subr.bf16.mxu0 %v966
        %1245 = vmatpush2.bf16.msra.mxu0 %v965
        %1246 = vmatprep.subr.bf16.mxu0 %v958
        %1247 = vmatpush2.bf16.msra.mxu0 %v957
        %1248 = vmatprep.subr.bf16.mxu0 %v950
        %1249 = vmatpush2.bf16.msra.mxu0 %v949
        %1250 = vmatprep.subr.bf16.mxu0 %v942
        %1251 = vmatpush2.bf16.msra.mxu0 %v941
        %1252 = vmatprep.subr.bf16.mxu0 %v934
        %1253 = vmatpush2.bf16.msra.mxu0 %v933
        %1254 = vmatprep.subr.bf16.mxu0 %v926
        %1255 = vmatpush2.bf16.msra.mxu0 %v925
        %1256 = vmatprep.subr.bf16.mxu0 %v918
        %1257 = vmatpush2.bf16.msra.mxu0 %v917
        %1258 = vmatprep.mubr.bf16.mxu0 %v460
        %1259 = vmatmul.mubr.bf16.gmra.mxu0 %v459
        %v1260 = vpop.f32.mrf.mxu0
        %v1261 = vadd.f32 0.0, %v1260
        %v1262 = vpop.f32.mrf.mxu0
        %v1263 = vadd.f32 0.0, %v1262
        %v1264 = vpop.f32.mrf.mxu0
        %v1265 = vpop.f32.mrf.mxu0
        %1266 = vdwg.mxu0
        %p1267 = scmp.eq.s32.totalorder %s25, 0
        // Predicated region
        $region61: #{channel_compress.1} parent=47 // pred_check
          %p1268 = pneg %p1267
        $region62: #{channel_compress.1} parent=47 // pred_check_branch
          %1270 = sbr.rel (%p1268) target = $region64
        $region63: #{channel_compress.1} parent=47 // pred_region
          %p1271 = scmp.eq.s32.totalorder %s26, 0
          // Predicated region
          $region65: #{channel_compress.1} parent=63 // pred_check
            %p1272 = pneg %p1271
          $region66: #{channel_compress.1} parent=63 // pred_check_branch
            %1274 = sbr.rel (%p1272) target = $region68
          $region67: #{channel_compress.1} parent=63 // pred_region
            %1275 = vst [vmem:[#allocation2] sm:$0xff] 0.0
            %1276 = vst [vmem:[#allocation2 + $0x8] sm:$0xff] 0.0
          $region68: #{channel_compress.1} parent=63 // pred_fallthru
            _
          %v1277 = vld [vmem:[#allocation2] ss:$2 sm:$0xff]
          %v1278 = vrot.slane %v1138, 4
          %v1279 = vadd.f32 %v1138, %v1278
          %v1280 = vrot.slane %v1279, 2
          %v1281 = vadd.f32 %v1279, %v1280
          %v1282 = vrot.slane %v1281, 1
          %v1283 = vadd.f32 %v1281, %v1282
          %v1284 = vrot.slane %v1140, 4
          %v1285 = vadd.f32 %v1140, %v1284
          %v1286 = vrot.slane %v1285, 2
          %v1287 = vadd.f32 %v1285, %v1286
          %v1288 = vrot.slane %v1287, 1
          %v1289 = vadd.f32 %v1287, %v1288
          %v1290 = vrot.slane %v1179, 4
          %v1291 = vadd.f32 %v1179, %v1290
          %v1292 = vrot.slane %v1291, 2
          %v1293 = vadd.f32 %v1291, %v1292
          %v1294 = vrot.slane %v1293, 1
          %v1295 = vadd.f32 %v1293, %v1294
          %v1296 = vrot.slane %v1181, 4
          %v1297 = vadd.f32 %v1181, %v1296
          %v1298 = vrot.slane %v1297, 2
          %v1299 = vadd.f32 %v1297, %v1298
          %v1300 = vrot.slane %v1299, 1
          %v1301 = vadd.f32 %v1299, %v1300
          %v1302 = vrot.slane %v1220, 4
          %v1303 = vadd.f32 %v1220, %v1302
          %v1304 = vrot.slane %v1303, 2
          %v1305 = vadd.f32 %v1303, %v1304
          %v1306 = vrot.slane %v1305, 1
          %v1307 = vadd.f32 %v1305, %v1306
          %v1308 = vrot.slane %v1222, 4
          %v1309 = vadd.f32 %v1222, %v1308
          %v1310 = vrot.slane %v1309, 2
          %v1311 = vadd.f32 %v1309, %v1310
          %v1312 = vrot.slane %v1311, 1
          %v1313 = vadd.f32 %v1311, %v1312
          %v1314 = vrot.slane %v1261, 4
          %v1315 = vadd.f32 %v1261, %v1314
          %v1316 = vrot.slane %v1315, 2
          %v1317 = vadd.f32 %v1315, %v1316
          %v1318 = vrot.slane %v1317, 1
          %v1319 = vadd.f32 %v1317, %v1318
          %v1320 = vrot.slane %v1263, 4
          %v1321 = vadd.f32 %v1263, %v1320
          %v1322 = vrot.slane %v1321, 2
          %v1323 = vadd.f32 %v1321, %v1322
          %v1324 = vrot.slane %v1323, 1
          %v1325 = vadd.f32 %v1323, %v1324
          %v1334 = vcombine.low %v1283, %v1289
          %v1335 = vcombine.low %v1295, %v1301
          %v1336 = vcombine.low %v1307, %v1313
          %v1337 = vcombine.low %v1319, %v1325
          %v1339 = vunpack.c.l.s4 1966171168
          %v1340 = vunpack.c.0.s8 %v1339
          %v1341 = vlaneseq
          %v1342 = vshrl.u32 %v1341, 7
          %v1343 = vsub.s32 %v1340, %v1342
          %v1344 = vrot.slane %v1334, %v1343
          %v1346 = vunpack.c.l.s4 1966171168
          %v1347 = vunpack.c.0.s8 %v1346
          %v1348 = vlaneseq
          %v1349 = vshrl.u32 %v1348, 7
          %v1350 = vsub.s32 %v1347, %v1349
          %v1351 = vrot.slane %v1335, %v1350
          %v1353 = vunpack.c.l.s4 1966171168
          %v1354 = vunpack.c.0.s8 %v1353
          %v1355 = vlaneseq
          %v1356 = vshrl.u32 %v1355, 7
          %v1357 = vsub.s32 %v1354, %v1356
          %v1358 = vrot.slane %v1336, %v1357
          %v1360 = vunpack.c.l.s4 1966171168
          %v1361 = vunpack.c.0.s8 %v1360
          %v1362 = vlaneseq
          %v1363 = vshrl.u32 %v1362, 7
          %v1364 = vsub.s32 %v1361, %v1363
          %v1365 = vrot.slane %v1337, %v1364
          %v1366 = vcombine.low %v1344, %v1351
          %v1367 = vcombine.low %v1358, %v1365
          %v1369 = vunpack.c.l.s4 1966171168
          %v1370 = vunpack.c.0.s8 %v1369
          %v1371 = vlaneseq
          %v1372 = vshrl.u32 %v1371, 7
          %v1373 = vsub.s32 %v1370, %v1372
          %v1374 = vrot.slane %v1366, %v1373
          %v1376 = vunpack.c.l.s4 1966171168
          %v1377 = vunpack.c.0.s8 %v1376
          %v1378 = vlaneseq
          %v1379 = vshrl.u32 %v1378, 7
          %v1380 = vsub.s32 %v1377, %v1379
          %v1381 = vrot.slane %v1367, %v1380
          %v1382 = vcombine.low %v1374, %v1381
          %v1384 = vadd.f32 %v1277, %v1382
          %1385 = vst [vmem:[#allocation2] ss:$2 sm:$0xff] %v1384
          %s1386 = scalar_lea.vmem [#allocation2], 1
          %v1387 = vld [vmem:[%s1386] ss:$2 sm:$0xff]
          %v1388 = vmul.f32 %v1138, %v1138
          %v1389 = vmul.f32 %v1140, %v1140
          %v1390 = vmul.f32 %v1179, %v1179
          %v1391 = vmul.f32 %v1181, %v1181
          %v1392 = vmul.f32 %v1220, %v1220
          %v1393 = vmul.f32 %v1222, %v1222
          %v1394 = vmul.f32 %v1261, %v1261
          %v1395 = vmul.f32 %v1263, %v1263
          %v1396 = vrot.slane %v1388, 4
          %v1397 = vadd.f32 %v1388, %v1396
          %v1398 = vrot.slane %v1397, 2
          %v1399 = vadd.f32 %v1397, %v1398
          %v1400 = vrot.slane %v1399, 1
          %v1401 = vadd.f32 %v1399, %v1400
          %v1402 = vrot.slane %v1389, 4
          %v1403 = vadd.f32 %v1389, %v1402
          %v1404 = vrot.slane %v1403, 2
          %v1405 = vadd.f32 %v1403, %v1404
          %v1406 = vrot.slane %v1405, 1
          %v1407 = vadd.f32 %v1405, %v1406
          %v1408 = vrot.slane %v1390, 4
          %v1409 = vadd.f32 %v1390, %v1408
          %v1410 = vrot.slane %v1409, 2
          %v1411 = vadd.f32 %v1409, %v1410
          %v1412 = vrot.slane %v1411, 1
          %v1413 = vadd.f32 %v1411, %v1412
          %v1414 = vrot.slane %v1391, 4
          %v1415 = vadd.f32 %v1391, %v1414
          %v1416 = vrot.slane %v1415, 2
          %v1417 = vadd.f32 %v1415, %v1416
          %v1418 = vrot.slane %v1417, 1
          %v1419 = vadd.f32 %v1417, %v1418
          %v1420 = vrot.slane %v1392, 4
          %v1421 = vadd.f32 %v1392, %v1420
          %v1422 = vrot.slane %v1421, 2
          %v1423 = vadd.f32 %v1421, %v1422
          %v1424 = vrot.slane %v1423, 1
          %v1425 = vadd.f32 %v1423, %v1424
          %v1426 = vrot.slane %v1393, 4
          %v1427 = vadd.f32 %v1393, %v1426
          %v1428 = vrot.slane %v1427, 2
          %v1429 = vadd.f32 %v1427, %v1428
          %v1430 = vrot.slane %v1429, 1
          %v1431 = vadd.f32 %v1429, %v1430
          %v1432 = vrot.slane %v1394, 4
          %v1433 = vadd.f32 %v1394, %v1432
          %v1434 = vrot.slane %v1433, 2
          %v1435 = vadd.f32 %v1433, %v1434
          %v1436 = vrot.slane %v1435, 1
          %v1437 = vadd.f32 %v1435, %v1436
          %v1438 = vrot.slane %v1395, 4
          %v1439 = vadd.f32 %v1395, %v1438
          %v1440 = vrot.slane %v1439, 2
          %v1441 = vadd.f32 %v1439, %v1440
          %v1442 = vrot.slane %v1441, 1
          %v1443 = vadd.f32 %v1441, %v1442
          %v1452 = vcombine.low %v1401, %v1407
          %v1453 = vcombine.low %v1413, %v1419
          %v1454 = vcombine.low %v1425, %v1431
          %v1455 = vcombine.low %v1437, %v1443
          %v1457 = vunpack.c.l.s4 1966171168
          %v1458 = vunpack.c.0.s8 %v1457
          %v1459 = vlaneseq
          %v1460 = vshrl.u32 %v1459, 7
          %v1461 = vsub.s32 %v1458, %v1460
          %v1462 = vrot.slane %v1452, %v1461
          %v1464 = vunpack.c.l.s4 1966171168
          %v1465 = vunpack.c.0.s8 %v1464
          %v1466 = vlaneseq
          %v1467 = vshrl.u32 %v1466, 7
          %v1468 = vsub.s32 %v1465, %v1467
          %v1469 = vrot.slane %v1453, %v1468
          %v1471 = vunpack.c.l.s4 1966171168
          %v1472 = vunpack.c.0.s8 %v1471
          %v1473 = vlaneseq
          %v1474 = vshrl.u32 %v1473, 7
          %v1475 = vsub.s32 %v1472, %v1474
          %v1476 = vrot.slane %v1454, %v1475
          %v1478 = vunpack.c.l.s4 1966171168
          %v1479 = vunpack.c.0.s8 %v1478
          %v1480 = vlaneseq
          %v1481 = vshrl.u32 %v1480, 7
          %v1482 = vsub.s32 %v1479, %v1481
          %v1483 = vrot.slane %v1455, %v1482
          %v1484 = vcombine.low %v1462, %v1469
          %v1485 = vcombine.low %v1476, %v1483
          %v1487 = vunpack.c.l.s4 1966171168
          %v1488 = vunpack.c.0.s8 %v1487
          %v1489 = vlaneseq
          %v1490 = vshrl.u32 %v1489, 7
          %v1491 = vsub.s32 %v1488, %v1490
          %v1492 = vrot.slane %v1484, %v1491
          %v1494 = vunpack.c.l.s4 1966171168
          %v1495 = vunpack.c.0.s8 %v1494
          %v1496 = vlaneseq
          %v1497 = vshrl.u32 %v1496, 7
          %v1498 = vsub.s32 %v1495, %v1497
          %v1499 = vrot.slane %v1485, %v1498
          %v1500 = vcombine.low %v1492, %v1499
          %v1502 = vadd.f32 %v1387, %v1500
          %1503 = vst [vmem:[%s1386] ss:$2 sm:$0xff] %v1502
          // Predicated region
          $region69: #{channel_compress.1} parent=63 // pred_check
            %p1504 = pneg %p1271
          $region70: #{channel_compress.1} parent=63 // pred_check_branch
            %1506 = sbr.rel (%p1504) target = $region72
          $region71: #{channel_compress.1} parent=63 // pred_region
            %v1507 = vld [vmem:[#allocation2] ss:$2 sm:$0xff]
            %v1508 = vmul.f32 %v1507, 0.125
            %v1509 = vld [vmem:[%s1386] ss:$2 sm:$0xff]
            %v1510 = vmul.f32 %v1509, 0.125
            %v1511 = vmul.f32 %v1508, %v1508
            %v1512 = vsub.f32 %v1510, %v1511
            %v1513 = vmax.f32 %v1512, 0.0
            %v1514 = vld [vmem:[%s2] ss:$2 sm:$0xff]
            %v1515 = vadd.f32 %v1513, 1e-05
            %v1516 = vrsqrt.pop %v1515
            %v1517 = vmul.f32 %v1514, %v1516
            %1518 = vst [vmem:[#allocation4] ss:$2 sm:$0xff] %v1517
            %s1519 = scalar_lea.vmem %s2, 1
            %v1520 = vld [vmem:[%s1519] ss:$2 sm:$0xff]
            %v1521 = vmul.f32 %v1508, %v1517
            %v1522 = vsub.f32 %v1520, %v1521
            %s1523 = scalar_lea.vmem [#allocation4], 1
            %1524 = vst [vmem:[%s1523] ss:$2 sm:$0xff] %v1522
          $region72: #{channel_compress.1} parent=63 // pred_fallthru
            _
        $region64: #{channel_compress.1} parent=47 // pred_fallthru
          _
        %p1525 = scmp.gt.s32.totalorder %s25, 0
        // Predicated region
        $region73: #{channel_compress.1} parent=47 // pred_check
          %p1526 = pneg %p1525
        $region74: #{channel_compress.1} parent=47 // pred_check_branch
          %1528 = sbr.rel (%p1526) target = $region76
        $region75: #{channel_compress.1} parent=47 // pred_region
          %v1529 = vld [vmem:[#allocation4] ss:$2 sm:$0xff]
          %v1531 = vlaneseq
          %v1532 = vshrl.u32 %v1531, 7
          %v1533 = vsub.s32 0, %v1532
          %v1534 = vrot.slane %v1529, %v1533
          %v1535 = vlaneseq
          %v1536 = vshrl.u32 %v1535, 7
          %v1537 = vsub.s32 1, %v1536
          %v1538 = vrot.slane %v1529, %v1537
          %v1539 = vlaneseq
          %v1540 = vshrl.u32 %v1539, 7
          %v1541 = vsub.s32 2, %v1540
          %v1542 = vrot.slane %v1529, %v1541
          %v1543 = vlaneseq
          %v1544 = vshrl.u32 %v1543, 7
          %v1545 = vsub.s32 3, %v1544
          %v1546 = vrot.slane %v1529, %v1545
          %v1547 = vlaneseq
          %v1548 = vshrl.u32 %v1547, 7
          %v1549 = vsub.s32 4, %v1548
          %v1550 = vrot.slane %v1529, %v1549
          %v1551 = vlaneseq
          %v1552 = vshrl.u32 %v1551, 7
          %v1553 = vsub.s32 5, %v1552
          %v1554 = vrot.slane %v1529, %v1553
          %v1555 = vlaneseq
          %v1556 = vshrl.u32 %v1555, 7
          %v1557 = vsub.s32 6, %v1556
          %v1558 = vrot.slane %v1529, %v1557
          %v1559 = vlaneseq
          %v1560 = vshrl.u32 %v1559, 7
          %v1561 = vsub.s32 7, %v1560
          %v1562 = vrot.slane %v1529, %v1561
          %v1571 = vmul.f32 %v1138, %v1534
          %v1572 = vmul.f32 %v1140, %v1538
          %v1573 = vmul.f32 %v1179, %v1542
          %v1574 = vmul.f32 %v1181, %v1546
          %v1575 = vmul.f32 %v1220, %v1550
          %v1576 = vmul.f32 %v1222, %v1554
          %v1577 = vmul.f32 %v1261, %v1558
          %v1578 = vmul.f32 %v1263, %v1562
          %s1579 = scalar_lea.vmem [#allocation4], 1
          %v1580 = vld [vmem:[%s1579] ss:$2 sm:$0xff]
          %v1582 = vlaneseq
          %v1583 = vshrl.u32 %v1582, 7
          %v1584 = vsub.s32 0, %v1583
          %v1585 = vrot.slane %v1580, %v1584
          %v1586 = vlaneseq
          %v1587 = vshrl.u32 %v1586, 7
          %v1588 = vsub.s32 1, %v1587
          %v1589 = vrot.slane %v1580, %v1588
          %v1590 = vlaneseq
          %v1591 = vshrl.u32 %v1590, 7
          %v1592 = vsub.s32 2, %v1591
          %v1593 = vrot.slane %v1580, %v1592
          %v1594 = vlaneseq
          %v1595 = vshrl.u32 %v1594, 7
          %v1596 = vsub.s32 3, %v1595
          %v1597 = vrot.slane %v1580, %v1596
          %v1598 = vlaneseq
          %v1599 = vshrl.u32 %v1598, 7
          %v1600 = vsub.s32 4, %v1599
          %v1601 = vrot.slane %v1580, %v1600
          %v1602 = vlaneseq
          %v1603 = vshrl.u32 %v1602, 7
          %v1604 = vsub.s32 5, %v1603
          %v1605 = vrot.slane %v1580, %v1604
          %v1606 = vlaneseq
          %v1607 = vshrl.u32 %v1606, 7
          %v1608 = vsub.s32 6, %v1607
          %v1609 = vrot.slane %v1580, %v1608
          %v1610 = vlaneseq
          %v1611 = vshrl.u32 %v1610, 7
          %v1612 = vsub.s32 7, %v1611
          %v1613 = vrot.slane %v1580, %v1612
          %v1622 = vadd.f32 %v1571, %v1585
          %v1623 = vadd.f32 %v1572, %v1589
          %v1624 = vadd.f32 %v1573, %v1593
          %v1625 = vadd.f32 %v1574, %v1597
          %v1626 = vadd.f32 %v1575, %v1601
          %v1627 = vadd.f32 %v1576, %v1605
          %v1628 = vadd.f32 %v1577, %v1609
          %v1629 = vadd.f32 %v1578, %v1613
          %v1630 = vmax.f32 %v1622, 0.0
          %v1631 = vmax.f32 %v1623, 0.0
          %v1632 = vmax.f32 %v1624, 0.0
          %v1633 = vmax.f32 %v1625, 0.0
          %v1634 = vmax.f32 %v1626, 0.0
          %v1635 = vmax.f32 %v1627, 0.0
          %v1636 = vmax.f32 %v1628, 0.0
          %v1637 = vmax.f32 %v1629, 0.0
          %v1638 = vpack.c.bf16 %v1630, %v1630
          %v1639 = vpack.c.bf16 %v1631, %v1631
          %v1640 = vpack.c.bf16 %v1632, %v1632
          %v1641 = vpack.c.bf16 %v1633, %v1633
          %v1642 = vpack.c.bf16 %v1634, %v1634
          %v1643 = vpack.c.bf16 %v1635, %v1635
          %v1644 = vpack.c.bf16 %v1636, %v1636
          %v1645 = vpack.c.bf16 %v1637, %v1637
          %v1646 = vld [vmem:[#allocation9] sm:$0xff]
          %v1647 = vld [vmem:[#allocation9 + $0x8] sm:$0xff]
          %v1648 = vld [vmem:[#allocation9 + $0x10] sm:$0xff]
          %v1649 = vld [vmem:[#allocation9 + $0x18] sm:$0xff]
          %v1650 = vld [vmem:[#allocation9 + $0x20] sm:$0xff]
          %v1651 = vld [vmem:[#allocation9 + $0x28] sm:$0xff]
          %v1652 = vld [vmem:[#allocation9 + $0x30] sm:$0xff]
          %v1653 = vld [vmem:[#allocation9 + $0x38] sm:$0xff]
          %v1654 = vld [vmem:[#allocation9 + $0x40] sm:$0xff]
          %v1655 = vld [vmem:[#allocation9 + $0x48] sm:$0xff]
          %v1656 = vld [vmem:[#allocation9 + $0x50] sm:$0xff]
          %v1657 = vld [vmem:[#allocation9 + $0x58] sm:$0xff]
          %v1658 = vld [vmem:[#allocation9 + $0x60] sm:$0xff]
          %v1659 = vld [vmem:[#allocation9 + $0x68] sm:$0xff]
          %v1660 = vld [vmem:[#allocation9 + $0x70] sm:$0xff]
          %v1661 = vld [vmem:[#allocation9 + $0x78] sm:$0xff]
          %v1662 = vld [vmem:[#allocation9 + $0x80] sm:$0xff]
          %v1663 = vld [vmem:[#allocation9 + $0x88] sm:$0xff]
          %v1664 = vld [vmem:[#allocation9 + $0x90] sm:$0xff]
          %v1665 = vld [vmem:[#allocation9 + $0x98] sm:$0xff]
          %v1666 = vld [vmem:[#allocation9 + $0xa0] sm:$0xff]
          %v1667 = vld [vmem:[#allocation9 + $0xa8] sm:$0xff]
          %v1668 = vld [vmem:[#allocation9 + $0xb0] sm:$0xff]
          %v1669 = vld [vmem:[#allocation9 + $0xb8] sm:$0xff]
          %v1670 = vld [vmem:[#allocation9 + $0xc0] sm:$0xff]
          %v1671 = vld [vmem:[#allocation9 + $0xc8] sm:$0xff]
          %v1672 = vld [vmem:[#allocation9 + $0xd0] sm:$0xff]
          %v1673 = vld [vmem:[#allocation9 + $0xd8] sm:$0xff]
          %v1674 = vld [vmem:[#allocation9 + $0xe0] sm:$0xff]
          %v1675 = vld [vmem:[#allocation9 + $0xe8] sm:$0xff]
          %v1676 = vld [vmem:[#allocation9 + $0xf0] sm:$0xff]
          %v1677 = vld [vmem:[#allocation9 + $0xf8] sm:$0xff]
          %v1678 = vld [vmem:[#allocation9 + $0x100] sm:$0xff]
          %v1679 = vld [vmem:[#allocation9 + $0x108] sm:$0xff]
          %v1680 = vld [vmem:[#allocation9 + $0x110] sm:$0xff]
          %v1681 = vld [vmem:[#allocation9 + $0x118] sm:$0xff]
          %v1682 = vld [vmem:[#allocation9 + $0x120] sm:$0xff]
          %v1683 = vld [vmem:[#allocation9 + $0x128] sm:$0xff]
          %v1684 = vld [vmem:[#allocation9 + $0x130] sm:$0xff]
          %v1685 = vld [vmem:[#allocation9 + $0x138] sm:$0xff]
          %v1686 = vld [vmem:[#allocation9 + $0x140] sm:$0xff]
          %v1687 = vld [vmem:[#allocation9 + $0x148] sm:$0xff]
          %v1688 = vld [vmem:[#allocation9 + $0x150] sm:$0xff]
          %v1689 = vld [vmem:[#allocation9 + $0x158] sm:$0xff]
          %v1690 = vld [vmem:[#allocation9 + $0x160] sm:$0xff]
          %v1691 = vld [vmem:[#allocation9 + $0x168] sm:$0xff]
          %v1692 = vld [vmem:[#allocation9 + $0x170] sm:$0xff]
          %v1693 = vld [vmem:[#allocation9 + $0x178] sm:$0xff]
          %v1694 = vld [vmem:[#allocation9 + $0x180] sm:$0xff]
          %v1695 = vld [vmem:[#allocation9 + $0x188] sm:$0xff]
          %v1696 = vld [vmem:[#allocation9 + $0x190] sm:$0xff]
          %v1697 = vld [vmem:[#allocation9 + $0x198] sm:$0xff]
          %v1698 = vld [vmem:[#allocation9 + $0x1a0] sm:$0xff]
          %v1699 = vld [vmem:[#allocation9 + $0x1a8] sm:$0xff]
          %v1700 = vld [vmem:[#allocation9 + $0x1b0] sm:$0xff]
          %v1701 = vld [vmem:[#allocation9 + $0x1b8] sm:$0xff]
          %v1702 = vld [vmem:[#allocation9 + $0x1c0] sm:$0xff]
          %v1703 = vld [vmem:[#allocation9 + $0x1c8] sm:$0xff]
          %v1704 = vld [vmem:[#allocation9 + $0x1d0] sm:$0xff]
          %v1705 = vld [vmem:[#allocation9 + $0x1d8] sm:$0xff]
          %v1706 = vld [vmem:[#allocation9 + $0x1e0] sm:$0xff]
          %v1707 = vld [vmem:[#allocation9 + $0x1e8] sm:$0xff]
          %v1708 = vld [vmem:[#allocation9 + $0x1f0] sm:$0xff]
          %v1709 = vld [vmem:[#allocation9 + $0x1f8] sm:$0xff]
          %v1710 = vld [vmem:[#allocation9 + $0x200] sm:$0xff]
          %v1711 = vld [vmem:[#allocation9 + $0x208] sm:$0xff]
          %v1712 = vld [vmem:[#allocation9 + $0x210] sm:$0xff]
          %v1713 = vld [vmem:[#allocation9 + $0x218] sm:$0xff]
          %v1714 = vld [vmem:[#allocation9 + $0x220] sm:$0xff]
          %v1715 = vld [vmem:[#allocation9 + $0x228] sm:$0xff]
          %v1716 = vld [vmem:[#allocation9 + $0x230] sm:$0xff]
          %v1717 = vld [vmem:[#allocation9 + $0x238] sm:$0xff]
          %v1718 = vld [vmem:[#allocation9 + $0x240] sm:$0xff]
          %v1719 = vld [vmem:[#allocation9 + $0x248] sm:$0xff]
          %v1720 = vld [vmem:[#allocation9 + $0x250] sm:$0xff]
          %v1721 = vld [vmem:[#allocation9 + $0x258] sm:$0xff]
          %v1722 = vld [vmem:[#allocation9 + $0x260] sm:$0xff]
          %v1723 = vld [vmem:[#allocation9 + $0x268] sm:$0xff]
          %v1724 = vld [vmem:[#allocation9 + $0x270] sm:$0xff]
          %v1725 = vld [vmem:[#allocation9 + $0x278] sm:$0xff]
          %v1726 = vld [vmem:[#allocation9 + $0x280] sm:$0xff]
          %v1727 = vld [vmem:[#allocation9 + $0x288] sm:$0xff]
          %v1728 = vld [vmem:[#allocation9 + $0x290] sm:$0xff]
          %v1729 = vld [vmem:[#allocation9 + $0x298] sm:$0xff]
          %v1730 = vld [vmem:[#allocation9 + $0x2a0] sm:$0xff]
          %v1731 = vld [vmem:[#allocation9 + $0x2a8] sm:$0xff]
          %v1732 = vld [vmem:[#allocation9 + $0x2b0] sm:$0xff]
          %v1733 = vld [vmem:[#allocation9 + $0x2b8] sm:$0xff]
          %v1734 = vld [vmem:[#allocation9 + $0x2c0] sm:$0xff]
          %v1735 = vld [vmem:[#allocation9 + $0x2c8] sm:$0xff]
          %v1736 = vld [vmem:[#allocation9 + $0x2d0] sm:$0xff]
          %v1737 = vld [vmem:[#allocation9 + $0x2d8] sm:$0xff]
          %v1738 = vld [vmem:[#allocation9 + $0x2e0] sm:$0xff]
          %v1739 = vld [vmem:[#allocation9 + $0x2e8] sm:$0xff]
          %v1740 = vld [vmem:[#allocation9 + $0x2f0] sm:$0xff]
          %v1741 = vld [vmem:[#allocation9 + $0x2f8] sm:$0xff]
          %v1742 = vld [vmem:[#allocation9 + $0x300] sm:$0xff]
          %v1743 = vld [vmem:[#allocation9 + $0x308] sm:$0xff]
          %v1744 = vld [vmem:[#allocation9 + $0x310] sm:$0xff]
          %v1745 = vld [vmem:[#allocation9 + $0x318] sm:$0xff]
          %v1746 = vld [vmem:[#allocation9 + $0x320] sm:$0xff]
          %v1747 = vld [vmem:[#allocation9 + $0x328] sm:$0xff]
          %v1748 = vld [vmem:[#allocation9 + $0x330] sm:$0xff]
          %v1749 = vld [vmem:[#allocation9 + $0x338] sm:$0xff]
          %v1750 = vld [vmem:[#allocation9 + $0x340] sm:$0xff]
          %v1751 = vld [vmem:[#allocation9 + $0x348] sm:$0xff]
          %v1752 = vld [vmem:[#allocation9 + $0x350] sm:$0xff]
          %v1753 = vld [vmem:[#allocation9 + $0x358] sm:$0xff]
          %v1754 = vld [vmem:[#allocation9 + $0x360] sm:$0xff]
          %v1755 = vld [vmem:[#allocation9 + $0x368] sm:$0xff]
          %v1756 = vld [vmem:[#allocation9 + $0x370] sm:$0xff]
          %v1757 = vld [vmem:[#allocation9 + $0x378] sm:$0xff]
          %v1758 = vld [vmem:[#allocation9 + $0x380] sm:$0xff]
          %v1759 = vld [vmem:[#allocation9 + $0x388] sm:$0xff]
          %v1760 = vld [vmem:[#allocation9 + $0x390] sm:$0xff]
          %v1761 = vld [vmem:[#allocation9 + $0x398] sm:$0xff]
          %v1762 = vld [vmem:[#allocation9 + $0x3a0] sm:$0xff]
          %v1763 = vld [vmem:[#allocation9 + $0x3a8] sm:$0xff]
          %v1764 = vld [vmem:[#allocation9 + $0x3b0] sm:$0xff]
          %v1765 = vld [vmem:[#allocation9 + $0x3b8] sm:$0xff]
          %v1766 = vld [vmem:[#allocation9 + $0x3c0] sm:$0xff]
          %v1767 = vld [vmem:[#allocation9 + $0x3c8] sm:$0xff]
          %v1768 = vld [vmem:[#allocation9 + $0x3d0] sm:$0xff]
          %v1769 = vld [vmem:[#allocation9 + $0x3d8] sm:$0xff]
          %v1770 = vld [vmem:[#allocation9 + $0x3e0] sm:$0xff]
          %v1771 = vld [vmem:[#allocation9 + $0x3e8] sm:$0xff]
          %v1772 = vld [vmem:[#allocation9 + $0x3f0] sm:$0xff]
          %v1773 = vld [vmem:[#allocation9 + $0x3f8] sm:$0xff]
          %v1774 = vld [vmem:[#allocation9 + $0x400] sm:$0xff]
          %v1775 = vld [vmem:[#allocation9 + $0x408] sm:$0xff]
          %v1776 = vld [vmem:[#allocation9 + $0x410] sm:$0xff]
          %v1777 = vld [vmem:[#allocation9 + $0x418] sm:$0xff]
          %v1778 = vld [vmem:[#allocation9 + $0x420] sm:$0xff]
          %v1779 = vld [vmem:[#allocation9 + $0x428] sm:$0xff]
          %v1780 = vld [vmem:[#allocation9 + $0x430] sm:$0xff]
          %v1781 = vld [vmem:[#allocation9 + $0x438] sm:$0xff]
          %v1782 = vld [vmem:[#allocation9 + $0x440] sm:$0xff]
          %v1783 = vld [vmem:[#allocation9 + $0x448] sm:$0xff]
          %v1784 = vld [vmem:[#allocation9 + $0x450] sm:$0xff]
          %v1785 = vld [vmem:[#allocation9 + $0x458] sm:$0xff]
          %v1786 = vld [vmem:[#allocation9 + $0x460] sm:$0xff]
          %v1787 = vld [vmem:[#allocation9 + $0x468] sm:$0xff]
          %v1788 = vld [vmem:[#allocation9 + $0x470] sm:$0xff]
          %v1789 = vld [vmem:[#allocation9 + $0x478] sm:$0xff]
          %v1790 = vld [vmem:[#allocation9 + $0x480] sm:$0xff]
          %v1791 = vld [vmem:[#allocation9 + $0x488] sm:$0xff]
          %v1792 = vld [vmem:[#allocation9 + $0x490] sm:$0xff]
          %v1793 = vld [vmem:[#allocation9 + $0x498] sm:$0xff]
          %v1794 = vld [vmem:[#allocation9 + $0x4a0] sm:$0xff]
          %v1795 = vld [vmem:[#allocation9 + $0x4a8] sm:$0xff]
          %v1796 = vld [vmem:[#allocation9 + $0x4b0] sm:$0xff]
          %v1797 = vld [vmem:[#allocation9 + $0x4b8] sm:$0xff]
          %v1798 = vld [vmem:[#allocation9 + $0x4c0] sm:$0xff]
          %v1799 = vld [vmem:[#allocation9 + $0x4c8] sm:$0xff]
          %v1800 = vld [vmem:[#allocation9 + $0x4d0] sm:$0xff]
          %v1801 = vld [vmem:[#allocation9 + $0x4d8] sm:$0xff]
          %v1802 = vld [vmem:[#allocation9 + $0x4e0] sm:$0xff]
          %v1803 = vld [vmem:[#allocation9 + $0x4e8] sm:$0xff]
          %v1804 = vld [vmem:[#allocation9 + $0x4f0] sm:$0xff]
          %v1805 = vld [vmem:[#allocation9 + $0x4f8] sm:$0xff]
          %v1806 = vld [vmem:[#allocation9 + $0x500] sm:$0xff]
          %v1807 = vld [vmem:[#allocation9 + $0x508] sm:$0xff]
          %v1808 = vld [vmem:[#allocation9 + $0x510] sm:$0xff]
          %v1809 = vld [vmem:[#allocation9 + $0x518] sm:$0xff]
          %v1810 = vld [vmem:[#allocation9 + $0x520] sm:$0xff]
          %v1811 = vld [vmem:[#allocation9 + $0x528] sm:$0xff]
          %v1812 = vld [vmem:[#allocation9 + $0x530] sm:$0xff]
          %v1813 = vld [vmem:[#allocation9 + $0x538] sm:$0xff]
          %v1814 = vld [vmem:[#allocation9 + $0x540] sm:$0xff]
          %v1815 = vld [vmem:[#allocation9 + $0x548] sm:$0xff]
          %v1816 = vld [vmem:[#allocation9 + $0x550] sm:$0xff]
          %v1817 = vld [vmem:[#allocation9 + $0x558] sm:$0xff]
          %v1818 = vld [vmem:[#allocation9 + $0x560] sm:$0xff]
          %v1819 = vld [vmem:[#allocation9 + $0x568] sm:$0xff]
          %v1820 = vld [vmem:[#allocation9 + $0x570] sm:$0xff]
          %v1821 = vld [vmem:[#allocation9 + $0x578] sm:$0xff]
          %v1822 = vld [vmem:[#allocation9 + $0x580] sm:$0xff]
          %v1823 = vld [vmem:[#allocation9 + $0x588] sm:$0xff]
          %v1824 = vld [vmem:[#allocation9 + $0x590] sm:$0xff]
          %v1825 = vld [vmem:[#allocation9 + $0x598] sm:$0xff]
          %v1826 = vld [vmem:[#allocation9 + $0x5a0] sm:$0xff]
          %v1827 = vld [vmem:[#allocation9 + $0x5a8] sm:$0xff]
          %v1828 = vld [vmem:[#allocation9 + $0x5b0] sm:$0xff]
          %v1829 = vld [vmem:[#allocation9 + $0x5b8] sm:$0xff]
          %v1830 = vld [vmem:[#allocation9 + $0x5c0] sm:$0xff]
          %v1831 = vld [vmem:[#allocation9 + $0x5c8] sm:$0xff]
          %v1832 = vld [vmem:[#allocation9 + $0x5d0] sm:$0xff]
          %v1833 = vld [vmem:[#allocation9 + $0x5d8] sm:$0xff]
          %v1834 = vld [vmem:[#allocation9 + $0x5e0] sm:$0xff]
          %v1835 = vld [vmem:[#allocation9 + $0x5e8] sm:$0xff]
          %v1836 = vld [vmem:[#allocation9 + $0x5f0] sm:$0xff]
          %v1837 = vld [vmem:[#allocation9 + $0x5f8] sm:$0xff]
          %v1838 = vld [vmem:[#allocation9 + $0x600] sm:$0xff]
          %v1839 = vld [vmem:[#allocation9 + $0x608] sm:$0xff]
          %v1840 = vld [vmem:[#allocation9 + $0x610] sm:$0xff]
          %v1841 = vld [vmem:[#allocation9 + $0x618] sm:$0xff]
          %v1842 = vld [vmem:[#allocation9 + $0x620] sm:$0xff]
          %v1843 = vld [vmem:[#allocation9 + $0x628] sm:$0xff]
          %v1844 = vld [vmem:[#allocation9 + $0x630] sm:$0xff]
          %v1845 = vld [vmem:[#allocation9 + $0x638] sm:$0xff]
          %v1846 = vld [vmem:[#allocation9 + $0x640] sm:$0xff]
          %v1847 = vld [vmem:[#allocation9 + $0x648] sm:$0xff]
          %v1848 = vld [vmem:[#allocation9 + $0x650] sm:$0xff]
          %v1849 = vld [vmem:[#allocation9 + $0x658] sm:$0xff]
          %v1850 = vld [vmem:[#allocation9 + $0x660] sm:$0xff]
          %v1851 = vld [vmem:[#allocation9 + $0x668] sm:$0xff]
          %v1852 = vld [vmem:[#allocation9 + $0x670] sm:$0xff]
          %v1853 = vld [vmem:[#allocation9 + $0x678] sm:$0xff]
          %v1854 = vld [vmem:[#allocation9 + $0x680] sm:$0xff]
          %v1855 = vld [vmem:[#allocation9 + $0x688] sm:$0xff]
          %v1856 = vld [vmem:[#allocation9 + $0x690] sm:$0xff]
          %v1857 = vld [vmem:[#allocation9 + $0x698] sm:$0xff]
          %v1858 = vld [vmem:[#allocation9 + $0x6a0] sm:$0xff]
          %v1859 = vld [vmem:[#allocation9 + $0x6a8] sm:$0xff]
          %v1860 = vld [vmem:[#allocation9 + $0x6b0] sm:$0xff]
          %v1861 = vld [vmem:[#allocation9 + $0x6b8] sm:$0xff]
          %v1862 = vld [vmem:[#allocation9 + $0x6c0] sm:$0xff]
          %v1863 = vld [vmem:[#allocation9 + $0x6c8] sm:$0xff]
          %v1864 = vld [vmem:[#allocation9 + $0x6d0] sm:$0xff]
          %v1865 = vld [vmem:[#allocation9 + $0x6d8] sm:$0xff]
          %v1866 = vld [vmem:[#allocation9 + $0x6e0] sm:$0xff]
          %v1867 = vld [vmem:[#allocation9 + $0x6e8] sm:$0xff]
          %v1868 = vld [vmem:[#allocation9 + $0x6f0] sm:$0xff]
          %v1869 = vld [vmem:[#allocation9 + $0x6f8] sm:$0xff]
          %v1870 = vld [vmem:[#allocation9 + $0x700] sm:$0xff]
          %v1871 = vld [vmem:[#allocation9 + $0x708] sm:$0xff]
          %v1872 = vld [vmem:[#allocation9 + $0x710] sm:$0xff]
          %v1873 = vld [vmem:[#allocation9 + $0x718] sm:$0xff]
          %v1874 = vld [vmem:[#allocation9 + $0x720] sm:$0xff]
          %v1875 = vld [vmem:[#allocation9 + $0x728] sm:$0xff]
          %v1876 = vld [vmem:[#allocation9 + $0x730] sm:$0xff]
          %v1877 = vld [vmem:[#allocation9 + $0x738] sm:$0xff]
          %v1878 = vld [vmem:[#allocation9 + $0x740] sm:$0xff]
          %v1879 = vld [vmem:[#allocation9 + $0x748] sm:$0xff]
          %v1880 = vld [vmem:[#allocation9 + $0x750] sm:$0xff]
          %v1881 = vld [vmem:[#allocation9 + $0x758] sm:$0xff]
          %v1882 = vld [vmem:[#allocation9 + $0x760] sm:$0xff]
          %v1883 = vld [vmem:[#allocation9 + $0x768] sm:$0xff]
          %v1884 = vld [vmem:[#allocation9 + $0x770] sm:$0xff]
          %v1885 = vld [vmem:[#allocation9 + $0x778] sm:$0xff]
          %v1886 = vld [vmem:[#allocation9 + $0x780] sm:$0xff]
          %v1887 = vld [vmem:[#allocation9 + $0x788] sm:$0xff]
          %v1888 = vld [vmem:[#allocation9 + $0x790] sm:$0xff]
          %v1889 = vld [vmem:[#allocation9 + $0x798] sm:$0xff]
          %v1890 = vld [vmem:[#allocation9 + $0x7a0] sm:$0xff]
          %v1891 = vld [vmem:[#allocation9 + $0x7a8] sm:$0xff]
          %v1892 = vld [vmem:[#allocation9 + $0x7b0] sm:$0xff]
          %v1893 = vld [vmem:[#allocation9 + $0x7b8] sm:$0xff]
          %v1894 = vld [vmem:[#allocation9 + $0x7c0] sm:$0xff]
          %v1895 = vld [vmem:[#allocation9 + $0x7c8] sm:$0xff]
          %v1896 = vld [vmem:[#allocation9 + $0x7d0] sm:$0xff]
          %v1897 = vld [vmem:[#allocation9 + $0x7d8] sm:$0xff]
          %v1898 = vld [vmem:[#allocation9 + $0x7e0] sm:$0xff]
          %v1899 = vld [vmem:[#allocation9 + $0x7e8] sm:$0xff]
          %v1900 = vld [vmem:[#allocation9 + $0x7f0] sm:$0xff]
          %v1901 = vld [vmem:[#allocation9 + $0x7f8] sm:$0xff]
          %v2158 = vunpack.c.l.b16 %v1646
          %v2159 = vunpack.c.h.b16 %v1646
          %v2160 = vunpack.c.l.b16 %v1647
          %v2161 = vunpack.c.h.b16 %v1647
          %v2162 = vunpack.c.l.b16 %v1648
          %v2163 = vunpack.c.h.b16 %v1648
          %v2164 = vunpack.c.l.b16 %v1649
          %v2165 = vunpack.c.h.b16 %v1649
          %v2166 = vunpack.c.l.b16 %v1650
          %v2167 = vunpack.c.h.b16 %v1650
          %v2168 = vunpack.c.l.b16 %v1651
          %v2169 = vunpack.c.h.b16 %v1651
          %v2170 = vunpack.c.l.b16 %v1652
          %v2171 = vunpack.c.h.b16 %v1652
          %v2172 = vunpack.c.l.b16 %v1653
          %v2173 = vunpack.c.h.b16 %v1653
          %v2174 = vunpack.c.l.b16 %v1654
          %v2175 = vunpack.c.h.b16 %v1654
          %v2176 = vunpack.c.l.b16 %v1655
          %v2177 = vunpack.c.h.b16 %v1655
          %v2178 = vunpack.c.l.b16 %v1656
          %v2179 = vunpack.c.h.b16 %v1656
          %v2180 = vunpack.c.l.b16 %v1657
          %v2181 = vunpack.c.h.b16 %v1657
          %v2182 = vunpack.c.l.b16 %v1658
          %v2183 = vunpack.c.h.b16 %v1658
          %v2184 = vunpack.c.l.b16 %v1659
          %v2185 = vunpack.c.h.b16 %v1659
          %v2186 = vunpack.c.l.b16 %v1660
          %v2187 = vunpack.c.h.b16 %v1660
          %v2188 = vunpack.c.l.b16 %v1661
          %v2189 = vunpack.c.h.b16 %v1661
          %v2190 = vunpack.c.l.b16 %v1662
          %v2191 = vunpack.c.h.b16 %v1662
          %v2192 = vunpack.c.l.b16 %v1663
          %v2193 = vunpack.c.h.b16 %v1663
          %v2194 = vunpack.c.l.b16 %v1664
          %v2195 = vunpack.c.h.b16 %v1664
          %v2196 = vunpack.c.l.b16 %v1665
          %v2197 = vunpack.c.h.b16 %v1665
          %v2198 = vunpack.c.l.b16 %v1666
          %v2199 = vunpack.c.h.b16 %v1666
          %v2200 = vunpack.c.l.b16 %v1667
          %v2201 = vunpack.c.h.b16 %v1667
          %v2202 = vunpack.c.l.b16 %v1668
          %v2203 = vunpack.c.h.b16 %v1668
          %v2204 = vunpack.c.l.b16 %v1669
          %v2205 = vunpack.c.h.b16 %v1669
          %v2206 = vunpack.c.l.b16 %v1670
          %v2207 = vunpack.c.h.b16 %v1670
          %v2208 = vunpack.c.l.b16 %v1671
          %v2209 = vunpack.c.h.b16 %v1671
          %v2210 = vunpack.c.l.b16 %v1672
          %v2211 = vunpack.c.h.b16 %v1672
          %v2212 = vunpack.c.l.b16 %v1673
          %v2213 = vunpack.c.h.b16 %v1673
          %v2214 = vunpack.c.l.b16 %v1674
          %v2215 = vunpack.c.h.b16 %v1674
          %v2216 = vunpack.c.l.b16 %v1675
          %v2217 = vunpack.c.h.b16 %v1675
          %v2218 = vunpack.c.l.b16 %v1676
          %v2219 = vunpack.c.h.b16 %v1676
          %v2220 = vunpack.c.l.b16 %v1677
          %v2221 = vunpack.c.h.b16 %v1677
          %v2222 = vunpack.c.l.b16 %v1678
          %v2223 = vunpack.c.h.b16 %v1678
          %v2224 = vunpack.c.l.b16 %v1679
          %v2225 = vunpack.c.h.b16 %v1679
          %v2226 = vunpack.c.l.b16 %v1680
          %v2227 = vunpack.c.h.b16 %v1680
          %v2228 = vunpack.c.l.b16 %v1681
          %v2229 = vunpack.c.h.b16 %v1681
          %v2230 = vunpack.c.l.b16 %v1682
          %v2231 = vunpack.c.h.b16 %v1682
          %v2232 = vunpack.c.l.b16 %v1683
          %v2233 = vunpack.c.h.b16 %v1683
          %v2234 = vunpack.c.l.b16 %v1684
          %v2235 = vunpack.c.h.b16 %v1684
          %v2236 = vunpack.c.l.b16 %v1685
          %v2237 = vunpack.c.h.b16 %v1685
          %v2238 = vunpack.c.l.b16 %v1686
          %v2239 = vunpack.c.h.b16 %v1686
          %v2240 = vunpack.c.l.b16 %v1687
          %v2241 = vunpack.c.h.b16 %v1687
          %v2242 = vunpack.c.l.b16 %v1688
          %v2243 = vunpack.c.h.b16 %v1688
          %v2244 = vunpack.c.l.b16 %v1689
          %v2245 = vunpack.c.h.b16 %v1689
          %v2246 = vunpack.c.l.b16 %v1690
          %v2247 = vunpack.c.h.b16 %v1690
          %v2248 = vunpack.c.l.b16 %v1691
          %v2249 = vunpack.c.h.b16 %v1691
          %v2250 = vunpack.c.l.b16 %v1692
          %v2251 = vunpack.c.h.b16 %v1692
          %v2252 = vunpack.c.l.b16 %v1693
          %v2253 = vunpack.c.h.b16 %v1693
          %v2254 = vunpack.c.l.b16 %v1694
          %v2255 = vunpack.c.h.b16 %v1694
          %v2256 = vunpack.c.l.b16 %v1695
          %v2257 = vunpack.c.h.b16 %v1695
          %v2258 = vunpack.c.l.b16 %v1696
          %v2259 = vunpack.c.h.b16 %v1696
          %v2260 = vunpack.c.l.b16 %v1697
          %v2261 = vunpack.c.h.b16 %v1697
          %v2262 = vunpack.c.l.b16 %v1698
          %v2263 = vunpack.c.h.b16 %v1698
          %v2264 = vunpack.c.l.b16 %v1699
          %v2265 = vunpack.c.h.b16 %v1699
          %v2266 = vunpack.c.l.b16 %v1700
          %v2267 = vunpack.c.h.b16 %v1700
          %v2268 = vunpack.c.l.b16 %v1701
          %v2269 = vunpack.c.h.b16 %v1701
          %v2270 = vunpack.c.l.b16 %v1702
          %v2271 = vunpack.c.h.b16 %v1702
          %v2272 = vunpack.c.l.b16 %v1703
          %v2273 = vunpack.c.h.b16 %v1703
          %v2274 = vunpack.c.l.b16 %v1704
          %v2275 = vunpack.c.h.b16 %v1704
          %v2276 = vunpack.c.l.b16 %v1705
          %v2277 = vunpack.c.h.b16 %v1705
          %v2278 = vunpack.c.l.b16 %v1706
          %v2279 = vunpack.c.h.b16 %v1706
          %v2280 = vunpack.c.l.b16 %v1707
          %v2281 = vunpack.c.h.b16 %v1707
          %v2282 = vunpack.c.l.b16 %v1708
          %v2283 = vunpack.c.h.b16 %v1708
          %v2284 = vunpack.c.l.b16 %v1709
          %v2285 = vunpack.c.h.b16 %v1709
          %v2286 = vunpack.c.l.b16 %v1710
          %v2287 = vunpack.c.h.b16 %v1710
          %v2288 = vunpack.c.l.b16 %v1711
          %v2289 = vunpack.c.h.b16 %v1711
          %v2290 = vunpack.c.l.b16 %v1712
          %v2291 = vunpack.c.h.b16 %v1712
          %v2292 = vunpack.c.l.b16 %v1713
          %v2293 = vunpack.c.h.b16 %v1713
          %v2294 = vunpack.c.l.b16 %v1714
          %v2295 = vunpack.c.h.b16 %v1714
          %v2296 = vunpack.c.l.b16 %v1715
          %v2297 = vunpack.c.h.b16 %v1715
          %v2298 = vunpack.c.l.b16 %v1716
          %v2299 = vunpack.c.h.b16 %v1716
          %v2300 = vunpack.c.l.b16 %v1717
          %v2301 = vunpack.c.h.b16 %v1717
          %v2302 = vunpack.c.l.b16 %v1718
          %v2303 = vunpack.c.h.b16 %v1718
          %v2304 = vunpack.c.l.b16 %v1719
          %v2305 = vunpack.c.h.b16 %v1719
          %v2306 = vunpack.c.l.b16 %v1720
          %v2307 = vunpack.c.h.b16 %v1720
          %v2308 = vunpack.c.l.b16 %v1721
          %v2309 = vunpack.c.h.b16 %v1721
          %v2310 = vunpack.c.l.b16 %v1722
          %v2311 = vunpack.c.h.b16 %v1722
          %v2312 = vunpack.c.l.b16 %v1723
          %v2313 = vunpack.c.h.b16 %v1723
          %v2314 = vunpack.c.l.b16 %v1724
          %v2315 = vunpack.c.h.b16 %v1724
          %v2316 = vunpack.c.l.b16 %v1725
          %v2317 = vunpack.c.h.b16 %v1725
          %v2318 = vunpack.c.l.b16 %v1726
          %v2319 = vunpack.c.h.b16 %v1726
          %v2320 = vunpack.c.l.b16 %v1727
          %v2321 = vunpack.c.h.b16 %v1727
          %v2322 = vunpack.c.l.b16 %v1728
          %v2323 = vunpack.c.h.b16 %v1728
          %v2324 = vunpack.c.l.b16 %v1729
          %v2325 = vunpack.c.h.b16 %v1729
          %v2326 = vunpack.c.l.b16 %v1730
          %v2327 = vunpack.c.h.b16 %v1730
          %v2328 = vunpack.c.l.b16 %v1731
          %v2329 = vunpack.c.h.b16 %v1731
          %v2330 = vunpack.c.l.b16 %v1732
          %v2331 = vunpack.c.h.b16 %v1732
          %v2332 = vunpack.c.l.b16 %v1733
          %v2333 = vunpack.c.h.b16 %v1733
          %v2334 = vunpack.c.l.b16 %v1734
          %v2335 = vunpack.c.h.b16 %v1734
          %v2336 = vunpack.c.l.b16 %v1735
          %v2337 = vunpack.c.h.b16 %v1735
          %v2338 = vunpack.c.l.b16 %v1736
          %v2339 = vunpack.c.h.b16 %v1736
          %v2340 = vunpack.c.l.b16 %v1737
          %v2341 = vunpack.c.h.b16 %v1737
          %v2342 = vunpack.c.l.b16 %v1738
          %v2343 = vunpack.c.h.b16 %v1738
          %v2344 = vunpack.c.l.b16 %v1739
          %v2345 = vunpack.c.h.b16 %v1739
          %v2346 = vunpack.c.l.b16 %v1740
          %v2347 = vunpack.c.h.b16 %v1740
          %v2348 = vunpack.c.l.b16 %v1741
          %v2349 = vunpack.c.h.b16 %v1741
          %v2350 = vunpack.c.l.b16 %v1742
          %v2351 = vunpack.c.h.b16 %v1742
          %v2352 = vunpack.c.l.b16 %v1743
          %v2353 = vunpack.c.h.b16 %v1743
          %v2354 = vunpack.c.l.b16 %v1744
          %v2355 = vunpack.c.h.b16 %v1744
          %v2356 = vunpack.c.l.b16 %v1745
          %v2357 = vunpack.c.h.b16 %v1745
          %v2358 = vunpack.c.l.b16 %v1746
          %v2359 = vunpack.c.h.b16 %v1746
          %v2360 = vunpack.c.l.b16 %v1747
          %v2361 = vunpack.c.h.b16 %v1747
          %v2362 = vunpack.c.l.b16 %v1748
          %v2363 = vunpack.c.h.b16 %v1748
          %v2364 = vunpack.c.l.b16 %v1749
          %v2365 = vunpack.c.h.b16 %v1749
          %v2366 = vunpack.c.l.b16 %v1750
          %v2367 = vunpack.c.h.b16 %v1750
          %v2368 = vunpack.c.l.b16 %v1751
          %v2369 = vunpack.c.h.b16 %v1751
          %v2370 = vunpack.c.l.b16 %v1752
          %v2371 = vunpack.c.h.b16 %v1752
          %v2372 = vunpack.c.l.b16 %v1753
          %v2373 = vunpack.c.h.b16 %v1753
          %v2374 = vunpack.c.l.b16 %v1754
          %v2375 = vunpack.c.h.b16 %v1754
          %v2376 = vunpack.c.l.b16 %v1755
          %v2377 = vunpack.c.h.b16 %v1755
          %v2378 = vunpack.c.l.b16 %v1756
          %v2379 = vunpack.c.h.b16 %v1756
          %v2380 = vunpack.c.l.b16 %v1757
          %v2381 = vunpack.c.h.b16 %v1757
          %v2382 = vunpack.c.l.b16 %v1758
          %v2383 = vunpack.c.h.b16 %v1758
          %v2384 = vunpack.c.l.b16 %v1759
          %v2385 = vunpack.c.h.b16 %v1759
          %v2386 = vunpack.c.l.b16 %v1760
          %v2387 = vunpack.c.h.b16 %v1760
          %v2388 = vunpack.c.l.b16 %v1761
          %v2389 = vunpack.c.h.b16 %v1761
          %v2390 = vunpack.c.l.b16 %v1762
          %v2391 = vunpack.c.h.b16 %v1762
          %v2392 = vunpack.c.l.b16 %v1763
          %v2393 = vunpack.c.h.b16 %v1763
          %v2394 = vunpack.c.l.b16 %v1764
          %v2395 = vunpack.c.h.b16 %v1764
          %v2396 = vunpack.c.l.b16 %v1765
          %v2397 = vunpack.c.h.b16 %v1765
          %v2398 = vunpack.c.l.b16 %v1766
          %v2399 = vunpack.c.h.b16 %v1766
          %v2400 = vunpack.c.l.b16 %v1767
          %v2401 = vunpack.c.h.b16 %v1767
          %v2402 = vunpack.c.l.b16 %v1768
          %v2403 = vunpack.c.h.b16 %v1768
          %v2404 = vunpack.c.l.b16 %v1769
          %v2405 = vunpack.c.h.b16 %v1769
          %v2406 = vunpack.c.l.b16 %v1770
          %v2407 = vunpack.c.h.b16 %v1770
          %v2408 = vunpack.c.l.b16 %v1771
          %v2409 = vunpack.c.h.b16 %v1771
          %v2410 = vunpack.c.l.b16 %v1772
          %v2411 = vunpack.c.h.b16 %v1772
          %v2412 = vunpack.c.l.b16 %v1773
          %v2413 = vunpack.c.h.b16 %v1773
          %v2414 = vunpack.c.l.b16 %v1774
          %v2415 = vunpack.c.h.b16 %v1774
          %v2416 = vunpack.c.l.b16 %v1775
          %v2417 = vunpack.c.h.b16 %v1775
          %v2418 = vunpack.c.l.b16 %v1776
          %v2419 = vunpack.c.h.b16 %v1776
          %v2420 = vunpack.c.l.b16 %v1777
          %v2421 = vunpack.c.h.b16 %v1777
          %v2422 = vunpack.c.l.b16 %v1778
          %v2423 = vunpack.c.h.b16 %v1778
          %v2424 = vunpack.c.l.b16 %v1779
          %v2425 = vunpack.c.h.b16 %v1779
          %v2426 = vunpack.c.l.b16 %v1780
          %v2427 = vunpack.c.h.b16 %v1780
          %v2428 = vunpack.c.l.b16 %v1781
          %v2429 = vunpack.c.h.b16 %v1781
          %v2430 = vunpack.c.l.b16 %v1782
          %v2431 = vunpack.c.h.b16 %v1782
          %v2432 = vunpack.c.l.b16 %v1783
          %v2433 = vunpack.c.h.b16 %v1783
          %v2434 = vunpack.c.l.b16 %v1784
          %v2435 = vunpack.c.h.b16 %v1784
          %v2436 = vunpack.c.l.b16 %v1785
          %v2437 = vunpack.c.h.b16 %v1785
          %v2438 = vunpack.c.l.b16 %v1786
          %v2439 = vunpack.c.h.b16 %v1786
          %v2440 = vunpack.c.l.b16 %v1787
          %v2441 = vunpack.c.h.b16 %v1787
          %v2442 = vunpack.c.l.b16 %v1788
          %v2443 = vunpack.c.h.b16 %v1788
          %v2444 = vunpack.c.l.b16 %v1789
          %v2445 = vunpack.c.h.b16 %v1789
          %v2446 = vunpack.c.l.b16 %v1790
          %v2447 = vunpack.c.h.b16 %v1790
          %v2448 = vunpack.c.l.b16 %v1791
          %v2449 = vunpack.c.h.b16 %v1791
          %v2450 = vunpack.c.l.b16 %v1792
          %v2451 = vunpack.c.h.b16 %v1792
          %v2452 = vunpack.c.l.b16 %v1793
          %v2453 = vunpack.c.h.b16 %v1793
          %v2454 = vunpack.c.l.b16 %v1794
          %v2455 = vunpack.c.h.b16 %v1794
          %v2456 = vunpack.c.l.b16 %v1795
          %v2457 = vunpack.c.h.b16 %v1795
          %v2458 = vunpack.c.l.b16 %v1796
          %v2459 = vunpack.c.h.b16 %v1796
          %v2460 = vunpack.c.l.b16 %v1797
          %v2461 = vunpack.c.h.b16 %v1797
          %v2462 = vunpack.c.l.b16 %v1798
          %v2463 = vunpack.c.h.b16 %v1798
          %v2464 = vunpack.c.l.b16 %v1799
          %v2465 = vunpack.c.h.b16 %v1799
          %v2466 = vunpack.c.l.b16 %v1800
          %v2467 = vunpack.c.h.b16 %v1800
          %v2468 = vunpack.c.l.b16 %v1801
          %v2469 = vunpack.c.h.b16 %v1801
          %v2470 = vunpack.c.l.b16 %v1802
          %v2471 = vunpack.c.h.b16 %v1802
          %v2472 = vunpack.c.l.b16 %v1803
          %v2473 = vunpack.c.h.b16 %v1803
          %v2474 = vunpack.c.l.b16 %v1804
          %v2475 = vunpack.c.h.b16 %v1804
          %v2476 = vunpack.c.l.b16 %v1805
          %v2477 = vunpack.c.h.b16 %v1805
          %v2478 = vunpack.c.l.b16 %v1806
          %v2479 = vunpack.c.h.b16 %v1806
          %v2480 = vunpack.c.l.b16 %v1807
          %v2481 = vunpack.c.h.b16 %v1807
          %v2482 = vunpack.c.l.b16 %v1808
          %v2483 = vunpack.c.h.b16 %v1808
          %v2484 = vunpack.c.l.b16 %v1809
          %v2485 = vunpack.c.h.b16 %v1809
          %v2486 = vunpack.c.l.b16 %v1810
          %v2487 = vunpack.c.h.b16 %v1810
          %v2488 = vunpack.c.l.b16 %v1811
          %v2489 = vunpack.c.h.b16 %v1811
          %v2490 = vunpack.c.l.b16 %v1812
          %v2491 = vunpack.c.h.b16 %v1812
          %v2492 = vunpack.c.l.b16 %v1813
          %v2493 = vunpack.c.h.b16 %v1813
          %v2494 = vunpack.c.l.b16 %v1814
          %v2495 = vunpack.c.h.b16 %v1814
          %v2496 = vunpack.c.l.b16 %v1815
          %v2497 = vunpack.c.h.b16 %v1815
          %v2498 = vunpack.c.l.b16 %v1816
          %v2499 = vunpack.c.h.b16 %v1816
          %v2500 = vunpack.c.l.b16 %v1817
          %v2501 = vunpack.c.h.b16 %v1817
          %v2502 = vunpack.c.l.b16 %v1818
          %v2503 = vunpack.c.h.b16 %v1818
          %v2504 = vunpack.c.l.b16 %v1819
          %v2505 = vunpack.c.h.b16 %v1819
          %v2506 = vunpack.c.l.b16 %v1820
          %v2507 = vunpack.c.h.b16 %v1820
          %v2508 = vunpack.c.l.b16 %v1821
          %v2509 = vunpack.c.h.b16 %v1821
          %v2510 = vunpack.c.l.b16 %v1822
          %v2511 = vunpack.c.h.b16 %v1822
          %v2512 = vunpack.c.l.b16 %v1823
          %v2513 = vunpack.c.h.b16 %v1823
          %v2514 = vunpack.c.l.b16 %v1824
          %v2515 = vunpack.c.h.b16 %v1824
          %v2516 = vunpack.c.l.b16 %v1825
          %v2517 = vunpack.c.h.b16 %v1825
          %v2518 = vunpack.c.l.b16 %v1826
          %v2519 = vunpack.c.h.b16 %v1826
          %v2520 = vunpack.c.l.b16 %v1827
          %v2521 = vunpack.c.h.b16 %v1827
          %v2522 = vunpack.c.l.b16 %v1828
          %v2523 = vunpack.c.h.b16 %v1828
          %v2524 = vunpack.c.l.b16 %v1829
          %v2525 = vunpack.c.h.b16 %v1829
          %v2526 = vunpack.c.l.b16 %v1830
          %v2527 = vunpack.c.h.b16 %v1830
          %v2528 = vunpack.c.l.b16 %v1831
          %v2529 = vunpack.c.h.b16 %v1831
          %v2530 = vunpack.c.l.b16 %v1832
          %v2531 = vunpack.c.h.b16 %v1832
          %v2532 = vunpack.c.l.b16 %v1833
          %v2533 = vunpack.c.h.b16 %v1833
          %v2534 = vunpack.c.l.b16 %v1834
          %v2535 = vunpack.c.h.b16 %v1834
          %v2536 = vunpack.c.l.b16 %v1835
          %v2537 = vunpack.c.h.b16 %v1835
          %v2538 = vunpack.c.l.b16 %v1836
          %v2539 = vunpack.c.h.b16 %v1836
          %v2540 = vunpack.c.l.b16 %v1837
          %v2541 = vunpack.c.h.b16 %v1837
          %v2542 = vunpack.c.l.b16 %v1838
          %v2543 = vunpack.c.h.b16 %v1838
          %v2544 = vunpack.c.l.b16 %v1839
          %v2545 = vunpack.c.h.b16 %v1839
          %v2546 = vunpack.c.l.b16 %v1840
          %v2547 = vunpack.c.h.b16 %v1840
          %v2548 = vunpack.c.l.b16 %v1841
          %v2549 = vunpack.c.h.b16 %v1841
          %v2550 = vunpack.c.l.b16 %v1842
          %v2551 = vunpack.c.h.b16 %v1842
          %v2552 = vunpack.c.l.b16 %v1843
          %v2553 = vunpack.c.h.b16 %v1843
          %v2554 = vunpack.c.l.b16 %v1844
          %v2555 = vunpack.c.h.b16 %v1844
          %v2556 = vunpack.c.l.b16 %v1845
          %v2557 = vunpack.c.h.b16 %v1845
          %v2558 = vunpack.c.l.b16 %v1846
          %v2559 = vunpack.c.h.b16 %v1846
          %v2560 = vunpack.c.l.b16 %v1847
          %v2561 = vunpack.c.h.b16 %v1847
          %v2562 = vunpack.c.l.b16 %v1848
          %v2563 = vunpack.c.h.b16 %v1848
          %v2564 = vunpack.c.l.b16 %v1849
          %v2565 = vunpack.c.h.b16 %v1849
          %v2566 = vunpack.c.l.b16 %v1850
          %v2567 = vunpack.c.h.b16 %v1850
          %v2568 = vunpack.c.l.b16 %v1851
          %v2569 = vunpack.c.h.b16 %v1851
          %v2570 = vunpack.c.l.b16 %v1852
          %v2571 = vunpack.c.h.b16 %v1852
          %v2572 = vunpack.c.l.b16 %v1853
          %v2573 = vunpack.c.h.b16 %v1853
          %v2574 = vunpack.c.l.b16 %v1854
          %v2575 = vunpack.c.h.b16 %v1854
          %v2576 = vunpack.c.l.b16 %v1855
          %v2577 = vunpack.c.h.b16 %v1855
          %v2578 = vunpack.c.l.b16 %v1856
          %v2579 = vunpack.c.h.b16 %v1856
          %v2580 = vunpack.c.l.b16 %v1857
          %v2581 = vunpack.c.h.b16 %v1857
          %v2582 = vunpack.c.l.b16 %v1858
          %v2583 = vunpack.c.h.b16 %v1858
          %v2584 = vunpack.c.l.b16 %v1859
          %v2585 = vunpack.c.h.b16 %v1859
          %v2586 = vunpack.c.l.b16 %v1860
          %v2587 = vunpack.c.h.b16 %v1860
          %v2588 = vunpack.c.l.b16 %v1861
          %v2589 = vunpack.c.h.b16 %v1861
          %v2590 = vunpack.c.l.b16 %v1862
          %v2591 = vunpack.c.h.b16 %v1862
          %v2592 = vunpack.c.l.b16 %v1863
          %v2593 = vunpack.c.h.b16 %v1863
          %v2594 = vunpack.c.l.b16 %v1864
          %v2595 = vunpack.c.h.b16 %v1864
          %v2596 = vunpack.c.l.b16 %v1865
          %v2597 = vunpack.c.h.b16 %v1865
          %v2598 = vunpack.c.l.b16 %v1866
          %v2599 = vunpack.c.h.b16 %v1866
          %v2600 = vunpack.c.l.b16 %v1867
          %v2601 = vunpack.c.h.b16 %v1867
          %v2602 = vunpack.c.l.b16 %v1868
          %v2603 = vunpack.c.h.b16 %v1868
          %v2604 = vunpack.c.l.b16 %v1869
          %v2605 = vunpack.c.h.b16 %v1869
          %v2606 = vunpack.c.l.b16 %v1870
          %v2607 = vunpack.c.h.b16 %v1870
          %v2608 = vunpack.c.l.b16 %v1871
          %v2609 = vunpack.c.h.b16 %v1871
          %v2610 = vunpack.c.l.b16 %v1872
          %v2611 = vunpack.c.h.b16 %v1872
          %v2612 = vunpack.c.l.b16 %v1873
          %v2613 = vunpack.c.h.b16 %v1873
          %v2614 = vunpack.c.l.b16 %v1874
          %v2615 = vunpack.c.h.b16 %v1874
          %v2616 = vunpack.c.l.b16 %v1875
          %v2617 = vunpack.c.h.b16 %v1875
          %v2618 = vunpack.c.l.b16 %v1876
          %v2619 = vunpack.c.h.b16 %v1876
          %v2620 = vunpack.c.l.b16 %v1877
          %v2621 = vunpack.c.h.b16 %v1877
          %v2622 = vunpack.c.l.b16 %v1878
          %v2623 = vunpack.c.h.b16 %v1878
          %v2624 = vunpack.c.l.b16 %v1879
          %v2625 = vunpack.c.h.b16 %v1879
          %v2626 = vunpack.c.l.b16 %v1880
          %v2627 = vunpack.c.h.b16 %v1880
          %v2628 = vunpack.c.l.b16 %v1881
          %v2629 = vunpack.c.h.b16 %v1881
          %v2630 = vunpack.c.l.b16 %v1882
          %v2631 = vunpack.c.h.b16 %v1882
          %v2632 = vunpack.c.l.b16 %v1883
          %v2633 = vunpack.c.h.b16 %v1883
          %v2634 = vunpack.c.l.b16 %v1884
          %v2635 = vunpack.c.h.b16 %v1884
          %v2636 = vunpack.c.l.b16 %v1885
          %v2637 = vunpack.c.h.b16 %v1885
          %v2638 = vunpack.c.l.b16 %v1886
          %v2639 = vunpack.c.h.b16 %v1886
          %v2640 = vunpack.c.l.b16 %v1887
          %v2641 = vunpack.c.h.b16 %v1887
          %v2642 = vunpack.c.l.b16 %v1888
          %v2643 = vunpack.c.h.b16 %v1888
          %v2644 = vunpack.c.l.b16 %v1889
          %v2645 = vunpack.c.h.b16 %v1889
          %v2646 = vunpack.c.l.b16 %v1890
          %v2647 = vunpack.c.h.b16 %v1890
          %v2648 = vunpack.c.l.b16 %v1891
          %v2649 = vunpack.c.h.b16 %v1891
          %v2650 = vunpack.c.l.b16 %v1892
          %v2651 = vunpack.c.h.b16 %v1892
          %v2652 = vunpack.c.l.b16 %v1893
          %v2653 = vunpack.c.h.b16 %v1893
          %v2654 = vunpack.c.l.b16 %v1894
          %v2655 = vunpack.c.h.b16 %v1894
          %v2656 = vunpack.c.l.b16 %v1895
          %v2657 = vunpack.c.h.b16 %v1895
          %v2658 = vunpack.c.l.b16 %v1896
          %v2659 = vunpack.c.h.b16 %v1896
          %v2660 = vunpack.c.l.b16 %v1897
          %v2661 = vunpack.c.h.b16 %v1897
          %v2662 = vunpack.c.l.b16 %v1898
          %v2663 = vunpack.c.h.b16 %v1898
          %v2664 = vunpack.c.l.b16 %v1899
          %v2665 = vunpack.c.h.b16 %v1899
          %v2666 = vunpack.c.l.b16 %v1900
          %v2667 = vunpack.c.h.b16 %v1900
          %v2668 = vunpack.c.l.b16 %v1901
          %v2669 = vunpack.c.h.b16 %v1901
          %v2670 = vpack.c.b16 %v2162, %v2158
          %v2671 = vpack.c.b16 %v2163, %v2159
          %v2672 = vpack.c.b16 %v2164, %v2160
          %v2673 = vpack.c.b16 %v2165, %v2161
          %v2674 = vpack.c.b16 %v2170, %v2166
          %v2675 = vpack.c.b16 %v2171, %v2167
          %v2676 = vpack.c.b16 %v2172, %v2168
          %v2677 = vpack.c.b16 %v2173, %v2169
          %v2678 = vpack.c.b16 %v2178, %v2174
          %v2679 = vpack.c.b16 %v2179, %v2175
          %v2680 = vpack.c.b16 %v2180, %v2176
          %v2681 = vpack.c.b16 %v2181, %v2177
          %v2682 = vpack.c.b16 %v2186, %v2182
          %v2683 = vpack.c.b16 %v2187, %v2183
          %v2684 = vpack.c.b16 %v2188, %v2184
          %v2685 = vpack.c.b16 %v2189, %v2185
          %v2686 = vpack.c.b16 %v2194, %v2190
          %v2687 = vpack.c.b16 %v2195, %v2191
          %v2688 = vpack.c.b16 %v2196, %v2192
          %v2689 = vpack.c.b16 %v2197, %v2193
          %v2690 = vpack.c.b16 %v2202, %v2198
          %v2691 = vpack.c.b16 %v2203, %v2199
          %v2692 = vpack.c.b16 %v2204, %v2200
          %v2693 = vpack.c.b16 %v2205, %v2201
          %v2694 = vpack.c.b16 %v2210, %v2206
          %v2695 = vpack.c.b16 %v2211, %v2207
          %v2696 = vpack.c.b16 %v2212, %v2208
          %v2697 = vpack.c.b16 %v2213, %v2209
          %v2698 = vpack.c.b16 %v2218, %v2214
          %v2699 = vpack.c.b16 %v2219, %v2215
          %v2700 = vpack.c.b16 %v2220, %v2216
          %v2701 = vpack.c.b16 %v2221, %v2217
          %v2702 = vpack.c.b16 %v2226, %v2222
          %v2703 = vpack.c.b16 %v2227, %v2223
          %v2704 = vpack.c.b16 %v2228, %v2224
          %v2705 = vpack.c.b16 %v2229, %v2225
          %v2706 = vpack.c.b16 %v2234, %v2230
          %v2707 = vpack.c.b16 %v2235, %v2231
          %v2708 = vpack.c.b16 %v2236, %v2232
          %v2709 = vpack.c.b16 %v2237, %v2233
          %v2710 = vpack.c.b16 %v2242, %v2238
          %v2711 = vpack.c.b16 %v2243, %v2239
          %v2712 = vpack.c.b16 %v2244, %v2240
          %v2713 = vpack.c.b16 %v2245, %v2241
          %v2714 = vpack.c.b16 %v2250, %v2246
          %v2715 = vpack.c.b16 %v2251, %v2247
          %v2716 = vpack.c.b16 %v2252, %v2248
          %v2717 = vpack.c.b16 %v2253, %v2249
          %v2718 = vpack.c.b16 %v2258, %v2254
          %v2719 = vpack.c.b16 %v2259, %v2255
          %v2720 = vpack.c.b16 %v2260, %v2256
          %v2721 = vpack.c.b16 %v2261, %v2257
          %v2722 = vpack.c.b16 %v2266, %v2262
          %v2723 = vpack.c.b16 %v2267, %v2263
          %v2724 = vpack.c.b16 %v2268, %v2264
          %v2725 = vpack.c.b16 %v2269, %v2265
          %v2726 = vpack.c.b16 %v2274, %v2270
          %v2727 = vpack.c.b16 %v2275, %v2271
          %v2728 = vpack.c.b16 %v2276, %v2272
          %v2729 = vpack.c.b16 %v2277, %v2273
          %v2730 = vpack.c.b16 %v2282, %v2278
          %v2731 = vpack.c.b16 %v2283, %v2279
          %v2732 = vpack.c.b16 %v2284, %v2280
          %v2733 = vpack.c.b16 %v2285, %v2281
          %v2734 = vpack.c.b16 %v2290, %v2286
          %v2735 = vpack.c.b16 %v2291, %v2287
          %v2736 = vpack.c.b16 %v2292, %v2288
          %v2737 = vpack.c.b16 %v2293, %v2289
          %v2738 = vpack.c.b16 %v2298, %v2294
          %v2739 = vpack.c.b16 %v2299, %v2295
          %v2740 = vpack.c.b16 %v2300, %v2296
          %v2741 = vpack.c.b16 %v2301, %v2297
          %v2742 = vpack.c.b16 %v2306, %v2302
          %v2743 = vpack.c.b16 %v2307, %v2303
          %v2744 = vpack.c.b16 %v2308, %v2304
          %v2745 = vpack.c.b16 %v2309, %v2305
          %v2746 = vpack.c.b16 %v2314, %v2310
          %v2747 = vpack.c.b16 %v2315, %v2311
          %v2748 = vpack.c.b16 %v2316, %v2312
          %v2749 = vpack.c.b16 %v2317, %v2313
          %v2750 = vpack.c.b16 %v2322, %v2318
          %v2751 = vpack.c.b16 %v2323, %v2319
          %v2752 = vpack.c.b16 %v2324, %v2320
          %v2753 = vpack.c.b16 %v2325, %v2321
          %v2754 = vpack.c.b16 %v2330, %v2326
          %v2755 = vpack.c.b16 %v2331, %v2327
          %v2756 = vpack.c.b16 %v2332, %v2328
          %v2757 = vpack.c.b16 %v2333, %v2329
          %v2758 = vpack.c.b16 %v2338, %v2334
          %v2759 = vpack.c.b16 %v2339, %v2335
          %v2760 = vpack.c.b16 %v2340, %v2336
          %v2761 = vpack.c.b16 %v2341, %v2337
          %v2762 = vpack.c.b16 %v2346, %v2342
          %v2763 = vpack.c.b16 %v2347, %v2343
          %v2764 = vpack.c.b16 %v2348, %v2344
          %v2765 = vpack.c.b16 %v2349, %v2345
          %v2766 = vpack.c.b16 %v2354, %v2350
          %v2767 = vpack.c.b16 %v2355, %v2351
          %v2768 = vpack.c.b16 %v2356, %v2352
          %v2769 = vpack.c.b16 %v2357, %v2353
          %v2770 = vpack.c.b16 %v2362, %v2358
          %v2771 = vpack.c.b16 %v2363, %v2359
          %v2772 = vpack.c.b16 %v2364, %v2360
          %v2773 = vpack.c.b16 %v2365, %v2361
          %v2774 = vpack.c.b16 %v2370, %v2366
          %v2775 = vpack.c.b16 %v2371, %v2367
          %v2776 = vpack.c.b16 %v2372, %v2368
          %v2777 = vpack.c.b16 %v2373, %v2369
          %v2778 = vpack.c.b16 %v2378, %v2374
          %v2779 = vpack.c.b16 %v2379, %v2375
          %v2780 = vpack.c.b16 %v2380, %v2376
          %v2781 = vpack.c.b16 %v2381, %v2377
          %v2782 = vpack.c.b16 %v2386, %v2382
          %v2783 = vpack.c.b16 %v2387, %v2383
          %v2784 = vpack.c.b16 %v2388, %v2384
          %v2785 = vpack.c.b16 %v2389, %v2385
          %v2786 = vpack.c.b16 %v2394, %v2390
          %v2787 = vpack.c.b16 %v2395, %v2391
          %v2788 = vpack.c.b16 %v2396, %v2392
          %v2789 = vpack.c.b16 %v2397, %v2393
          %v2790 = vpack.c.b16 %v2402, %v2398
          %v2791 = vpack.c.b16 %v2403, %v2399
          %v2792 = vpack.c.b16 %v2404, %v2400
          %v2793 = vpack.c.b16 %v2405, %v2401
          %v2794 = vpack.c.b16 %v2410, %v2406
          %v2795 = vpack.c.b16 %v2411, %v2407
          %v2796 = vpack.c.b16 %v2412, %v2408
          %v2797 = vpack.c.b16 %v2413, %v2409
          %v2798 = vpack.c.b16 %v2418, %v2414
          %v2799 = vpack.c.b16 %v2419, %v2415
          %v2800 = vpack.c.b16 %v2420, %v2416
          %v2801 = vpack.c.b16 %v2421, %v2417
          %v2802 = vpack.c.b16 %v2426, %v2422
          %v2803 = vpack.c.b16 %v2427, %v2423
          %v2804 = vpack.c.b16 %v2428, %v2424
          %v2805 = vpack.c.b16 %v2429, %v2425
          %v2806 = vpack.c.b16 %v2434, %v2430
          %v2807 = vpack.c.b16 %v2435, %v2431
          %v2808 = vpack.c.b16 %v2436, %v2432
          %v2809 = vpack.c.b16 %v2437, %v2433
          %v2810 = vpack.c.b16 %v2442, %v2438
          %v2811 = vpack.c.b16 %v2443, %v2439
          %v2812 = vpack.c.b16 %v2444, %v2440
          %v2813 = vpack.c.b16 %v2445, %v2441
          %v2814 = vpack.c.b16 %v2450, %v2446
          %v2815 = vpack.c.b16 %v2451, %v2447
          %v2816 = vpack.c.b16 %v2452, %v2448
          %v2817 = vpack.c.b16 %v2453, %v2449
          %v2818 = vpack.c.b16 %v2458, %v2454
          %v2819 = vpack.c.b16 %v2459, %v2455
          %v2820 = vpack.c.b16 %v2460, %v2456
          %v2821 = vpack.c.b16 %v2461, %v2457
          %v2822 = vpack.c.b16 %v2466, %v2462
          %v2823 = vpack.c.b16 %v2467, %v2463
          %v2824 = vpack.c.b16 %v2468, %v2464
          %v2825 = vpack.c.b16 %v2469, %v2465
          %v2826 = vpack.c.b16 %v2474, %v2470
          %v2827 = vpack.c.b16 %v2475, %v2471
          %v2828 = vpack.c.b16 %v2476, %v2472
          %v2829 = vpack.c.b16 %v2477, %v2473
          %v2830 = vpack.c.b16 %v2482, %v2478
          %v2831 = vpack.c.b16 %v2483, %v2479
          %v2832 = vpack.c.b16 %v2484, %v2480
          %v2833 = vpack.c.b16 %v2485, %v2481
          %v2834 = vpack.c.b16 %v2490, %v2486
          %v2835 = vpack.c.b16 %v2491, %v2487
          %v2836 = vpack.c.b16 %v2492, %v2488
          %v2837 = vpack.c.b16 %v2493, %v2489
          %v2838 = vpack.c.b16 %v2498, %v2494
          %v2839 = vpack.c.b16 %v2499, %v2495
          %v2840 = vpack.c.b16 %v2500, %v2496
          %v2841 = vpack.c.b16 %v2501, %v2497
          %v2842 = vpack.c.b16 %v2506, %v2502
          %v2843 = vpack.c.b16 %v2507, %v2503
          %v2844 = vpack.c.b16 %v2508, %v2504
          %v2845 = vpack.c.b16 %v2509, %v2505
          %v2846 = vpack.c.b16 %v2514, %v2510
          %v2847 = vpack.c.b16 %v2515, %v2511
          %v2848 = vpack.c.b16 %v2516, %v2512
          %v2849 = vpack.c.b16 %v2517, %v2513
          %v2850 = vpack.c.b16 %v2522, %v2518
          %v2851 = vpack.c.b16 %v2523, %v2519
          %v2852 = vpack.c.b16 %v2524, %v2520
          %v2853 = vpack.c.b16 %v2525, %v2521
          %v2854 = vpack.c.b16 %v2530, %v2526
          %v2855 = vpack.c.b16 %v2531, %v2527
          %v2856 = vpack.c.b16 %v2532, %v2528
          %v2857 = vpack.c.b16 %v2533, %v2529
          %v2858 = vpack.c.b16 %v2538, %v2534
          %v2859 = vpack.c.b16 %v2539, %v2535
          %v2860 = vpack.c.b16 %v2540, %v2536
          %v2861 = vpack.c.b16 %v2541, %v2537
          %v2862 = vpack.c.b16 %v2546, %v2542
          %v2863 = vpack.c.b16 %v2547, %v2543
          %v2864 = vpack.c.b16 %v2548, %v2544
          %v2865 = vpack.c.b16 %v2549, %v2545
          %v2866 = vpack.c.b16 %v2554, %v2550
          %v2867 = vpack.c.b16 %v2555, %v2551
          %v2868 = vpack.c.b16 %v2556, %v2552
          %v2869 = vpack.c.b16 %v2557, %v2553
          %v2870 = vpack.c.b16 %v2562, %v2558
          %v2871 = vpack.c.b16 %v2563, %v2559
          %v2872 = vpack.c.b16 %v2564, %v2560
          %v2873 = vpack.c.b16 %v2565, %v2561
          %v2874 = vpack.c.b16 %v2570, %v2566
          %v2875 = vpack.c.b16 %v2571, %v2567
          %v2876 = vpack.c.b16 %v2572, %v2568
          %v2877 = vpack.c.b16 %v2573, %v2569
          %v2878 = vpack.c.b16 %v2578, %v2574
          %v2879 = vpack.c.b16 %v2579, %v2575
          %v2880 = vpack.c.b16 %v2580, %v2576
          %v2881 = vpack.c.b16 %v2581, %v2577
          %v2882 = vpack.c.b16 %v2586, %v2582
          %v2883 = vpack.c.b16 %v2587, %v2583
          %v2884 = vpack.c.b16 %v2588, %v2584
          %v2885 = vpack.c.b16 %v2589, %v2585
          %v2886 = vpack.c.b16 %v2594, %v2590
          %v2887 = vpack.c.b16 %v2595, %v2591
          %v2888 = vpack.c.b16 %v2596, %v2592
          %v2889 = vpack.c.b16 %v2597, %v2593
          %v2890 = vpack.c.b16 %v2602, %v2598
          %v2891 = vpack.c.b16 %v2603, %v2599
          %v2892 = vpack.c.b16 %v2604, %v2600
          %v2893 = vpack.c.b16 %v2605, %v2601
          %v2894 = vpack.c.b16 %v2610, %v2606
          %v2895 = vpack.c.b16 %v2611, %v2607
          %v2896 = vpack.c.b16 %v2612, %v2608
          %v2897 = vpack.c.b16 %v2613, %v2609
          %v2898 = vpack.c.b16 %v2618, %v2614
          %v2899 = vpack.c.b16 %v2619, %v2615
          %v2900 = vpack.c.b16 %v2620, %v2616
          %v2901 = vpack.c.b16 %v2621, %v2617
          %v2902 = vpack.c.b16 %v2626, %v2622
          %v2903 = vpack.c.b16 %v2627, %v2623
          %v2904 = vpack.c.b16 %v2628, %v2624
          %v2905 = vpack.c.b16 %v2629, %v2625
          %v2906 = vpack.c.b16 %v2634, %v2630
          %v2907 = vpack.c.b16 %v2635, %v2631
          %v2908 = vpack.c.b16 %v2636, %v2632
          %v2909 = vpack.c.b16 %v2637, %v2633
          %v2910 = vpack.c.b16 %v2642, %v2638
          %v2911 = vpack.c.b16 %v2643, %v2639
          %v2912 = vpack.c.b16 %v2644, %v2640
          %v2913 = vpack.c.b16 %v2645, %v2641
          %v2914 = vpack.c.b16 %v2650, %v2646
          %v2915 = vpack.c.b16 %v2651, %v2647
          %v2916 = vpack.c.b16 %v2652, %v2648
          %v2917 = vpack.c.b16 %v2653, %v2649
          %v2918 = vpack.c.b16 %v2658, %v2654
          %v2919 = vpack.c.b16 %v2659, %v2655
          %v2920 = vpack.c.b16 %v2660, %v2656
          %v2921 = vpack.c.b16 %v2661, %v2657
          %v2922 = vpack.c.b16 %v2666, %v2662
          %v2923 = vpack.c.b16 %v2667, %v2663
          %v2924 = vpack.c.b16 %v2668, %v2664
          %v2925 = vpack.c.b16 %v2669, %v2665
          %3182 = vmatprep.subr.bf16.mxu0 %v2699
          %3183 = vmatpush1.bf16.msra.mxu0 %v2698
          %3184 = vmatprep.subr.bf16.mxu0 %v2695
          %3185 = vmatpush1.bf16.msra.mxu0 %v2694
          %3186 = vmatprep.subr.bf16.mxu0 %v2691
          %3187 = vmatpush1.bf16.msra.mxu0 %v2690
          %3188 = vmatprep.subr.bf16.mxu0 %v2687
          %3189 = vmatpush1.bf16.msra.mxu0 %v2686
          %3190 = vmatprep.subr.bf16.mxu0 %v2683
          %3191 = vmatpush1.bf16.msra.mxu0 %v2682
          %3192 = vmatprep.subr.bf16.mxu0 %v2679
          %3193 = vmatpush1.bf16.msra.mxu0 %v2678
          %3194 = vmatprep.subr.bf16.mxu0 %v2675
          %3195 = vmatpush1.bf16.msra.mxu0 %v2674
          %3196 = vmatprep.subr.bf16.mxu0 %v2671
          %3197 = vmatpush1.bf16.msra.mxu0 %v2670
          %3198 = vmatprep.subr.bf16.mxu0 %v2731
          %3199 = vmatpush2.bf16.msra.mxu0 %v2730
          %3200 = vmatprep.subr.bf16.mxu0 %v2727
          %3201 = vmatpush2.bf16.msra.mxu0 %v2726
          %3202 = vmatprep.subr.bf16.mxu0 %v2723
          %3203 = vmatpush2.bf16.msra.mxu0 %v2722
          %3204 = vmatprep.subr.bf16.mxu0 %v2719
          %3205 = vmatpush2.bf16.msra.mxu0 %v2718
          %3206 = vmatprep.subr.bf16.mxu0 %v2715
          %3207 = vmatpush2.bf16.msra.mxu0 %v2714
          %3208 = vmatprep.subr.bf16.mxu0 %v2711
          %3209 = vmatpush2.bf16.msra.mxu0 %v2710
          %3210 = vmatprep.subr.bf16.mxu0 %v2707
          %3211 = vmatpush2.bf16.msra.mxu0 %v2706
          %3212 = vmatprep.subr.bf16.mxu0 %v2703
          %3213 = vmatpush2.bf16.msra.mxu0 %v2702
          %3214 = vmatprep.mubr.bf16.mxu0 %v1639
          %3215 = vmatmul.mubr.bf16.gmra.mxu0 %v1638
          %v3216 = vpop.f32.mrf.mxu0
          %v3217 = vadd.f32 0.0, %v3216
          %v3218 = vpop.f32.mrf.mxu0
          %v3219 = vadd.f32 0.0, %v3218
          %v3220 = vpop.f32.mrf.mxu0
          %v3221 = vpop.f32.mrf.mxu0
          %3222 = vdwg.mxu0
          %3223 = vmatprep.subr.bf16.mxu0 %v2763
          %3224 = vmatpush1.bf16.msra.mxu0 %v2762
          %3225 = vmatprep.subr.bf16.mxu0 %v2759
          %3226 = vmatpush1.bf16.msra.mxu0 %v2758
          %3227 = vmatprep.subr.bf16.mxu0 %v2755
          %3228 = vmatpush1.bf16.msra.mxu0 %v2754
          %3229 = vmatprep.subr.bf16.mxu0 %v2751
          %3230 = vmatpush1.bf16.msra.mxu0 %v2750
          %3231 = vmatprep.subr.bf16.mxu0 %v2747
          %3232 = vmatpush1.bf16.msra.mxu0 %v2746
          %3233 = vmatprep.subr.bf16.mxu0 %v2743
          %3234 = vmatpush1.bf16.msra.mxu0 %v2742
          %3235 = vmatprep.subr.bf16.mxu0 %v2739
          %3236 = vmatpush1.bf16.msra.mxu0 %v2738
          %3237 = vmatprep.subr.bf16.mxu0 %v2735
          %3238 = vmatpush1.bf16.msra.mxu0 %v2734
          %3239 = vmatprep.subr.bf16.mxu0 %v2795
          %3240 = vmatpush2.bf16.msra.mxu0 %v2794
          %3241 = vmatprep.subr.bf16.mxu0 %v2791
          %3242 = vmatpush2.bf16.msra.mxu0 %v2790
          %3243 = vmatprep.subr.bf16.mxu0 %v2787
          %3244 = vmatpush2.bf16.msra.mxu0 %v2786
          %3245 = vmatprep.subr.bf16.mxu0 %v2783
          %3246 = vmatpush2.bf16.msra.mxu0 %v2782
          %3247 = vmatprep.subr.bf16.mxu0 %v2779
          %3248 = vmatpush2.bf16.msra.mxu0 %v2778
          %3249 = vmatprep.subr.bf16.mxu0 %v2775
          %3250 = vmatpush2.bf16.msra.mxu0 %v2774
          %3251 = vmatprep.subr.bf16.mxu0 %v2771
          %3252 = vmatpush2.bf16.msra.mxu0 %v2770
          %3253 = vmatprep.subr.bf16.mxu0 %v2767
          %3254 = vmatpush2.bf16.msra.mxu0 %v2766
          %3255 = vmatprep.mubr.bf16.mxu0 %v1641
          %3256 = vmatmul.mubr.bf16.gmra.mxu0 %v1640
          %v3257 = vpop.f32.mrf.mxu0
          %v3258 = vadd.f32 %v3217, %v3257
          %v3259 = vpop.f32.mrf.mxu0
          %v3260 = vadd.f32 %v3219, %v3259
          %v3261 = vpop.f32.mrf.mxu0
          %v3262 = vpop.f32.mrf.mxu0
          %3263 = vdwg.mxu0
          %3264 = vmatprep.subr.bf16.mxu0 %v2827
          %3265 = vmatpush1.bf16.msra.mxu0 %v2826
          %3266 = vmatprep.subr.bf16.mxu0 %v2823
          %3267 = vmatpush1.bf16.msra.mxu0 %v2822
          %3268 = vmatprep.subr.bf16.mxu0 %v2819
          %3269 = vmatpush1.bf16.msra.mxu0 %v2818
          %3270 = vmatprep.subr.bf16.mxu0 %v2815
          %3271 = vmatpush1.bf16.msra.mxu0 %v2814
          %3272 = vmatprep.subr.bf16.mxu0 %v2811
          %3273 = vmatpush1.bf16.msra.mxu0 %v2810
          %3274 = vmatprep.subr.bf16.mxu0 %v2807
          %3275 = vmatpush1.bf16.msra.mxu0 %v2806
          %3276 = vmatprep.subr.bf16.mxu0 %v2803
          %3277 = vmatpush1.bf16.msra.mxu0 %v2802
          %3278 = vmatprep.subr.bf16.mxu0 %v2799
          %3279 = vmatpush1.bf16.msra.mxu0 %v2798
          %3280 = vmatprep.subr.bf16.mxu0 %v2859
          %3281 = vmatpush2.bf16.msra.mxu0 %v2858
          %3282 = vmatprep.subr.bf16.mxu0 %v2855
          %3283 = vmatpush2.bf16.msra.mxu0 %v2854
          %3284 = vmatprep.subr.bf16.mxu0 %v2851
          %3285 = vmatpush2.bf16.msra.mxu0 %v2850
          %3286 = vmatprep.subr.bf16.mxu0 %v2847
          %3287 = vmatpush2.bf16.msra.mxu0 %v2846
          %3288 = vmatprep.subr.bf16.mxu0 %v2843
          %3289 = vmatpush2.bf16.msra.mxu0 %v2842
          %3290 = vmatprep.subr.bf16.mxu0 %v2839
          %3291 = vmatpush2.bf16.msra.mxu0 %v2838
          %3292 = vmatprep.subr.bf16.mxu0 %v2835
          %3293 = vmatpush2.bf16.msra.mxu0 %v2834
          %3294 = vmatprep.subr.bf16.mxu0 %v2831
          %3295 = vmatpush2.bf16.msra.mxu0 %v2830
          %3296 = vmatprep.mubr.bf16.mxu0 %v1643
          %3297 = vmatmul.mubr.bf16.gmra.mxu0 %v1642
          %v3298 = vpop.f32.mrf.mxu0
          %v3299 = vadd.f32 %v3258, %v3298
          %v3300 = vpop.f32.mrf.mxu0
          %v3301 = vadd.f32 %v3260, %v3300
          %v3302 = vpop.f32.mrf.mxu0
          %v3303 = vpop.f32.mrf.mxu0
          %3304 = vdwg.mxu0
          %3305 = vmatprep.subr.bf16.mxu0 %v2891
          %3306 = vmatpush1.bf16.msra.mxu0 %v2890
          %3307 = vmatprep.subr.bf16.mxu0 %v2887
          %3308 = vmatpush1.bf16.msra.mxu0 %v2886
          %3309 = vmatprep.subr.bf16.mxu0 %v2883
          %3310 = vmatpush1.bf16.msra.mxu0 %v2882
          %3311 = vmatprep.subr.bf16.mxu0 %v2879
          %3312 = vmatpush1.bf16.msra.mxu0 %v2878
          %3313 = vmatprep.subr.bf16.mxu0 %v2875
          %3314 = vmatpush1.bf16.msra.mxu0 %v2874
          %3315 = vmatprep.subr.bf16.mxu0 %v2871
          %3316 = vmatpush1.bf16.msra.mxu0 %v2870
          %3317 = vmatprep.subr.bf16.mxu0 %v2867
          %3318 = vmatpush1.bf16.msra.mxu0 %v2866
          %3319 = vmatprep.subr.bf16.mxu0 %v2863
          %3320 = vmatpush1.bf16.msra.mxu0 %v2862
          %3321 = vmatprep.subr.bf16.mxu0 %v2923
          %3322 = vmatpush2.bf16.msra.mxu0 %v2922
          %3323 = vmatprep.subr.bf16.mxu0 %v2919
          %3324 = vmatpush2.bf16.msra.mxu0 %v2918
          %3325 = vmatprep.subr.bf16.mxu0 %v2915
          %3326 = vmatpush2.bf16.msra.mxu0 %v2914
          %3327 = vmatprep.subr.bf16.mxu0 %v2911
          %3328 = vmatpush2.bf16.msra.mxu0 %v2910
          %3329 = vmatprep.subr.bf16.mxu0 %v2907
          %3330 = vmatpush2.bf16.msra.mxu0 %v2906
          %3331 = vmatprep.subr.bf16.mxu0 %v2903
          %3332 = vmatpush2.bf16.msra.mxu0 %v2902
          %3333 = vmatprep.subr.bf16.mxu0 %v2899
          %3334 = vmatpush2.bf16.msra.mxu0 %v2898
          %3335 = vmatprep.subr.bf16.mxu0 %v2895
          %3336 = vmatpush2.bf16.msra.mxu0 %v2894
          %3337 = vmatprep.mubr.bf16.mxu0 %v1645
          %3338 = vmatmul.mubr.bf16.gmra.mxu0 %v1644
          %v3339 = vpop.f32.mrf.mxu0
          %v3340 = vadd.f32 %v3299, %v3339
          %v3341 = vpop.f32.mrf.mxu0
          %v3342 = vadd.f32 %v3301, %v3341
          %v3343 = vpop.f32.mrf.mxu0
          %v3344 = vpop.f32.mrf.mxu0
          %3345 = vdwg.mxu0
          %3346 = vmatprep.subr.bf16.mxu0 %v2701
          %3347 = vmatpush1.bf16.msra.mxu0 %v2700
          %3348 = vmatprep.subr.bf16.mxu0 %v2697
          %3349 = vmatpush1.bf16.msra.mxu0 %v2696
          %3350 = vmatprep.subr.bf16.mxu0 %v2693
          %3351 = vmatpush1.bf16.msra.mxu0 %v2692
          %3352 = vmatprep.subr.bf16.mxu0 %v2689
          %3353 = vmatpush1.bf16.msra.mxu0 %v2688
          %3354 = vmatprep.subr.bf16.mxu0 %v2685
          %3355 = vmatpush1.bf16.msra.mxu0 %v2684
          %3356 = vmatprep.subr.bf16.mxu0 %v2681
          %3357 = vmatpush1.bf16.msra.mxu0 %v2680
          %3358 = vmatprep.subr.bf16.mxu0 %v2677
          %3359 = vmatpush1.bf16.msra.mxu0 %v2676
          %3360 = vmatprep.subr.bf16.mxu0 %v2673
          %3361 = vmatpush1.bf16.msra.mxu0 %v2672
          %3362 = vmatprep.subr.bf16.mxu0 %v2733
          %3363 = vmatpush2.bf16.msra.mxu0 %v2732
          %3364 = vmatprep.subr.bf16.mxu0 %v2729
          %3365 = vmatpush2.bf16.msra.mxu0 %v2728
          %3366 = vmatprep.subr.bf16.mxu0 %v2725
          %3367 = vmatpush2.bf16.msra.mxu0 %v2724
          %3368 = vmatprep.subr.bf16.mxu0 %v2721
          %3369 = vmatpush2.bf16.msra.mxu0 %v2720
          %3370 = vmatprep.subr.bf16.mxu0 %v2717
          %3371 = vmatpush2.bf16.msra.mxu0 %v2716
          %3372 = vmatprep.subr.bf16.mxu0 %v2713
          %3373 = vmatpush2.bf16.msra.mxu0 %v2712
          %3374 = vmatprep.subr.bf16.mxu0 %v2709
          %3375 = vmatpush2.bf16.msra.mxu0 %v2708
          %3376 = vmatprep.subr.bf16.mxu0 %v2705
          %3377 = vmatpush2.bf16.msra.mxu0 %v2704
          %3378 = vmatprep.mubr.bf16.mxu0 %v1639
          %3379 = vmatmul.mubr.bf16.gmra.mxu0 %v1638
          %v3380 = vpop.f32.mrf.mxu0
          %v3381 = vadd.f32 0.0, %v3380
          %v3382 = vpop.f32.mrf.mxu0
          %v3383 = vadd.f32 0.0, %v3382
          %v3384 = vpop.f32.mrf.mxu0
          %v3385 = vpop.f32.mrf.mxu0
          %3386 = vdwg.mxu0
          %3387 = vmatprep.subr.bf16.mxu0 %v2765
          %3388 = vmatpush1.bf16.msra.mxu0 %v2764
          %3389 = vmatprep.subr.bf16.mxu0 %v2761
          %3390 = vmatpush1.bf16.msra.mxu0 %v2760
          %3391 = vmatprep.subr.bf16.mxu0 %v2757
          %3392 = vmatpush1.bf16.msra.mxu0 %v2756
          %3393 = vmatprep.subr.bf16.mxu0 %v2753
          %3394 = vmatpush1.bf16.msra.mxu0 %v2752
          %3395 = vmatprep.subr.bf16.mxu0 %v2749
          %3396 = vmatpush1.bf16.msra.mxu0 %v2748
          %3397 = vmatprep.subr.bf16.mxu0 %v2745
          %3398 = vmatpush1.bf16.msra.mxu0 %v2744
          %3399 = vmatprep.subr.bf16.mxu0 %v2741
          %3400 = vmatpush1.bf16.msra.mxu0 %v2740
          %3401 = vmatprep.subr.bf16.mxu0 %v2737
          %3402 = vmatpush1.bf16.msra.mxu0 %v2736
          %3403 = vmatprep.subr.bf16.mxu0 %v2797
          %3404 = vmatpush2.bf16.msra.mxu0 %v2796
          %3405 = vmatprep.subr.bf16.mxu0 %v2793
          %3406 = vmatpush2.bf16.msra.mxu0 %v2792
          %3407 = vmatprep.subr.bf16.mxu0 %v2789
          %3408 = vmatpush2.bf16.msra.mxu0 %v2788
          %3409 = vmatprep.subr.bf16.mxu0 %v2785
          %3410 = vmatpush2.bf16.msra.mxu0 %v2784
          %3411 = vmatprep.subr.bf16.mxu0 %v2781
          %3412 = vmatpush2.bf16.msra.mxu0 %v2780
          %3413 = vmatprep.subr.bf16.mxu0 %v2777
          %3414 = vmatpush2.bf16.msra.mxu0 %v2776
          %3415 = vmatprep.subr.bf16.mxu0 %v2773
          %3416 = vmatpush2.bf16.msra.mxu0 %v2772
          %3417 = vmatprep.subr.bf16.mxu0 %v2769
          %3418 = vmatpush2.bf16.msra.mxu0 %v2768
          %3419 = vmatprep.mubr.bf16.mxu0 %v1641
          %3420 = vmatmul.mubr.bf16.gmra.mxu0 %v1640
          %v3421 = vpop.f32.mrf.mxu0
          %v3422 = vadd.f32 %v3381, %v3421
          %v3423 = vpop.f32.mrf.mxu0
          %v3424 = vadd.f32 %v3383, %v3423
          %v3425 = vpop.f32.mrf.mxu0
          %v3426 = vpop.f32.mrf.mxu0
          %3427 = vdwg.mxu0
          %3428 = vmatprep.subr.bf16.mxu0 %v2829
          %3429 = vmatpush1.bf16.msra.mxu0 %v2828
          %3430 = vmatprep.subr.bf16.mxu0 %v2825
          %3431 = vmatpush1.bf16.msra.mxu0 %v2824
          %3432 = vmatprep.subr.bf16.mxu0 %v2821
          %3433 = vmatpush1.bf16.msra.mxu0 %v2820
          %3434 = vmatprep.subr.bf16.mxu0 %v2817
          %3435 = vmatpush1.bf16.msra.mxu0 %v2816
          %3436 = vmatprep.subr.bf16.mxu0 %v2813
          %3437 = vmatpush1.bf16.msra.mxu0 %v2812
          %3438 = vmatprep.subr.bf16.mxu0 %v2809
          %3439 = vmatpush1.bf16.msra.mxu0 %v2808
          %3440 = vmatprep.subr.bf16.mxu0 %v2805
          %3441 = vmatpush1.bf16.msra.mxu0 %v2804
          %3442 = vmatprep.subr.bf16.mxu0 %v2801
          %3443 = vmatpush1.bf16.msra.mxu0 %v2800
          %3444 = vmatprep.subr.bf16.mxu0 %v2861
          %3445 = vmatpush2.bf16.msra.mxu0 %v2860
          %3446 = vmatprep.subr.bf16.mxu0 %v2857
          %3447 = vmatpush2.bf16.msra.mxu0 %v2856
          %3448 = vmatprep.subr.bf16.mxu0 %v2853
          %3449 = vmatpush2.bf16.msra.mxu0 %v2852
          %3450 = vmatprep.subr.bf16.mxu0 %v2849
          %3451 = vmatpush2.bf16.msra.mxu0 %v2848
          %3452 = vmatprep.subr.bf16.mxu0 %v2845
          %3453 = vmatpush2.bf16.msra.mxu0 %v2844
          %3454 = vmatprep.subr.bf16.mxu0 %v2841
          %3455 = vmatpush2.bf16.msra.mxu0 %v2840
          %3456 = vmatprep.subr.bf16.mxu0 %v2837
          %3457 = vmatpush2.bf16.msra.mxu0 %v2836
          %3458 = vmatprep.subr.bf16.mxu0 %v2833
          %3459 = vmatpush2.bf16.msra.mxu0 %v2832
          %3460 = vmatprep.mubr.bf16.mxu0 %v1643
          %3461 = vmatmul.mubr.bf16.gmra.mxu0 %v1642
          %v3462 = vpop.f32.mrf.mxu0
          %v3463 = vadd.f32 %v3422, %v3462
          %v3464 = vpop.f32.mrf.mxu0
          %v3465 = vadd.f32 %v3424, %v3464
          %v3466 = vpop.f32.mrf.mxu0
          %v3467 = vpop.f32.mrf.mxu0
          %3468 = vdwg.mxu0
          %3469 = vmatprep.subr.bf16.mxu0 %v2893
          %3470 = vmatpush1.bf16.msra.mxu0 %v2892
          %3471 = vmatprep.subr.bf16.mxu0 %v2889
          %3472 = vmatpush1.bf16.msra.mxu0 %v2888
          %3473 = vmatprep.subr.bf16.mxu0 %v2885
          %3474 = vmatpush1.bf16.msra.mxu0 %v2884
          %3475 = vmatprep.subr.bf16.mxu0 %v2881
          %3476 = vmatpush1.bf16.msra.mxu0 %v2880
          %3477 = vmatprep.subr.bf16.mxu0 %v2877
          %3478 = vmatpush1.bf16.msra.mxu0 %v2876
          %3479 = vmatprep.subr.bf16.mxu0 %v2873
          %3480 = vmatpush1.bf16.msra.mxu0 %v2872
          %3481 = vmatprep.subr.bf16.mxu0 %v2869
          %3482 = vmatpush1.bf16.msra.mxu0 %v2868
          %3483 = vmatprep.subr.bf16.mxu0 %v2865
          %3484 = vmatpush1.bf16.msra.mxu0 %v2864
          %3485 = vmatprep.subr.bf16.mxu0 %v2925
          %3486 = vmatpush2.bf16.msra.mxu0 %v2924
          %3487 = vmatprep.subr.bf16.mxu0 %v2921
          %3488 = vmatpush2.bf16.msra.mxu0 %v2920
          %3489 = vmatprep.subr.bf16.mxu0 %v2917
          %3490 = vmatpush2.bf16.msra.mxu0 %v2916
          %3491 = vmatprep.subr.bf16.mxu0 %v2913
          %3492 = vmatpush2.bf16.msra.mxu0 %v2912
          %3493 = vmatprep.subr.bf16.mxu0 %v2909
          %3494 = vmatpush2.bf16.msra.mxu0 %v2908
          %3495 = vmatprep.subr.bf16.mxu0 %v2905
          %3496 = vmatpush2.bf16.msra.mxu0 %v2904
          %3497 = vmatprep.subr.bf16.mxu0 %v2901
          %3498 = vmatpush2.bf16.msra.mxu0 %v2900
          %3499 = vmatprep.subr.bf16.mxu0 %v2897
          %3500 = vmatpush2.bf16.msra.mxu0 %v2896
          %3501 = vmatprep.mubr.bf16.mxu0 %v1645
          %3502 = vmatmul.mubr.bf16.gmra.mxu0 %v1644
          %v3503 = vpop.f32.mrf.mxu0
          %v3504 = vadd.f32 %v3463, %v3503
          %v3505 = vpop.f32.mrf.mxu0
          %v3506 = vadd.f32 %v3465, %v3505
          %v3507 = vpop.f32.mrf.mxu0
          %v3508 = vpop.f32.mrf.mxu0
          %3509 = vdwg.mxu0
          %p3510 = scmp.eq.s32.totalorder %s25, 1
          // Predicated region
          $region77: #{channel_compress.1} parent=75 // pred_check
            %p3511 = pneg %p3510
          $region78: #{channel_compress.1} parent=75 // pred_check_branch
            %3513 = sbr.rel (%p3511) target = $region80
          $region79: #{channel_compress.1} parent=75 // pred_region
            %p3514 = scmp.eq.s32.totalorder %s26, 0
            // Predicated region
            $region81: #{channel_compress.1} parent=79 // pred_check
              %p3515 = pneg %p3514
            $region82: #{channel_compress.1} parent=79 // pred_check_branch
              %3517 = sbr.rel (%p3515) target = $region84
            $region83: #{channel_compress.1} parent=79 // pred_region
              %3518 = vst [vmem:[#allocation3] sm:$0xff] 0.0
            $region84: #{channel_compress.1} parent=79 // pred_fallthru
              _
            %v3519 = vld [vmem:[#allocation3] ss:$2 sm:$0xf]
            %v3520 = vrot.slane %v3340, 4
            %v3521 = vadd.f32 %v3340, %v3520
            %v3522 = vrot.slane %v3521, 2
            %v3523 = vadd.f32 %v3521, %v3522
            %v3524 = vrot.slane %v3523, 1
            %v3525 = vadd.f32 %v3523, %v3524
            %v3526 = vrot.slane %v3342, 4
            %v3527 = vadd.f32 %v3342, %v3526
            %v3528 = vrot.slane %v3527, 2
            %v3529 = vadd.f32 %v3527, %v3528
            %v3530 = vrot.slane %v3529, 1
            %v3531 = vadd.f32 %v3529, %v3530
            %v3532 = vrot.slane %v3504, 4
            %v3533 = vadd.f32 %v3504, %v3532
            %v3534 = vrot.slane %v3533, 2
            %v3535 = vadd.f32 %v3533, %v3534
            %v3536 = vrot.slane %v3535, 1
            %v3537 = vadd.f32 %v3535, %v3536
            %v3538 = vrot.slane %v3506, 4
            %v3539 = vadd.f32 %v3506, %v3538
            %v3540 = vrot.slane %v3539, 2
            %v3541 = vadd.f32 %v3539, %v3540
            %v3542 = vrot.slane %v3541, 1
            %v3543 = vadd.f32 %v3541, %v3542
            %v3548 = vcombine.low %v3525, %v3531
            %v3549 = vcombine.low %v3537, %v3543
            %v3551 = vunpack.c.l.s4 1966171168
            %v3552 = vunpack.c.0.s8 %v3551
            %v3553 = vlaneseq
            %v3554 = vshrl.u32 %v3553, 7
            %v3555 = vsub.s32 %v3552, %v3554
            %v3556 = vrot.slane %v3548, %v3555
            %v3558 = vunpack.c.l.s4 1966171168
            %v3559 = vunpack.c.0.s8 %v3558
            %v3560 = vlaneseq
            %v3561 = vshrl.u32 %v3560, 7
            %v3562 = vsub.s32 %v3559, %v3561
            %v3563 = vrot.slane %v3549, %v3562
            %v3564 = vcombine.low %v3556, %v3563
            %v3566 = vunpack.c.l.s4 1966171168
            %v3567 = vunpack.c.0.s8 %v3566
            %v3568 = vlaneseq
            %v3569 = vshrl.u32 %v3568, 7
            %v3570 = vsub.s32 %v3567, %v3569
            %v3571 = vrot.slane %v3564, %v3570
            %v3573 = vadd.f32 %v3519, %v3571
            %v3574 = vlaneseq
            %vm3575 = vcmp.ge.s32.totalorder %v3574, 0
            %vm3576 = vcmp.lt.s32.totalorder %v3574, 512
            %vm3577 = vmand %vm3575, %vm3576
            %3578 = vst.msk [vmem:[#allocation3] ss:$2 sm:$0xf] %vm3577, %v3573
            %s3579 = scalar_lea.vmem [#allocation3], 1
            %v3580 = vld [vmem:[%s3579] ss:$2 sm:$0xf]
            %v3581 = vmul.f32 %v3340, %v3340
            %v3582 = vmul.f32 %v3342, %v3342
            %v3583 = vmul.f32 %v3504, %v3504
            %v3584 = vmul.f32 %v3506, %v3506
            %v3585 = vrot.slane %v3581, 4
            %v3586 = vadd.f32 %v3581, %v3585
            %v3587 = vrot.slane %v3586, 2
            %v3588 = vadd.f32 %v3586, %v3587
            %v3589 = vrot.slane %v3588, 1
            %v3590 = vadd.f32 %v3588, %v3589
            %v3591 = vrot.slane %v3582, 4
            %v3592 = vadd.f32 %v3582, %v3591
            %v3593 = vrot.slane %v3592, 2
            %v3594 = vadd.f32 %v3592, %v3593
            %v3595 = vrot.slane %v3594, 1
            %v3596 = vadd.f32 %v3594, %v3595
            %v3597 = vrot.slane %v3583, 4
            %v3598 = vadd.f32 %v3583, %v3597
            %v3599 = vrot.slane %v3598, 2
            %v3600 = vadd.f32 %v3598, %v3599
            %v3601 = vrot.slane %v3600, 1
            %v3602 = vadd.f32 %v3600, %v3601
            %v3603 = vrot.slane %v3584, 4
            %v3604 = vadd.f32 %v3584, %v3603
            %v3605 = vrot.slane %v3604, 2
            %v3606 = vadd.f32 %v3604, %v3605
            %v3607 = vrot.slane %v3606, 1
            %v3608 = vadd.f32 %v3606, %v3607
            %v3613 = vcombine.low %v3590, %v3596
            %v3614 = vcombine.low %v3602, %v3608
            %v3616 = vunpack.c.l.s4 1966171168
            %v3617 = vunpack.c.0.s8 %v3616
            %v3618 = vlaneseq
            %v3619 = vshrl.u32 %v3618, 7
            %v3620 = vsub.s32 %v3617, %v3619
            %v3621 = vrot.slane %v3613, %v3620
            %v3623 = vunpack.c.l.s4 1966171168
            %v3624 = vunpack.c.0.s8 %v3623
            %v3625 = vlaneseq
            %v3626 = vshrl.u32 %v3625, 7
            %v3627 = vsub.s32 %v3624, %v3626
            %v3628 = vrot.slane %v3614, %v3627
            %v3629 = vcombine.low %v3621, %v3628
            %v3631 = vunpack.c.l.s4 1966171168
            %v3632 = vunpack.c.0.s8 %v3631
            %v3633 = vlaneseq
            %v3634 = vshrl.u32 %v3633, 7
            %v3635 = vsub.s32 %v3632, %v3634
            %v3636 = vrot.slane %v3629, %v3635
            %v3638 = vadd.f32 %v3580, %v3636
            %3639 = vst.msk [vmem:[%s3579] ss:$2 sm:$0xf] %vm3577, %v3638
            // Predicated region
            $region85: #{channel_compress.1} parent=79 // pred_check
              %p3640 = pneg %p3514
            $region86: #{channel_compress.1} parent=79 // pred_check_branch
              %3642 = sbr.rel (%p3640) target = $region88
            $region87: #{channel_compress.1} parent=79 // pred_region
              %v3643 = vld [vmem:[#allocation3] ss:$2 sm:$0xf]
              %v3644 = vmul.f32 %v3643, 0.125
              %v3645 = vld [vmem:[%s3579] ss:$2 sm:$0xf]
              %v3646 = vmul.f32 %v3645, 0.125
              %v3647 = vmul.f32 %v3644, %v3644
              %v3648 = vsub.f32 %v3646, %v3647
              %v3649 = vmax.f32 %v3648, 0.0
              %v3650 = vld [vmem:[%s4] ss:$2 sm:$0xf]
              %v3651 = vadd.f32 %v3649, 1e-05
              %v3652 = vrsqrt.pop %v3651
              %v3653 = vmul.f32 %v3650, %v3652
              %3654 = vst.msk [vmem:[#allocation5] ss:$2 sm:$0xf] %vm3577, %v3653
              %s3655 = scalar_lea.vmem %s4, 1
              %v3656 = vld [vmem:[%s3655] ss:$2 sm:$0xf]
              %v3657 = vmul.f32 %v3644, %v3653
              %v3658 = vsub.f32 %v3656, %v3657
              %s3659 = scalar_lea.vmem [#allocation5], 1
              %3660 = vst.msk [vmem:[%s3659] ss:$2 sm:$0xf] %vm3577, %v3658
            $region88: #{channel_compress.1} parent=79 // pred_fallthru
              _
          $region80: #{channel_compress.1} parent=75 // pred_fallthru
            _
          %p3661 = scmp.eq.s32.totalorder %s25, 2
          // Predicated region
          $region89: #{channel_compress.1} parent=75 // pred_check
            %p3662 = pneg %p3661
          $region90: #{channel_compress.1} parent=75 // pred_check_branch
            %3664 = sbr.rel (%p3662) target = $region92
          $region91: #{channel_compress.1} parent=75 // pred_region
            %v3665 = vld [vmem:[#allocation5] ss:$2 sm:$0xf]
            %v3667 = vlaneseq
            %v3668 = vshrl.u32 %v3667, 7
            %v3669 = vsub.s32 0, %v3668
            %v3670 = vrot.slane %v3665, %v3669
            %v3671 = vlaneseq
            %v3672 = vshrl.u32 %v3671, 7
            %v3673 = vsub.s32 1, %v3672
            %v3674 = vrot.slane %v3665, %v3673
            %v3675 = vlaneseq
            %v3676 = vshrl.u32 %v3675, 7
            %v3677 = vsub.s32 2, %v3676
            %v3678 = vrot.slane %v3665, %v3677
            %v3679 = vlaneseq
            %v3680 = vshrl.u32 %v3679, 7
            %v3681 = vsub.s32 3, %v3680
            %v3682 = vrot.slane %v3665, %v3681
            %v3687 = vmul.f32 %v3340, %v3670
            %v3688 = vmul.f32 %v3342, %v3674
            %v3689 = vmul.f32 %v3504, %v3678
            %v3690 = vmul.f32 %v3506, %v3682
            %s3691 = scalar_lea.vmem [#allocation5], 1
            %v3692 = vld [vmem:[%s3691] ss:$2 sm:$0xf]
            %v3694 = vlaneseq
            %v3695 = vshrl.u32 %v3694, 7
            %v3696 = vsub.s32 0, %v3695
            %v3697 = vrot.slane %v3692, %v3696
            %v3698 = vlaneseq
            %v3699 = vshrl.u32 %v3698, 7
            %v3700 = vsub.s32 1, %v3699
            %v3701 = vrot.slane %v3692, %v3700
            %v3702 = vlaneseq
            %v3703 = vshrl.u32 %v3702, 7
            %v3704 = vsub.s32 2, %v3703
            %v3705 = vrot.slane %v3692, %v3704
            %v3706 = vlaneseq
            %v3707 = vshrl.u32 %v3706, 7
            %v3708 = vsub.s32 3, %v3707
            %v3709 = vrot.slane %v3692, %v3708
            %v3714 = vadd.f32 %v3687, %v3697
            %v3715 = vadd.f32 %v3688, %v3701
            %v3716 = vadd.f32 %v3689, %v3705
            %v3717 = vadd.f32 %v3690, %v3709
            %v3718 = vmax.f32 %v3714, 0.0
            %v3719 = vmax.f32 %v3715, 0.0
            %v3720 = vmax.f32 %v3716, 0.0
            %v3721 = vmax.f32 %v3717, 0.0
            %v3722 = vpack.c.bf16 %v3718, %v3718
            %v3723 = vpack.c.bf16 %v3719, %v3719
            %v3724 = vpack.c.bf16 %v3720, %v3720
            %v3725 = vpack.c.bf16 %v3721, %v3721
            %v3726 = vld [vmem:[#allocation11] sm:$0xf]
            %v3727 = vld [vmem:[#allocation11 + $0x4] sm:$0xf]
            %v3728 = vld [vmem:[#allocation11 + $0x8] sm:$0xf]
            %v3729 = vld [vmem:[#allocation11 + $0xc] sm:$0xf]
            %v3730 = vld [vmem:[#allocation11 + $0x10] sm:$0xf]
            %v3731 = vld [vmem:[#allocation11 + $0x14] sm:$0xf]
            %v3732 = vld [vmem:[#allocation11 + $0x18] sm:$0xf]
            %v3733 = vld [vmem:[#allocation11 + $0x1c] sm:$0xf]
            %v3734 = vld [vmem:[#allocation11 + $0x20] sm:$0xf]
            %v3735 = vld [vmem:[#allocation11 + $0x24] sm:$0xf]
            %v3736 = vld [vmem:[#allocation11 + $0x28] sm:$0xf]
            %v3737 = vld [vmem:[#allocation11 + $0x2c] sm:$0xf]
            %v3738 = vld [vmem:[#allocation11 + $0x30] sm:$0xf]
            %v3739 = vld [vmem:[#allocation11 + $0x34] sm:$0xf]
            %v3740 = vld [vmem:[#allocation11 + $0x38] sm:$0xf]
            %v3741 = vld [vmem:[#allocation11 + $0x3c] sm:$0xf]
            %v3742 = vld [vmem:[#allocation11 + $0x40] sm:$0xf]
            %v3743 = vld [vmem:[#allocation11 + $0x44] sm:$0xf]
            %v3744 = vld [vmem:[#allocation11 + $0x48] sm:$0xf]
            %v3745 = vld [vmem:[#allocation11 + $0x4c] sm:$0xf]
            %v3746 = vld [vmem:[#allocation11 + $0x50] sm:$0xf]
            %v3747 = vld [vmem:[#allocation11 + $0x54] sm:$0xf]
            %v3748 = vld [vmem:[#allocation11 + $0x58] sm:$0xf]
            %v3749 = vld [vmem:[#allocation11 + $0x5c] sm:$0xf]
            %v3750 = vld [vmem:[#allocation11 + $0x60] sm:$0xf]
            %v3751 = vld [vmem:[#allocation11 + $0x64] sm:$0xf]
            %v3752 = vld [vmem:[#allocation11 + $0x68] sm:$0xf]
            %v3753 = vld [vmem:[#allocation11 + $0x6c] sm:$0xf]
            %v3754 = vld [vmem:[#allocation11 + $0x70] sm:$0xf]
            %v3755 = vld [vmem:[#allocation11 + $0x74] sm:$0xf]
            %v3756 = vld [vmem:[#allocation11 + $0x78] sm:$0xf]
            %v3757 = vld [vmem:[#allocation11 + $0x7c] sm:$0xf]
            %v3758 = vld [vmem:[#allocation11 + $0x80] sm:$0xf]
            %v3759 = vld [vmem:[#allocation11 + $0x84] sm:$0xf]
            %v3760 = vld [vmem:[#allocation11 + $0x88] sm:$0xf]
            %v3761 = vld [vmem:[#allocation11 + $0x8c] sm:$0xf]
            %v3762 = vld [vmem:[#allocation11 + $0x90] sm:$0xf]
            %v3763 = vld [vmem:[#allocation11 + $0x94] sm:$0xf]
            %v3764 = vld [vmem:[#allocation11 + $0x98] sm:$0xf]
            %v3765 = vld [vmem:[#allocation11 + $0x9c] sm:$0xf]
            %v3766 = vld [vmem:[#allocation11 + $0xa0] sm:$0xf]
            %v3767 = vld [vmem:[#allocation11 + $0xa4] sm:$0xf]
            %v3768 = vld [vmem:[#allocation11 + $0xa8] sm:$0xf]
            %v3769 = vld [vmem:[#allocation11 + $0xac] sm:$0xf]
            %v3770 = vld [vmem:[#allocation11 + $0xb0] sm:$0xf]
            %v3771 = vld [vmem:[#allocation11 + $0xb4] sm:$0xf]
            %v3772 = vld [vmem:[#allocation11 + $0xb8] sm:$0xf]
            %v3773 = vld [vmem:[#allocation11 + $0xbc] sm:$0xf]
            %v3774 = vld [vmem:[#allocation11 + $0xc0] sm:$0xf]
            %v3775 = vld [vmem:[#allocation11 + $0xc4] sm:$0xf]
            %v3776 = vld [vmem:[#allocation11 + $0xc8] sm:$0xf]
            %v3777 = vld [vmem:[#allocation11 + $0xcc] sm:$0xf]
            %v3778 = vld [vmem:[#allocation11 + $0xd0] sm:$0xf]
            %v3779 = vld [vmem:[#allocation11 + $0xd4] sm:$0xf]
            %v3780 = vld [vmem:[#allocation11 + $0xd8] sm:$0xf]
            %v3781 = vld [vmem:[#allocation11 + $0xdc] sm:$0xf]
            %v3782 = vld [vmem:[#allocation11 + $0xe0] sm:$0xf]
            %v3783 = vld [vmem:[#allocation11 + $0xe4] sm:$0xf]
            %v3784 = vld [vmem:[#allocation11 + $0xe8] sm:$0xf]
            %v3785 = vld [vmem:[#allocation11 + $0xec] sm:$0xf]
            %v3786 = vld [vmem:[#allocation11 + $0xf0] sm:$0xf]
            %v3787 = vld [vmem:[#allocation11 + $0xf4] sm:$0xf]
            %v3788 = vld [vmem:[#allocation11 + $0xf8] sm:$0xf]
            %v3789 = vld [vmem:[#allocation11 + $0xfc] sm:$0xf]
            %v3790 = vld [vmem:[%s6] sm:$0x1]
            %v3792 = vlaneseq
            %v3793 = vshrl.u32 %v3792, 7
            %v3794 = vsub.s32 0, %v3793
            %v3795 = vrot.slane %v3790, %v3794
            %v3861 = vunpack.c.l.b16 %v3726
            %v3862 = vunpack.c.l.b16 %v3727
            %v3863 = vunpack.c.l.b16 %v3728
            %v3864 = vunpack.c.l.b16 %v3729
            %v3865 = vunpack.c.l.b16 %v3730
            %v3866 = vunpack.c.l.b16 %v3731
            %v3867 = vunpack.c.l.b16 %v3732
            %v3868 = vunpack.c.l.b16 %v3733
            %v3869 = vunpack.c.l.b16 %v3734
            %v3870 = vunpack.c.l.b16 %v3735
            %v3871 = vunpack.c.l.b16 %v3736
            %v3872 = vunpack.c.l.b16 %v3737
            %v3873 = vunpack.c.l.b16 %v3738
            %v3874 = vunpack.c.l.b16 %v3739
            %v3875 = vunpack.c.l.b16 %v3740
            %v3876 = vunpack.c.l.b16 %v3741
            %v3877 = vunpack.c.l.b16 %v3742
            %v3878 = vunpack.c.l.b16 %v3743
            %v3879 = vunpack.c.l.b16 %v3744
            %v3880 = vunpack.c.l.b16 %v3745
            %v3881 = vunpack.c.l.b16 %v3746
            %v3882 = vunpack.c.l.b16 %v3747
            %v3883 = vunpack.c.l.b16 %v3748
            %v3884 = vunpack.c.l.b16 %v3749
            %v3885 = vunpack.c.l.b16 %v3750
            %v3886 = vunpack.c.l.b16 %v3751
            %v3887 = vunpack.c.l.b16 %v3752
            %v3888 = vunpack.c.l.b16 %v3753
            %v3889 = vunpack.c.l.b16 %v3754
            %v3890 = vunpack.c.l.b16 %v3755
            %v3891 = vunpack.c.l.b16 %v3756
            %v3892 = vunpack.c.l.b16 %v3757
            %v3893 = vunpack.c.l.b16 %v3758
            %v3894 = vunpack.c.l.b16 %v3759
            %v3895 = vunpack.c.l.b16 %v3760
            %v3896 = vunpack.c.l.b16 %v3761
            %v3897 = vunpack.c.l.b16 %v3762
            %v3898 = vunpack.c.l.b16 %v3763
            %v3899 = vunpack.c.l.b16 %v3764
            %v3900 = vunpack.c.l.b16 %v3765
            %v3901 = vunpack.c.l.b16 %v3766
            %v3902 = vunpack.c.l.b16 %v3767
            %v3903 = vunpack.c.l.b16 %v3768
            %v3904 = vunpack.c.l.b16 %v3769
            %v3905 = vunpack.c.l.b16 %v3770
            %v3906 = vunpack.c.l.b16 %v3771
            %v3907 = vunpack.c.l.b16 %v3772
            %v3908 = vunpack.c.l.b16 %v3773
            %v3909 = vunpack.c.l.b16 %v3774
            %v3910 = vunpack.c.l.b16 %v3775
            %v3911 = vunpack.c.l.b16 %v3776
            %v3912 = vunpack.c.l.b16 %v3777
            %v3913 = vunpack.c.l.b16 %v3778
            %v3914 = vunpack.c.l.b16 %v3779
            %v3915 = vunpack.c.l.b16 %v3780
            %v3916 = vunpack.c.l.b16 %v3781
            %v3917 = vunpack.c.l.b16 %v3782
            %v3918 = vunpack.c.l.b16 %v3783
            %v3919 = vunpack.c.l.b16 %v3784
            %v3920 = vunpack.c.l.b16 %v3785
            %v3921 = vunpack.c.l.b16 %v3786
            %v3922 = vunpack.c.l.b16 %v3787
            %v3923 = vunpack.c.l.b16 %v3788
            %v3924 = vunpack.c.l.b16 %v3789
            %v3925 = vpack.c.b16 %v3862, %v3861
            %v3926 = vpack.c.b16 %v3864, %v3863
            %v3927 = vpack.c.b16 %v3866, %v3865
            %v3928 = vpack.c.b16 %v3868, %v3867
            %v3929 = vpack.c.b16 %v3870, %v3869
            %v3930 = vpack.c.b16 %v3872, %v3871
            %v3931 = vpack.c.b16 %v3874, %v3873
            %v3932 = vpack.c.b16 %v3876, %v3875
            %v3933 = vpack.c.b16 %v3878, %v3877
            %v3934 = vpack.c.b16 %v3880, %v3879
            %v3935 = vpack.c.b16 %v3882, %v3881
            %v3936 = vpack.c.b16 %v3884, %v3883
            %v3937 = vpack.c.b16 %v3886, %v3885
            %v3938 = vpack.c.b16 %v3888, %v3887
            %v3939 = vpack.c.b16 %v3890, %v3889
            %v3940 = vpack.c.b16 %v3892, %v3891
            %v3941 = vpack.c.b16 %v3894, %v3893
            %v3942 = vpack.c.b16 %v3896, %v3895
            %v3943 = vpack.c.b16 %v3898, %v3897
            %v3944 = vpack.c.b16 %v3900, %v3899
            %v3945 = vpack.c.b16 %v3902, %v3901
            %v3946 = vpack.c.b16 %v3904, %v3903
            %v3947 = vpack.c.b16 %v3906, %v3905
            %v3948 = vpack.c.b16 %v3908, %v3907
            %v3949 = vpack.c.b16 %v3910, %v3909
            %v3950 = vpack.c.b16 %v3912, %v3911
            %v3951 = vpack.c.b16 %v3914, %v3913
            %v3952 = vpack.c.b16 %v3916, %v3915
            %v3953 = vpack.c.b16 %v3918, %v3917
            %v3954 = vpack.c.b16 %v3920, %v3919
            %v3955 = vpack.c.b16 %v3922, %v3921
            %v3956 = vpack.c.b16 %v3924, %v3923
            %3989 = vmatprep.subr.bf16.mxu0 0
            %3990 = vmatpush1.bf16.msra.mxu0 %v3932
            %3991 = vmatprep.subr.bf16.mxu0 0
            %3992 = vmatpush1.bf16.msra.mxu0 %v3931
            %3993 = vmatprep.subr.bf16.mxu0 0
            %3994 = vmatpush1.bf16.msra.mxu0 %v3930
            %3995 = vmatprep.subr.bf16.mxu0 0
            %3996 = vmatpush1.bf16.msra.mxu0 %v3929
            %3997 = vmatprep.subr.bf16.mxu0 0
            %3998 = vmatpush1.bf16.msra.mxu0 %v3928
            %3999 = vmatprep.subr.bf16.mxu0 0
            %4000 = vmatpush1.bf16.msra.mxu0 %v3927
            %4001 = vmatprep.subr.bf16.mxu0 0
            %4002 = vmatpush1.bf16.msra.mxu0 %v3926
            %4003 = vmatprep.subr.bf16.mxu0 0
            %4004 = vmatpush1.bf16.msra.mxu0 %v3925
            %4005 = vmatprep.subr.bf16.mxu0 0
            %4006 = vmatpush2.bf16.msra.mxu0 %v3940
            %4007 = vmatprep.subr.bf16.mxu0 0
            %4008 = vmatpush2.bf16.msra.mxu0 %v3939
            %4009 = vmatprep.subr.bf16.mxu0 0
            %4010 = vmatpush2.bf16.msra.mxu0 %v3938
            %4011 = vmatprep.subr.bf16.mxu0 0
            %4012 = vmatpush2.bf16.msra.mxu0 %v3937
            %4013 = vmatprep.subr.bf16.mxu0 0
            %4014 = vmatpush2.bf16.msra.mxu0 %v3936
            %4015 = vmatprep.subr.bf16.mxu0 0
            %4016 = vmatpush2.bf16.msra.mxu0 %v3935
            %4017 = vmatprep.subr.bf16.mxu0 0
            %4018 = vmatpush2.bf16.msra.mxu0 %v3934
            %4019 = vmatprep.subr.bf16.mxu0 0
            %4020 = vmatpush2.bf16.msra.mxu0 %v3933
            %4021 = vmatprep.mubr.bf16.mxu0 %v3723
            %4022 = vmatmul.mubr.bf16.gmra.mxu0 %v3722
            %v4023 = vpop.f32.mrf.mxu0
            %v4024 = vadd.f32 %v3795, %v4023
            %v4025 = vpop.f32.mrf.mxu0
            %v4026 = vpop.f32.mrf.mxu0
            %v4027 = vpop.f32.mrf.mxu0
            %4028 = vdwg.mxu0
            %4029 = vmatprep.subr.bf16.mxu0 0
            %4030 = vmatpush1.bf16.msra.mxu0 %v3948
            %4031 = vmatprep.subr.bf16.mxu0 0
            %4032 = vmatpush1.bf16.msra.mxu0 %v3947
            %4033 = vmatprep.subr.bf16.mxu0 0
            %4034 = vmatpush1.bf16.msra.mxu0 %v3946
            %4035 = vmatprep.subr.bf16.mxu0 0
            %4036 = vmatpush1.bf16.msra.mxu0 %v3945
            %4037 = vmatprep.subr.bf16.mxu0 0
            %4038 = vmatpush1.bf16.msra.mxu0 %v3944
            %4039 = vmatprep.subr.bf16.mxu0 0
            %4040 = vmatpush1.bf16.msra.mxu0 %v3943
            %4041 = vmatprep.subr.bf16.mxu0 0
            %4042 = vmatpush1.bf16.msra.mxu0 %v3942
            %4043 = vmatprep.subr.bf16.mxu0 0
            %4044 = vmatpush1.bf16.msra.mxu0 %v3941
            %4045 = vmatprep.subr.bf16.mxu0 0
            %4046 = vmatpush2.bf16.msra.mxu0 %v3956
            %4047 = vmatprep.subr.bf16.mxu0 0
            %4048 = vmatpush2.bf16.msra.mxu0 %v3955
            %4049 = vmatprep.subr.bf16.mxu0 0
            %4050 = vmatpush2.bf16.msra.mxu0 %v3954
            %4051 = vmatprep.subr.bf16.mxu0 0
            %4052 = vmatpush2.bf16.msra.mxu0 %v3953
            %4053 = vmatprep.subr.bf16.mxu0 0
            %4054 = vmatpush2.bf16.msra.mxu0 %v3952
            %4055 = vmatprep.subr.bf16.mxu0 0
            %4056 = vmatpush2.bf16.msra.mxu0 %v3951
            %4057 = vmatprep.subr.bf16.mxu0 0
            %4058 = vmatpush2.bf16.msra.mxu0 %v3950
            %4059 = vmatprep.subr.bf16.mxu0 0
            %4060 = vmatpush2.bf16.msra.mxu0 %v3949
            %4061 = vmatprep.mubr.bf16.mxu0 %v3725
            %4062 = vmatmul.mubr.bf16.gmra.mxu0 %v3724
            %v4063 = vpop.f32.mrf.mxu0
            %v4064 = vadd.f32 %v4024, %v4063
            %v4065 = vpop.f32.mrf.mxu0
            %v4066 = vpop.f32.mrf.mxu0
            %v4067 = vpop.f32.mrf.mxu0
            %4068 = vdwg.mxu0
            %4069 = vst [vmem:[#allocation12] sm:$0xff] %v4064
          $region92: #{channel_compress.1} parent=75 // pred_fallthru
            _
        $region76: #{channel_compress.1} parent=47 // pred_fallthru
          _
        // Predicated region
        $region93: #{channel_compress.1} parent=47 // pred_check
          %p4070 = pneg %p203
        $region94: #{channel_compress.1} parent=47 // pred_check_branch
          %4072 = sbr.rel (%p4070) target = $region96
        $region95: #{channel_compress.1} parent=47 // pred_region
          %s4074 = ssub.s32 128, 128
          %4075 = vsyncadd [#allocation8], %s4074
          %s4076 = smul.addr %s26, 128
          %s4077 = scalar_lea.hbm %s7, %s4076
          %s4079 = sshll.u32 [#allocation12], 4
          %s4080 = int_to_ptr.vmem [resolvable:$true] %s4079
          %4082 = dma.vmem_to_hbm [thread:$0]  %s4080, 128, %s4077, [#allocation8]
        $region96: #{channel_compress.1} parent=47 // pred_fallthru
          _
        // Predicated region
        $region97: #{channel_compress.1} parent=47 // pred_check
          %p4083 = pneg %p203
        $region98: #{channel_compress.1} parent=47 // pred_check_branch
          %4085 = sbr.rel (%p4083) target = $region100
        $region99: #{channel_compress.1} parent=47 // pred_region
          %4086 = dma.done [#allocation8], 128
        $region100: #{channel_compress.1} parent=47 // pred_fallthru
          _
      $region48: #{channel_compress.1} parent=5 // pred_fallthru
        _
      %p4087 = scmp.le.s32.totalorder 2, %s16
      // Predicated region
      $region101: #{channel_compress.1} parent=5 // pred_check
        %p4088 = pneg %p4087
      $region102: #{channel_compress.1} parent=5 // pred_check_branch
        %4090 = sbr.rel (%p4088) target = $region104
      $region103: #{channel_compress.1} parent=5 // pred_region
        %s4091 = ssub.s32 %s16, 2
      $region104: #{channel_compress.1} parent=5 // pred_fallthru
        _
    $region6: #{channel_compress.1} parent=1 // loop_footer
      %s20 = sadd.s32 1, %s16
    $region7: #{channel_compress.1} parent=1 // loop_footer_branch
      %15 = sbr.rel target = $region3
    $region8: #{channel_compress.1} parent=1 // loop_exit
      _
    %4092 = vsyncpa [#allocation7], 1
    %s4093 = scalar_lea.sflag [#allocation7], 1
    %4094 = vsyncpa %s4093, 1
    %4095 = vsyncpa [#allocation10], 1
    %4096 = vsyncpa [#allocation8], 1
    %s4097 = scalar_lea.sflag [#allocation8], 1
    %4098 = vsyncpa %s4097, 1

</llo_original>
